<compile_context>
chip_gen: v7x
topology: tpu7x:2x2x1
jax: 0.10.0
libtpu: 0.0.40
codegen_flags: <defaults>
</compile_context>

<pallas_src>
import functools
import math

import jax
import jax.numpy as jnp
import numpy as np
from jax.experimental import pallas as pl
from jax.experimental.pallas import tpu as pltpu

EPS = 1e-5

# Matmul-operand dtype knob (review: bf16 operands + f32 accumulate when the
# kernel is scaled to real D / seq-len; kept f32 here so the tiny test matches
# the f32 reference tightly; softmax/BN statistics stay f32 regardless).
MATMUL_DTYPE = jnp.float32


def _mm(a, w):
    """2-D matmul with f32 accumulation (operands optionally bf16)."""
    return jnp.dot(a.astype(MATMUL_DTYPE), w.astype(MATMUL_DTYPE),
                   preferred_element_type=jnp.float32)


def _batchnorm(h, gamma, beta):
    """Training-mode BatchNorm1d over B*N rows (biased variance), f32 stats."""
    mean = jnp.mean(h, axis=0, keepdims=True)
    var = jnp.mean((h - mean) ** 2, axis=0, keepdims=True)
    return (h - mean) * jax.lax.rsqrt(var + EPS) * gamma + beta


# ------------------------------ fused kernel --------------------------------

def encoder_kernel(n_layers, n_heads, B, N,
                   x_ref, sel_ref, selt_ref, wp_ref, bp_ref,
                   wq_ref, wk_ref, wv_ref, wc_ref, bc_ref,
                   wf1_ref, bf1_ref, wf2_ref, bf2_ref,
                   g1_ref, be1_ref, g2_ref, be2_ref,
                   o_ref):
    D = wp_ref.shape[1]
    M = B * N
    dh = D // n_heads
    scale = 1.0 / math.sqrt(dh)

    sel = sel_ref[...]      # (D, H): sel[c, h] = 1 if channel c belongs to head h
    selt = selt_ref[...]    # (H, D): transpose of sel (built in the wrapper)

    # init projection
    h = _mm(x_ref[...], wp_ref[...]) + bp_ref[...]          # (M, D)

    for l in range(n_layers):                               # static unroll
        # ---- multi-head self-attention ----------------------------------
        q = _mm(h, wq_ref[l]).reshape(B, N, D)
        k = _mm(h, wk_ref[l]).reshape(B, N, D)
        v = _mm(h, wv_ref[l]).reshape(B, N, D)

        # Per-head scores with no per-head loop / lane slicing / concat:
        #   prod[b,i,j,c] = q[b,i,c] * k[b,j,c]            (VPU broadcast-mul)
        #   s[b,i,j,h]    = sum_c prod * sel[c,h]          (one tiny matmul)
        prod = q[:, :, None, :] * k[:, None, :, :]                    # (B,N,N,D)
        s = _mm(prod.reshape(B * N * N, D), sel).reshape(B, N, N, n_heads)
        s = s * scale

        # softmax over the key axis (axis=2); max-subtracted, f32 stats,
        # EUP approximate reciprocal for the denominator.
        m = jnp.max(s, axis=2, keepdims=True)
        e = jnp.exp(s - m)
        denom = jnp.sum(e, axis=2, keepdims=True)
        p = e * pl.reciprocal(denom, approx=True)                     # (B,N,N,H)

        # attn[b,i,c] = sum_j p[b,i,j,head(c)] * v[b,j,c]
        pe = _mm(p.reshape(B * N * N, n_heads), selt).reshape(B, N, N, D)
        attn = jnp.sum(pe * v[:, None, :, :], axis=2).reshape(M, D)

        # residual + output projection
        h = h + _mm(attn, wc_ref[l]) + bc_ref[l]

        # BatchNorm #1
        h = _batchnorm(h, g1_ref[l], be1_ref[l])

        # feed-forward + residual
        ff = jnp.maximum(_mm(h, wf1_ref[l]) + bf1_ref[l], 0.0)
        ff = _mm(ff, wf2_ref[l]) + bf2_ref[l]
        h = h + ff

        # BatchNorm #2
        h = _batchnorm(h, g2_ref[l], be2_ref[l])

    o_ref[...] = h                                           # lane-dense (M, D)


# ------------------------------- wrapper -------------------------------------

def _full_spec(shape):
    return pl.BlockSpec(shape, lambda i: (0,) * len(shape))


def encoder_forward(x, params, n_heads):
    B, N, input_dim = x.shape
    wp, bp = params["proj"]
    D = wp.shape[1]
    L = len(params["layers"])
    dh = D // n_heads
    M = B * N

    # Stack per-layer weights along a leading "layer" axis so one fused
    # pallas_call keeps every layer's weights VMEM-resident.
    stack = lambda name: jnp.stack([lp[name] for lp in params["layers"]])
    wq, wk, wv, wc = stack("wq"), stack("wk"), stack("wv"), stack("wc")
    bc, wf1, bf1 = stack("bc"), stack("wf1"), stack("bf1")
    wf2, bf2 = stack("wf2"), stack("bf2")
    g1, b1, g2, b2 = stack("g1"), stack("b1"), stack("g2"), stack("b2")

    # Constant head-selector matrices (built once, outside the kernel).
    sel_np = (np.arange(D)[:, None] // dh ==
              np.arange(n_heads)[None, :]).astype(np.float32)
    sel = jnp.asarray(sel_np)          # (D, H)
    selt = jnp.asarray(sel_np.T)       # (H, D)

    xf = x.reshape(M, input_dim)       # lane/sublane-friendly 2-D slab

    args = (xf, sel, selt, wp, bp, wq, wk, wv, wc, bc,
            wf1, bf1, wf2, bf2, g1, b1, g2, b2)
    in_specs = [_full_spec(a.shape) for a in args]

    # Advisory cost estimate for XLA's scheduler.
    Dff = 4 * D
    flops_layer = (4 * 2 * M * D * D              # Wq, Wk, Wv, combine
                   + 2 * 2 * M * D * Dff          # feed-forward
                   + 2 * M * N * D                # q*k products
                   + 2 * 2 * M * N * D * n_heads  # head-selector matmuls
                   + 2 * M * N * D)               # p*v weighted sum
    flops = 2 * M * input_dim * D + L * flops_layer
    transcendentals = L * (2 * M * N * n_heads + 2 * D)
    bytes_accessed = 4 * (sum(int(np.prod(a.shape)) for a in args) + M * D)
    cost = pl.CostEstimate(flops=flops, transcendentals=transcendentals,
                           bytes_accessed=bytes_accessed)

    out2d = pl.pallas_call(
        functools.partial(encoder_kernel, L, n_heads, B, N),
        out_shape=jax.ShapeDtypeStruct((M, D), jnp.float32),
        grid=(1,),
        in_specs=in_specs,
        out_specs=_full_spec((M, D)),
        compiler_params=pltpu.CompilerParams(
            dimension_semantics=("arbitrary",),
            vmem_limit_bytes=32 * 1024 * 1024),   # explicit; fits all of v5e/v6e/v7x
        cost_estimate=cost,
    )(*args)
    return out2d.reshape(B, N, D)


# ------------------------- parameter initialization --------------------------

def _init_linear(key, fan_in, fan_out, bias=True):
    kw, kb = jax.random.split(key)
    bound = 1.0 / math.sqrt(fan_in)
    w = jax.random.uniform(kw, (fan_in, fan_out), jnp.float32, -bound, bound)
    if not bias:
        return w
    b = jax.random.uniform(kb, (1, fan_out), jnp.float32, -bound, bound)
    return w, b


def make_params(key, n_layers, input_dim, D):
    keys = jax.random.split(key, 1 + n_layers)
    params = {"proj": _init_linear(keys[0], input_dim, D), "layers": []}
    for li in range(n_layers):
        ks = jax.random.split(keys[1 + li], 6)
        wc, bc = _init_linear(ks[3], D, D)
        wf1, bf1 = _init_linear(ks[4], D, 4 * D)
        wf2, bf2 = _init_linear(ks[5], 4 * D, D)
        params["layers"].append(dict(
            wq=_init_linear(ks[0], D, D, bias=False),
            wk=_init_linear(ks[1], D, D, bias=False),
            wv=_init_linear(ks[2], D, D, bias=False),
            wc=wc, bc=bc, wf1=wf1, bf1=bf1, wf2=wf2, bf2=bf2,
            g1=jnp.ones((1, D), jnp.float32), b1=jnp.zeros((1, D), jnp.float32),
            g2=jnp.ones((1, D), jnp.float32), b2=jnp.zeros((1, D), jnp.float32),
        ))
    return params


# ---------------------------- pure-JAX reference ------------------------------

def _layer_ref(x, p, n_heads):
    B, N, D = x.shape
    dh = D // n_heads

    def heads(y):  # (B,N,D) -> (B,H,N,dh)
        return y.reshape(B, N, n_heads, dh).transpose(0, 2, 1, 3)

    q, k, v = heads(x @ p["wq"]), heads(x @ p["wk"]), heads(x @ p["wv"])
    s = jnp.einsum('bhnd,bhmd->bhnm', q, k) / math.sqrt(dh)
    a = jax.nn.softmax(s, axis=-1)
    o = jnp.einsum('bhnm,bhmd->bhnd', a, v).transpose(0, 2, 1, 3).reshape(B, N, D)
    h = x + (o @ p["wc"] + p["bc"][0])

    def bn(y, g, b):
        m = jnp.mean(y, axis=0, keepdims=True)
        vv = jnp.mean((y - m) ** 2, axis=0, keepdims=True)
        return (y - m) / jnp.sqrt(vv + EPS) * g + b

    hf = bn(h.reshape(B * N, D), p["g1"][0], p["b1"][0])
    ff = jnp.maximum(hf @ p["wf1"] + p["bf1"][0], 0.0) @ p["wf2"] + p["bf2"][0]
    hf = bn(hf + ff, p["g2"][0], p["b2"][0])
    return hf.reshape(B, N, D)


def encoder_ref(x, params, n_heads):
    w, b = params["proj"]
    h = x @ w + b[0]
    for lp in params["layers"]:
        h = _layer_ref(h, lp, n_heads)
    return h


# ---------------------------------- main --------------------------------------

if __name__ == "__main__":
    n_layers, n_heads = 2, 8
    input_dim, embedding_dim = 16, 32
    B, N = 2, 8

    key = jax.random.PRNGKey(0)
    kx, kp = jax.random.split(key)
    x = jax.random.normal(kx, (B, N, input_dim), jnp.float32)
    params = make_params(kp, n_layers, input_dim, embedding_dim)

    out = jax.block_until_ready(encoder_forward(x, params, n_heads))
    ref = jax.block_until_ready(encoder_ref(x, params, n_heads))

    # Everything is f32 except the softmax denominator, which uses the EUP
    # approximate reciprocal; the tolerance covers that path (with
    # approx=False the kernel matches the reference at ~2e-3).
    np.testing.assert_allclose(np.asarray(out), np.asarray(ref),
                               rtol=2e-2, atol=2e-2)
    print("KERNEL_OK")
</pallas_src>

<mosaic_0001>
module attributes {stable_mosaic.version = 11 : i64} {
  func.func @encoder_kernel(%arg0: i32, %arg1: memref<16x16xf32, #tpu.memory_space<vmem>>, %arg2: memref<32x8xf32, #tpu.memory_space<vmem>>, %arg3: memref<8x32xf32, #tpu.memory_space<vmem>>, %arg4: memref<16x32xf32, #tpu.memory_space<vmem>>, %arg5: memref<1x32xf32, #tpu.memory_space<vmem>>, %arg6: memref<2x32x32xf32, #tpu.memory_space<vmem>>, %arg7: memref<2x32x32xf32, #tpu.memory_space<vmem>>, %arg8: memref<2x32x32xf32, #tpu.memory_space<vmem>>, %arg9: memref<2x32x32xf32, #tpu.memory_space<vmem>>, %arg10: memref<2x1x32xf32, #tpu.memory_space<vmem>>, %arg11: memref<2x32x128xf32, #tpu.memory_space<vmem>>, %arg12: memref<2x1x128xf32, #tpu.memory_space<vmem>>, %arg13: memref<2x128x32xf32, #tpu.memory_space<vmem>>, %arg14: memref<2x1x32xf32, #tpu.memory_space<vmem>>, %arg15: memref<2x1x32xf32, #tpu.memory_space<vmem>>, %arg16: memref<2x1x32xf32, #tpu.memory_space<vmem>>, %arg17: memref<2x1x32xf32, #tpu.memory_space<vmem>>, %arg18: memref<2x1x32xf32, #tpu.memory_space<vmem>>, %arg19: memref<16x32xf32, #tpu.memory_space<vmem>>) attributes {dimension_semantics = [#tpu.dimension_semantics<arbitrary>], iteration_bounds = array<i64: 1>, scalar_prefetch = 0 : i64, scratch_operands = 0 : i64, tpu.core_type = #tpu.core_type<tc>, window_params = [{pipeline_mode = #tpu.pipeline_mode<synchronous>, transform_indices = @transform_0, window_bounds = array<i64: 16, 16>}, {pipeline_mode = #tpu.pipeline_mode<synchronous>, transform_indices = @transform_1, window_bounds = array<i64: 32, 8>}, {pipeline_mode = #tpu.pipeline_mode<synchronous>, transform_indices = @transform_2, window_bounds = array<i64: 8, 32>}, {pipeline_mode = #tpu.pipeline_mode<synchronous>, transform_indices = @transform_3, window_bounds = array<i64: 16, 32>}, {pipeline_mode = #tpu.pipeline_mode<synchronous>, transform_indices = @transform_4, window_bounds = array<i64: 1, 32>}, {pipeline_mode = #tpu.pipeline_mode<synchronous>, transform_indices = @transform_5, window_bounds = array<i64: 2, 32, 32>}, {pipeline_mode = #tpu.pipeline_mode<synchronous>, transform_indices = @transform_6, window_bounds = array<i64: 2, 32, 32>}, {pipeline_mode = #tpu.pipeline_mode<synchronous>, transform_indices = @transform_7, window_bounds = array<i64: 2, 32, 32>}, {pipeline_mode = #tpu.pipeline_mode<synchronous>, transform_indices = @transform_8, window_bounds = array<i64: 2, 32, 32>}, {pipeline_mode = #tpu.pipeline_mode<synchronous>, transform_indices = @transform_9, window_bounds = array<i64: 2, 1, 32>}, {pipeline_mode = #tpu.pipeline_mode<synchronous>, transform_indices = @transform_10, window_bounds = array<i64: 2, 32, 128>}, {pipeline_mode = #tpu.pipeline_mode<synchronous>, transform_indices = @transform_11, window_bounds = array<i64: 2, 1, 128>}, {pipeline_mode = #tpu.pipeline_mode<synchronous>, transform_indices = @transform_12, window_bounds = array<i64: 2, 128, 32>}, {pipeline_mode = #tpu.pipeline_mode<synchronous>, transform_indices = @transform_13, window_bounds = array<i64: 2, 1, 32>}, {pipeline_mode = #tpu.pipeline_mode<synchronous>, transform_indices = @transform_14, window_bounds = array<i64: 2, 1, 32>}, {pipeline_mode = #tpu.pipeline_mode<synchronous>, transform_indices = @transform_15, window_bounds = array<i64: 2, 1, 32>}, {pipeline_mode = #tpu.pipeline_mode<synchronous>, transform_indices = @transform_16, window_bounds = array<i64: 2, 1, 32>}, {pipeline_mode = #tpu.pipeline_mode<synchronous>, transform_indices = @transform_17, window_bounds = array<i64: 2, 1, 32>}, {pipeline_mode = #tpu.pipeline_mode<synchronous>, transform_indices = @transform_18, window_bounds = array<i64: 16, 32>}]} {
    %c0 = arith.constant 0 : index
    %c0_0 = arith.constant 0 : index
    %0 = vector.load %arg2[%c0, %c0_0] : memref<32x8xf32, #tpu.memory_space<vmem>>, vector<32x8xf32>
    %c0_1 = arith.constant 0 : index
    %c0_2 = arith.constant 0 : index
    %1 = vector.load %arg3[%c0_1, %c0_2] : memref<8x32xf32, #tpu.memory_space<vmem>>, vector<8x32xf32>
    %c0_3 = arith.constant 0 : index
    %c0_4 = arith.constant 0 : index
    %2 = vector.load %arg1[%c0_3, %c0_4] : memref<16x16xf32, #tpu.memory_space<vmem>>, vector<16x16xf32>
    %c0_5 = arith.constant 0 : index
    %c0_6 = arith.constant 0 : index
    %3 = vector.load %arg4[%c0_5, %c0_6] : memref<16x32xf32, #tpu.memory_space<vmem>>, vector<16x32xf32>
    %cst = arith.constant dense<0.000000e+00> : vector<16x32xf32>
    %4 = tpu.matmul %2, %3, %cst {dimension_numbers = #tpu.dot_dimension_numbers<[1], [0], [0], [1], [0, 0, 1, 1], [], []>} : vector<16x16xf32>, vector<16x32xf32>, vector<16x32xf32> -> vector<16x32xf32>
    %c0_7 = arith.constant 0 : index
    %c0_8 = arith.constant 0 : index
    %5 = vector.load %arg5[%c0_7, %c0_8] : memref<1x32xf32, #tpu.memory_space<vmem>>, vector<1x32xf32>
    %6 = vector.broadcast %5 : vector<1x32xf32> to vector<16x32xf32>
    %7 = arith.addf %4, %6 : vector<16x32xf32>
    %c0_9 = arith.constant 0 : index
    %c0_10 = arith.constant 0 : index
    %c0_11 = arith.constant 0 : index
    %8 = vector.load %arg6[%c0_9, %c0_10, %c0_11] : memref<2x32x32xf32, #tpu.memory_space<vmem>>, vector<1x32x32xf32>
    %9 = vector.shape_cast %8 : vector<1x32x32xf32> to vector<32x32xf32>
    %cst_12 = arith.constant dense<0.000000e+00> : vector<16x32xf32>
    %10 = tpu.matmul %7, %9, %cst_12 {dimension_numbers = #tpu.dot_dimension_numbers<[1], [0], [0], [1], [0, 0, 1, 1], [], []>} : vector<16x32xf32>, vector<32x32xf32>, vector<16x32xf32> -> vector<16x32xf32>
    %11 = vector.shape_cast %10 : vector<16x32xf32> to vector<2x8x32xf32>
    %c0_13 = arith.constant 0 : index
    %c0_14 = arith.constant 0 : index
    %c0_15 = arith.constant 0 : index
    %12 = vector.load %arg7[%c0_13, %c0_14, %c0_15] : memref<2x32x32xf32, #tpu.memory_space<vmem>>, vector<1x32x32xf32>
    %13 = vector.shape_cast %12 : vector<1x32x32xf32> to vector<32x32xf32>
    %cst_16 = arith.constant dense<0.000000e+00> : vector<16x32xf32>
    %14 = tpu.matmul %7, %13, %cst_16 {dimension_numbers = #tpu.dot_dimension_numbers<[1], [0], [0], [1], [0, 0, 1, 1], [], []>} : vector<16x32xf32>, vector<32x32xf32>, vector<16x32xf32> -> vector<16x32xf32>
    %15 = vector.shape_cast %14 : vector<16x32xf32> to vector<2x8x32xf32>
    %c0_17 = arith.constant 0 : index
    %c0_18 = arith.constant 0 : index
    %c0_19 = arith.constant 0 : index
    %16 = vector.load %arg8[%c0_17, %c0_18, %c0_19] : memref<2x32x32xf32, #tpu.memory_space<vmem>>, vector<1x32x32xf32>
    %17 = vector.shape_cast %16 : vector<1x32x32xf32> to vector<32x32xf32>
    %cst_20 = arith.constant dense<0.000000e+00> : vector<16x32xf32>
    %18 = tpu.matmul %7, %17, %cst_20 {dimension_numbers = #tpu.dot_dimension_numbers<[1], [0], [0], [1], [0, 0, 1, 1], [], []>} : vector<16x32xf32>, vector<32x32xf32>, vector<16x32xf32> -> vector<16x32xf32>
    %19 = vector.shape_cast %18 : vector<16x32xf32> to vector<2x8x32xf32>
    %20 = vector.shape_cast %11 : vector<2x8x32xf32> to vector<2x8x1x32xf32>
    %21 = vector.shape_cast %15 : vector<2x8x32xf32> to vector<2x1x8x32xf32>
    %22 = vector.broadcast %20 : vector<2x8x1x32xf32> to vector<2x8x8x32xf32>
    %23 = vector.broadcast %21 : vector<2x1x8x32xf32> to vector<2x8x8x32xf32>
    %24 = arith.mulf %22, %23 : vector<2x8x8x32xf32>
    %25 = vector.shape_cast %24 : vector<2x8x8x32xf32> to vector<128x32xf32>
    %cst_21 = arith.constant dense<0.000000e+00> : vector<128x8xf32>
    %26 = tpu.matmul %25, %0, %cst_21 {dimension_numbers = #tpu.dot_dimension_numbers<[1], [0], [0], [1], [0, 0, 1, 1], [], []>} : vector<128x32xf32>, vector<32x8xf32>, vector<128x8xf32> -> vector<128x8xf32>
    %27 = vector.shape_cast %26 : vector<128x8xf32> to vector<2x8x8x8xf32>
    %cst_22 = arith.constant 5.000000e-01 : f32
    %28 = vector.broadcast %cst_22 : f32 to vector<2x8x8x8xf32>
    %29 = arith.mulf %27, %28 : vector<2x8x8x8xf32>
    %cst_23 = arith.constant dense<0xFF800000> : vector<2x8x8xf32>
    %30 = vector.multi_reduction <maximumf>, %29, %cst_23 [2] : vector<2x8x8x8xf32> to vector<2x8x8xf32>
    %31 = vector.shape_cast %30 : vector<2x8x8xf32> to vector<2x8x1x8xf32>
    %32 = vector.broadcast %31 : vector<2x8x1x8xf32> to vector<2x8x8x8xf32>
    %33 = arith.subf %29, %32 : vector<2x8x8x8xf32>
    %34 = math.exp %33 : vector<2x8x8x8xf32>
    %cst_24 = arith.constant dense<0.000000e+00> : vector<2x8x8xf32>
    %35 = vector.multi_reduction <add>, %34, %cst_24 [2] : vector<2x8x8x8xf32> to vector<2x8x8xf32>
    %36 = vector.shape_cast %35 : vector<2x8x8xf32> to vector<2x8x1x8xf32>
    %37 = tpu.reciprocal %36 {approx = true} : vector<2x8x1x8xf32> -> vector<2x8x1x8xf32>
    %38 = vector.broadcast %37 : vector<2x8x1x8xf32> to vector<2x8x8x8xf32>
    %39 = arith.mulf %34, %38 : vector<2x8x8x8xf32>
    %40 = vector.shape_cast %39 : vector<2x8x8x8xf32> to vector<128x8xf32>
    %cst_25 = arith.constant dense<0.000000e+00> : vector<128x32xf32>
    %41 = tpu.matmul %40, %1, %cst_25 {dimension_numbers = #tpu.dot_dimension_numbers<[1], [0], [0], [1], [0, 0, 1, 1], [], []>} : vector<128x8xf32>, vector<8x32xf32>, vector<128x32xf32> -> vector<128x32xf32>
    %42 = vector.shape_cast %41 : vector<128x32xf32> to vector<2x8x8x32xf32>
    %43 = vector.shape_cast %19 : vector<2x8x32xf32> to vector<2x1x8x32xf32>
    %44 = vector.broadcast %43 : vector<2x1x8x32xf32> to vector<2x8x8x32xf32>
    %45 = arith.mulf %42, %44 : vector<2x8x8x32xf32>
    %cst_26 = arith.constant dense<0.000000e+00> : vector<2x8x32xf32>
    %46 = vector.multi_reduction <add>, %45, %cst_26 [2] : vector<2x8x8x32xf32> to vector<2x8x32xf32>
    %47 = vector.shape_cast %46 : vector<2x8x32xf32> to vector<16x32xf32>
    %c0_27 = arith.constant 0 : index
    %c0_28 = arith.constant 0 : index
    %c0_29 = arith.constant 0 : index
    %48 = vector.load %arg9[%c0_27, %c0_28, %c0_29] : memref<2x32x32xf32, #tpu.memory_space<vmem>>, vector<1x32x32xf32>
    %49 = vector.shape_cast %48 : vector<1x32x32xf32> to vector<32x32xf32>
    %cst_30 = arith.constant dense<0.000000e+00> : vector<16x32xf32>
    %50 = tpu.matmul %47, %49, %cst_30 {dimension_numbers = #tpu.dot_dimension_numbers<[1], [0], [0], [1], [0, 0, 1, 1], [], []>} : vector<16x32xf32>, vector<32x32xf32>, vector<16x32xf32> -> vector<16x32xf32>
    %51 = arith.addf %7, %50 : vector<16x32xf32>
    %c0_31 = arith.constant 0 : index
    %c0_32 = arith.constant 0 : index
    %c0_33 = arith.constant 0 : index
    %52 = vector.load %arg10[%c0_31, %c0_32, %c0_33] : memref<2x1x32xf32, #tpu.memory_space<vmem>>, vector<1x1x32xf32>
    %53 = vector.shape_cast %52 : vector<1x1x32xf32> to vector<1x32xf32>
    %54 = vector.broadcast %53 : vector<1x32xf32> to vector<16x32xf32>
    %55 = arith.addf %51, %54 : vector<16x32xf32>
    %c0_34 = arith.constant 0 : index
    %c0_35 = arith.constant 0 : index
    %c0_36 = arith.constant 0 : index
    %56 = vector.load %arg15[%c0_34, %c0_35, %c0_36] : memref<2x1x32xf32, #tpu.memory_space<vmem>>, vector<1x1x32xf32>
    %57 = vector.shape_cast %56 : vector<1x1x32xf32> to vector<1x32xf32>
    %c0_37 = arith.constant 0 : index
    %c0_38 = arith.constant 0 : index
    %c0_39 = arith.constant 0 : index
    %58 = vector.load %arg16[%c0_37, %c0_38, %c0_39] : memref<2x1x32xf32, #tpu.memory_space<vmem>>, vector<1x1x32xf32>
    %59 = vector.shape_cast %58 : vector<1x1x32xf32> to vector<1x32xf32>
    %cst_40 = arith.constant dense<0.000000e+00> : vector<32xf32>
    %60 = vector.multi_reduction <add>, %55, %cst_40 [0] : vector<16x32xf32> to vector<32xf32>
    %61 = vector.shape_cast %60 : vector<32xf32> to vector<1x32xf32>
    %cst_41 = arith.constant 1.600000e+01 : f32
    %62 = vector.broadcast %cst_41 : f32 to vector<1x32xf32>
    %63 = arith.divf %61, %62 : vector<1x32xf32>
    %64 = vector.broadcast %63 : vector<1x32xf32> to vector<16x32xf32>
    %65 = arith.subf %55, %64 : vector<16x32xf32>
    %66 = arith.mulf %65, %65 : vector<16x32xf32>
    %cst_42 = arith.constant dense<0.000000e+00> : vector<32xf32>
    %67 = vector.multi_reduction <add>, %66, %cst_42 [0] : vector<16x32xf32> to vector<32xf32>
    %68 = vector.shape_cast %67 : vector<32xf32> to vector<1x32xf32>
    %cst_43 = arith.constant 1.600000e+01 : f32
    %69 = vector.broadcast %cst_43 : f32 to vector<1x32xf32>
    %70 = arith.divf %68, %69 : vector<1x32xf32>
    %71 = vector.broadcast %63 : vector<1x32xf32> to vector<16x32xf32>
    %72 = arith.subf %55, %71 : vector<16x32xf32>
    %cst_44 = arith.constant 9.99999974E-6 : f32
    %73 = vector.broadcast %cst_44 : f32 to vector<1x32xf32>
    %74 = arith.addf %70, %73 : vector<1x32xf32>
    %75 = math.rsqrt %74 : vector<1x32xf32>
    %76 = vector.broadcast %75 : vector<1x32xf32> to vector<16x32xf32>
    %77 = arith.mulf %72, %76 : vector<16x32xf32>
    %78 = vector.broadcast %57 : vector<1x32xf32> to vector<16x32xf32>
    %79 = arith.mulf %77, %78 : vector<16x32xf32>
    %80 = vector.broadcast %59 : vector<1x32xf32> to vector<16x32xf32>
    %81 = arith.addf %79, %80 : vector<16x32xf32>
    %c0_45 = arith.constant 0 : index
    %c0_46 = arith.constant 0 : index
    %c0_47 = arith.constant 0 : index
    %82 = vector.load %arg11[%c0_45, %c0_46, %c0_47] : memref<2x32x128xf32, #tpu.memory_space<vmem>>, vector<1x32x128xf32>
    %83 = vector.shape_cast %82 : vector<1x32x128xf32> to vector<32x128xf32>
    %cst_48 = arith.constant dense<0.000000e+00> : vector<16x128xf32>
    %84 = tpu.matmul %81, %83, %cst_48 {dimension_numbers = #tpu.dot_dimension_numbers<[1], [0], [0], [1], [0, 0, 1, 1], [], []>} : vector<16x32xf32>, vector<32x128xf32>, vector<16x128xf32> -> vector<16x128xf32>
    %c0_49 = arith.constant 0 : index
    %c0_50 = arith.constant 0 : index
    %c0_51 = arith.constant 0 : index
    %85 = vector.load %arg12[%c0_49, %c0_50, %c0_51] : memref<2x1x128xf32, #tpu.memory_space<vmem>>, vector<1x1x128xf32>
    %86 = vector.shape_cast %85 : vector<1x1x128xf32> to vector<1x128xf32>
    %87 = vector.broadcast %86 : vector<1x128xf32> to vector<16x128xf32>
    %88 = arith.addf %84, %87 : vector<16x128xf32>
    %cst_52 = arith.constant 0.000000e+00 : f32
    %89 = vector.broadcast %cst_52 : f32 to vector<16x128xf32>
    %90 = arith.maximumf %88, %89 : vector<16x128xf32>
    %c0_53 = arith.constant 0 : index
    %c0_54 = arith.constant 0 : index
    %c0_55 = arith.constant 0 : index
    %91 = vector.load %arg13[%c0_53, %c0_54, %c0_55] : memref<2x128x32xf32, #tpu.memory_space<vmem>>, vector<1x128x32xf32>
    %92 = vector.shape_cast %91 : vector<1x128x32xf32> to vector<128x32xf32>
    %cst_56 = arith.constant dense<0.000000e+00> : vector<16x32xf32>
    %93 = tpu.matmul %90, %92, %cst_56 {dimension_numbers = #tpu.dot_dimension_numbers<[1], [0], [0], [1], [0, 0, 1, 1], [], []>} : vector<16x128xf32>, vector<128x32xf32>, vector<16x32xf32> -> vector<16x32xf32>
    %c0_57 = arith.constant 0 : index
    %c0_58 = arith.constant 0 : index
    %c0_59 = arith.constant 0 : index
    %94 = vector.load %arg14[%c0_57, %c0_58, %c0_59] : memref<2x1x32xf32, #tpu.memory_space<vmem>>, vector<1x1x32xf32>
    %95 = vector.shape_cast %94 : vector<1x1x32xf32> to vector<1x32xf32>
    %96 = vector.broadcast %95 : vector<1x32xf32> to vector<16x32xf32>
    %97 = arith.addf %93, %96 : vector<16x32xf32>
    %98 = arith.addf %81, %97 : vector<16x32xf32>
    %c0_60 = arith.constant 0 : index
    %c0_61 = arith.constant 0 : index
    %c0_62 = arith.constant 0 : index
    %99 = vector.load %arg17[%c0_60, %c0_61, %c0_62] : memref<2x1x32xf32, #tpu.memory_space<vmem>>, vector<1x1x32xf32>
    %100 = vector.shape_cast %99 : vector<1x1x32xf32> to vector<1x32xf32>
    %c0_63 = arith.constant 0 : index
    %c0_64 = arith.constant 0 : index
    %c0_65 = arith.constant 0 : index
    %101 = vector.load %arg18[%c0_63, %c0_64, %c0_65] : memref<2x1x32xf32, #tpu.memory_space<vmem>>, vector<1x1x32xf32>
    %102 = vector.shape_cast %101 : vector<1x1x32xf32> to vector<1x32xf32>
    %cst_66 = arith.constant dense<0.000000e+00> : vector<32xf32>
    %103 = vector.multi_reduction <add>, %98, %cst_66 [0] : vector<16x32xf32> to vector<32xf32>
    %104 = vector.shape_cast %103 : vector<32xf32> to vector<1x32xf32>
    %cst_67 = arith.constant 1.600000e+01 : f32
    %105 = vector.broadcast %cst_67 : f32 to vector<1x32xf32>
    %106 = arith.divf %104, %105 : vector<1x32xf32>
    %107 = vector.broadcast %106 : vector<1x32xf32> to vector<16x32xf32>
    %108 = arith.subf %98, %107 : vector<16x32xf32>
    %109 = arith.mulf %108, %108 : vector<16x32xf32>
    %cst_68 = arith.constant dense<0.000000e+00> : vector<32xf32>
    %110 = vector.multi_reduction <add>, %109, %cst_68 [0] : vector<16x32xf32> to vector<32xf32>
    %111 = vector.shape_cast %110 : vector<32xf32> to vector<1x32xf32>
    %cst_69 = arith.constant 1.600000e+01 : f32
    %112 = vector.broadcast %cst_69 : f32 to vector<1x32xf32>
    %113 = arith.divf %111, %112 : vector<1x32xf32>
    %114 = vector.broadcast %106 : vector<1x32xf32> to vector<16x32xf32>
    %115 = arith.subf %98, %114 : vector<16x32xf32>
    %cst_70 = arith.constant 9.99999974E-6 : f32
    %116 = vector.broadcast %cst_70 : f32 to vector<1x32xf32>
    %117 = arith.addf %113, %116 : vector<1x32xf32>
    %118 = math.rsqrt %117 : vector<1x32xf32>
    %119 = vector.broadcast %118 : vector<1x32xf32> to vector<16x32xf32>
    %120 = arith.mulf %115, %119 : vector<16x32xf32>
    %121 = vector.broadcast %100 : vector<1x32xf32> to vector<16x32xf32>
    %122 = arith.mulf %120, %121 : vector<16x32xf32>
    %123 = vector.broadcast %102 : vector<1x32xf32> to vector<16x32xf32>
    %124 = arith.addf %122, %123 : vector<16x32xf32>
    %c1 = arith.constant 1 : index
    %c0_71 = arith.constant 0 : index
    %c0_72 = arith.constant 0 : index
    %125 = vector.load %arg6[%c1, %c0_71, %c0_72] : memref<2x32x32xf32, #tpu.memory_space<vmem>>, vector<1x32x32xf32>
    %126 = vector.shape_cast %125 : vector<1x32x32xf32> to vector<32x32xf32>
    %cst_73 = arith.constant dense<0.000000e+00> : vector<16x32xf32>
    %127 = tpu.matmul %124, %126, %cst_73 {dimension_numbers = #tpu.dot_dimension_numbers<[1], [0], [0], [1], [0, 0, 1, 1], [], []>} : vector<16x32xf32>, vector<32x32xf32>, vector<16x32xf32> -> vector<16x32xf32>
    %128 = vector.shape_cast %127 : vector<16x32xf32> to vector<2x8x32xf32>
    %c1_74 = arith.constant 1 : index
    %c0_75 = arith.constant 0 : index
    %c0_76 = arith.constant 0 : index
    %129 = vector.load %arg7[%c1_74, %c0_75, %c0_76] : memref<2x32x32xf32, #tpu.memory_space<vmem>>, vector<1x32x32xf32>
    %130 = vector.shape_cast %129 : vector<1x32x32xf32> to vector<32x32xf32>
    %cst_77 = arith.constant dense<0.000000e+00> : vector<16x32xf32>
    %131 = tpu.matmul %124, %130, %cst_77 {dimension_numbers = #tpu.dot_dimension_numbers<[1], [0], [0], [1], [0, 0, 1, 1], [], []>} : vector<16x32xf32>, vector<32x32xf32>, vector<16x32xf32> -> vector<16x32xf32>
    %132 = vector.shape_cast %131 : vector<16x32xf32> to vector<2x8x32xf32>
    %c1_78 = arith.constant 1 : index
    %c0_79 = arith.constant 0 : index
    %c0_80 = arith.constant 0 : index
    %133 = vector.load %arg8[%c1_78, %c0_79, %c0_80] : memref<2x32x32xf32, #tpu.memory_space<vmem>>, vector<1x32x32xf32>
    %134 = vector.shape_cast %133 : vector<1x32x32xf32> to vector<32x32xf32>
    %cst_81 = arith.constant dense<0.000000e+00> : vector<16x32xf32>
    %135 = tpu.matmul %124, %134, %cst_81 {dimension_numbers = #tpu.dot_dimension_numbers<[1], [0], [0], [1], [0, 0, 1, 1], [], []>} : vector<16x32xf32>, vector<32x32xf32>, vector<16x32xf32> -> vector<16x32xf32>
    %136 = vector.shape_cast %135 : vector<16x32xf32> to vector<2x8x32xf32>
    %137 = vector.shape_cast %128 : vector<2x8x32xf32> to vector<2x8x1x32xf32>
    %138 = vector.shape_cast %132 : vector<2x8x32xf32> to vector<2x1x8x32xf32>
    %139 = vector.broadcast %137 : vector<2x8x1x32xf32> to vector<2x8x8x32xf32>
    %140 = vector.broadcast %138 : vector<2x1x8x32xf32> to vector<2x8x8x32xf32>
    %141 = arith.mulf %139, %140 : vector<2x8x8x32xf32>
    %142 = vector.shape_cast %141 : vector<2x8x8x32xf32> to vector<128x32xf32>
    %cst_82 = arith.constant dense<0.000000e+00> : vector<128x8xf32>
    %143 = tpu.matmul %142, %0, %cst_82 {dimension_numbers = #tpu.dot_dimension_numbers<[1], [0], [0], [1], [0, 0, 1, 1], [], []>} : vector<128x32xf32>, vector<32x8xf32>, vector<128x8xf32> -> vector<128x8xf32>
    %144 = vector.shape_cast %143 : vector<128x8xf32> to vector<2x8x8x8xf32>
    %cst_83 = arith.constant 5.000000e-01 : f32
    %145 = vector.broadcast %cst_83 : f32 to vector<2x8x8x8xf32>
    %146 = arith.mulf %144, %145 : vector<2x8x8x8xf32>
    %cst_84 = arith.constant dense<0xFF800000> : vector<2x8x8xf32>
    %147 = vector.multi_reduction <maximumf>, %146, %cst_84 [2] : vector<2x8x8x8xf32> to vector<2x8x8xf32>
    %148 = vector.shape_cast %147 : vector<2x8x8xf32> to vector<2x8x1x8xf32>
    %149 = vector.broadcast %148 : vector<2x8x1x8xf32> to vector<2x8x8x8xf32>
    %150 = arith.subf %146, %149 : vector<2x8x8x8xf32>
    %151 = math.exp %150 : vector<2x8x8x8xf32>
    %cst_85 = arith.constant dense<0.000000e+00> : vector<2x8x8xf32>
    %152 = vector.multi_reduction <add>, %151, %cst_85 [2] : vector<2x8x8x8xf32> to vector<2x8x8xf32>
    %153 = vector.shape_cast %152 : vector<2x8x8xf32> to vector<2x8x1x8xf32>
    %154 = tpu.reciprocal %153 {approx = true} : vector<2x8x1x8xf32> -> vector<2x8x1x8xf32>
    %155 = vector.broadcast %154 : vector<2x8x1x8xf32> to vector<2x8x8x8xf32>
    %156 = arith.mulf %151, %155 : vector<2x8x8x8xf32>
    %157 = vector.shape_cast %156 : vector<2x8x8x8xf32> to vector<128x8xf32>
    %cst_86 = arith.constant dense<0.000000e+00> : vector<128x32xf32>
    %158 = tpu.matmul %157, %1, %cst_86 {dimension_numbers = #tpu.dot_dimension_numbers<[1], [0], [0], [1], [0, 0, 1, 1], [], []>} : vector<128x8xf32>, vector<8x32xf32>, vector<128x32xf32> -> vector<128x32xf32>
    %159 = vector.shape_cast %158 : vector<128x32xf32> to vector<2x8x8x32xf32>
    %160 = vector.shape_cast %136 : vector<2x8x32xf32> to vector<2x1x8x32xf32>
    %161 = vector.broadcast %160 : vector<2x1x8x32xf32> to vector<2x8x8x32xf32>
    %162 = arith.mulf %159, %161 : vector<2x8x8x32xf32>
    %cst_87 = arith.constant dense<0.000000e+00> : vector<2x8x32xf32>
    %163 = vector.multi_reduction <add>, %162, %cst_87 [2] : vector<2x8x8x32xf32> to vector<2x8x32xf32>
    %164 = vector.shape_cast %163 : vector<2x8x32xf32> to vector<16x32xf32>
    %c1_88 = arith.constant 1 : index
    %c0_89 = arith.constant 0 : index
    %c0_90 = arith.constant 0 : index
    %165 = vector.load %arg9[%c1_88, %c0_89, %c0_90] : memref<2x32x32xf32, #tpu.memory_space<vmem>>, vector<1x32x32xf32>
    %166 = vector.shape_cast %165 : vector<1x32x32xf32> to vector<32x32xf32>
    %cst_91 = arith.constant dense<0.000000e+00> : vector<16x32xf32>
    %167 = tpu.matmul %164, %166, %cst_91 {dimension_numbers = #tpu.dot_dimension_numbers<[1], [0], [0], [1], [0, 0, 1, 1], [], []>} : vector<16x32xf32>, vector<32x32xf32>, vector<16x32xf32> -> vector<16x32xf32>
    %168 = arith.addf %124, %167 : vector<16x32xf32>
    %c1_92 = arith.constant 1 : index
    %c0_93 = arith.constant 0 : index
    %c0_94 = arith.constant 0 : index
    %169 = vector.load %arg10[%c1_92, %c0_93, %c0_94] : memref<2x1x32xf32, #tpu.memory_space<vmem>>, vector<1x1x32xf32>
    %170 = vector.shape_cast %169 : vector<1x1x32xf32> to vector<1x32xf32>
    %171 = vector.broadcast %170 : vector<1x32xf32> to vector<16x32xf32>
    %172 = arith.addf %168, %171 : vector<16x32xf32>
    %c1_95 = arith.constant 1 : index
    %c0_96 = arith.constant 0 : index
    %c0_97 = arith.constant 0 : index
    %173 = vector.load %arg15[%c1_95, %c0_96, %c0_97] : memref<2x1x32xf32, #tpu.memory_space<vmem>>, vector<1x1x32xf32>
    %174 = vector.shape_cast %173 : vector<1x1x32xf32> to vector<1x32xf32>
    %c1_98 = arith.constant 1 : index
    %c0_99 = arith.constant 0 : index
    %c0_100 = arith.constant 0 : index
    %175 = vector.load %arg16[%c1_98, %c0_99, %c0_100] : memref<2x1x32xf32, #tpu.memory_space<vmem>>, vector<1x1x32xf32>
    %176 = vector.shape_cast %175 : vector<1x1x32xf32> to vector<1x32xf32>
    %cst_101 = arith.constant dense<0.000000e+00> : vector<32xf32>
    %177 = vector.multi_reduction <add>, %172, %cst_101 [0] : vector<16x32xf32> to vector<32xf32>
    %178 = vector.shape_cast %177 : vector<32xf32> to vector<1x32xf32>
    %cst_102 = arith.constant 1.600000e+01 : f32
    %179 = vector.broadcast %cst_102 : f32 to vector<1x32xf32>
    %180 = arith.divf %178, %179 : vector<1x32xf32>
    %181 = vector.broadcast %180 : vector<1x32xf32> to vector<16x32xf32>
    %182 = arith.subf %172, %181 : vector<16x32xf32>
    %183 = arith.mulf %182, %182 : vector<16x32xf32>
    %cst_103 = arith.constant dense<0.000000e+00> : vector<32xf32>
    %184 = vector.multi_reduction <add>, %183, %cst_103 [0] : vector<16x32xf32> to vector<32xf32>
    %185 = vector.shape_cast %184 : vector<32xf32> to vector<1x32xf32>
    %cst_104 = arith.constant 1.600000e+01 : f32
    %186 = vector.broadcast %cst_104 : f32 to vector<1x32xf32>
    %187 = arith.divf %185, %186 : vector<1x32xf32>
    %188 = vector.broadcast %180 : vector<1x32xf32> to vector<16x32xf32>
    %189 = arith.subf %172, %188 : vector<16x32xf32>
    %cst_105 = arith.constant 9.99999974E-6 : f32
    %190 = vector.broadcast %cst_105 : f32 to vector<1x32xf32>
    %191 = arith.addf %187, %190 : vector<1x32xf32>
    %192 = math.rsqrt %191 : vector<1x32xf32>
    %193 = vector.broadcast %192 : vector<1x32xf32> to vector<16x32xf32>
    %194 = arith.mulf %189, %193 : vector<16x32xf32>
    %195 = vector.broadcast %174 : vector<1x32xf32> to vector<16x32xf32>
    %196 = arith.mulf %194, %195 : vector<16x32xf32>
    %197 = vector.broadcast %176 : vector<1x32xf32> to vector<16x32xf32>
    %198 = arith.addf %196, %197 : vector<16x32xf32>
    %c1_106 = arith.constant 1 : index
    %c0_107 = arith.constant 0 : index
    %c0_108 = arith.constant 0 : index
    %199 = vector.load %arg11[%c1_106, %c0_107, %c0_108] : memref<2x32x128xf32, #tpu.memory_space<vmem>>, vector<1x32x128xf32>
    %200 = vector.shape_cast %199 : vector<1x32x128xf32> to vector<32x128xf32>
    %cst_109 = arith.constant dense<0.000000e+00> : vector<16x128xf32>
    %201 = tpu.matmul %198, %200, %cst_109 {dimension_numbers = #tpu.dot_dimension_numbers<[1], [0], [0], [1], [0, 0, 1, 1], [], []>} : vector<16x32xf32>, vector<32x128xf32>, vector<16x128xf32> -> vector<16x128xf32>
    %c1_110 = arith.constant 1 : index
    %c0_111 = arith.constant 0 : index
    %c0_112 = arith.constant 0 : index
    %202 = vector.load %arg12[%c1_110, %c0_111, %c0_112] : memref<2x1x128xf32, #tpu.memory_space<vmem>>, vector<1x1x128xf32>
    %203 = vector.shape_cast %202 : vector<1x1x128xf32> to vector<1x128xf32>
    %204 = vector.broadcast %203 : vector<1x128xf32> to vector<16x128xf32>
    %205 = arith.addf %201, %204 : vector<16x128xf32>
    %cst_113 = arith.constant 0.000000e+00 : f32
    %206 = vector.broadcast %cst_113 : f32 to vector<16x128xf32>
    %207 = arith.maximumf %205, %206 : vector<16x128xf32>
    %c1_114 = arith.constant 1 : index
    %c0_115 = arith.constant 0 : index
    %c0_116 = arith.constant 0 : index
    %208 = vector.load %arg13[%c1_114, %c0_115, %c0_116] : memref<2x128x32xf32, #tpu.memory_space<vmem>>, vector<1x128x32xf32>
    %209 = vector.shape_cast %208 : vector<1x128x32xf32> to vector<128x32xf32>
    %cst_117 = arith.constant dense<0.000000e+00> : vector<16x32xf32>
    %210 = tpu.matmul %207, %209, %cst_117 {dimension_numbers = #tpu.dot_dimension_numbers<[1], [0], [0], [1], [0, 0, 1, 1], [], []>} : vector<16x128xf32>, vector<128x32xf32>, vector<16x32xf32> -> vector<16x32xf32>
    %c1_118 = arith.constant 1 : index
    %c0_119 = arith.constant 0 : index
    %c0_120 = arith.constant 0 : index
    %211 = vector.load %arg14[%c1_118, %c0_119, %c0_120] : memref<2x1x32xf32, #tpu.memory_space<vmem>>, vector<1x1x32xf32>
    %212 = vector.shape_cast %211 : vector<1x1x32xf32> to vector<1x32xf32>
    %213 = vector.broadcast %212 : vector<1x32xf32> to vector<16x32xf32>
    %214 = arith.addf %210, %213 : vector<16x32xf32>
    %215 = arith.addf %198, %214 : vector<16x32xf32>
    %c1_121 = arith.constant 1 : index
    %c0_122 = arith.constant 0 : index
    %c0_123 = arith.constant 0 : index
    %216 = vector.load %arg17[%c1_121, %c0_122, %c0_123] : memref<2x1x32xf32, #tpu.memory_space<vmem>>, vector<1x1x32xf32>
    %217 = vector.shape_cast %216 : vector<1x1x32xf32> to vector<1x32xf32>
    %c1_124 = arith.constant 1 : index
    %c0_125 = arith.constant 0 : index
    %c0_126 = arith.constant 0 : index
    %218 = vector.load %arg18[%c1_124, %c0_125, %c0_126] : memref<2x1x32xf32, #tpu.memory_space<vmem>>, vector<1x1x32xf32>
    %219 = vector.shape_cast %218 : vector<1x1x32xf32> to vector<1x32xf32>
    %cst_127 = arith.constant dense<0.000000e+00> : vector<32xf32>
    %220 = vector.multi_reduction <add>, %215, %cst_127 [0] : vector<16x32xf32> to vector<32xf32>
    %221 = vector.shape_cast %220 : vector<32xf32> to vector<1x32xf32>
    %cst_128 = arith.constant 1.600000e+01 : f32
    %222 = vector.broadcast %cst_128 : f32 to vector<1x32xf32>
    %223 = arith.divf %221, %222 : vector<1x32xf32>
    %224 = vector.broadcast %223 : vector<1x32xf32> to vector<16x32xf32>
    %225 = arith.subf %215, %224 : vector<16x32xf32>
    %226 = arith.mulf %225, %225 : vector<16x32xf32>
    %cst_129 = arith.constant dense<0.000000e+00> : vector<32xf32>
    %227 = vector.multi_reduction <add>, %226, %cst_129 [0] : vector<16x32xf32> to vector<32xf32>
    %228 = vector.shape_cast %227 : vector<32xf32> to vector<1x32xf32>
    %cst_130 = arith.constant 1.600000e+01 : f32
    %229 = vector.broadcast %cst_130 : f32 to vector<1x32xf32>
    %230 = arith.divf %228, %229 : vector<1x32xf32>
    %231 = vector.broadcast %223 : vector<1x32xf32> to vector<16x32xf32>
    %232 = arith.subf %215, %231 : vector<16x32xf32>
    %cst_131 = arith.constant 9.99999974E-6 : f32
    %233 = vector.broadcast %cst_131 : f32 to vector<1x32xf32>
    %234 = arith.addf %230, %233 : vector<1x32xf32>
    %235 = math.rsqrt %234 : vector<1x32xf32>
    %236 = vector.broadcast %235 : vector<1x32xf32> to vector<16x32xf32>
    %237 = arith.mulf %232, %236 : vector<16x32xf32>
    %238 = vector.broadcast %217 : vector<1x32xf32> to vector<16x32xf32>
    %239 = arith.mulf %237, %238 : vector<16x32xf32>
    %240 = vector.broadcast %219 : vector<1x32xf32> to vector<16x32xf32>
    %241 = arith.addf %239, %240 : vector<16x32xf32>
    %c0_132 = arith.constant 0 : index
    %c0_133 = arith.constant 0 : index
    %242 = vector.load %arg19[%c0_132, %c0_133] : memref<16x32xf32, #tpu.memory_space<vmem>>, vector<16x32xf32>
    tpu.vector_store %arg19[%c0_132, %c0_133], %241 {strides = array<i32>} : memref<16x32xf32, #tpu.memory_space<vmem>>, vector<16x32xf32>,
    return
  }
  func.func @transform_0(%arg0: i32) -> (i32, i32) {
    %c0_i32 = arith.constant 0 : i32
    %c0_i32_0 = arith.constant 0 : i32
    %c0_i32_1 = arith.constant 0 : i32
    return %c0_i32, %c0_i32_0 : i32, i32
  }
  func.func @transform_1(%arg0: i32) -> (i32, i32) {
    %c0_i32 = arith.constant 0 : i32
    %c0_i32_0 = arith.constant 0 : i32
    %c0_i32_1 = arith.constant 0 : i32
    return %c0_i32, %c0_i32_0 : i32, i32
  }
  func.func @transform_2(%arg0: i32) -> (i32, i32) {
    %c0_i32 = arith.constant 0 : i32
    %c0_i32_0 = arith.constant 0 : i32
    %c0_i32_1 = arith.constant 0 : i32
    return %c0_i32, %c0_i32_0 : i32, i32
  }
  func.func @transform_3(%arg0: i32) -> (i32, i32) {
    %c0_i32 = arith.constant 0 : i32
    %c0_i32_0 = arith.constant 0 : i32
    %c0_i32_1 = arith.constant 0 : i32
    return %c0_i32, %c0_i32_0 : i32, i32
  }
  func.func @transform_4(%arg0: i32) -> (i32, i32) {
    %c0_i32 = arith.constant 0 : i32
    %c0_i32_0 = arith.constant 0 : i32
    %c0_i32_1 = arith.constant 0 : i32
    return %c0_i32, %c0_i32_0 : i32, i32
  }
  func.func @transform_5(%arg0: i32) -> (i32, i32, i32) {
    %c0_i32 = arith.constant 0 : i32
    %c0_i32_0 = arith.constant 0 : i32
    %c0_i32_1 = arith.constant 0 : i32
    %c0_i32_2 = arith.constant 0 : i32
    return %c0_i32, %c0_i32_0, %c0_i32_1 : i32, i32, i32
  }
  func.func @transform_6(%arg0: i32) -> (i32, i32, i32) {
    %c0_i32 = arith.constant 0 : i32
    %c0_i32_0 = arith.constant 0 : i32
    %c0_i32_1 = arith.constant 0 : i32
    %c0_i32_2 = arith.constant 0 : i32
    return %c0_i32, %c0_i32_0, %c0_i32_1 : i32, i32, i32
  }
  func.func @transform_7(%arg0: i32) -> (i32, i32, i32) {
    %c0_i32 = arith.constant 0 : i32
    %c0_i32_0 = arith.constant 0 : i32
    %c0_i32_1 = arith.constant 0 : i32
    %c0_i32_2 = arith.constant 0 : i32
    return %c0_i32, %c0_i32_0, %c0_i32_1 : i32, i32, i32
  }
  func.func @transform_8(%arg0: i32) -> (i32, i32, i32) {
    %c0_i32 = arith.constant 0 : i32
    %c0_i32_0 = arith.constant 0 : i32
    %c0_i32_1 = arith.constant 0 : i32
    %c0_i32_2 = arith.constant 0 : i32
    return %c0_i32, %c0_i32_0, %c0_i32_1 : i32, i32, i32
  }
  func.func @transform_9(%arg0: i32) -> (i32, i32, i32) {
    %c0_i32 = arith.constant 0 : i32
    %c0_i32_0 = arith.constant 0 : i32
    %c0_i32_1 = arith.constant 0 : i32
    %c0_i32_2 = arith.constant 0 : i32
    return %c0_i32, %c0_i32_0, %c0_i32_1 : i32, i32, i32
  }
  func.func @transform_10(%arg0: i32) -> (i32, i32, i32) {
    %c0_i32 = arith.constant 0 : i32
    %c0_i32_0 = arith.constant 0 : i32
    %c0_i32_1 = arith.constant 0 : i32
    %c0_i32_2 = arith.constant 0 : i32
    return %c0_i32, %c0_i32_0, %c0_i32_1 : i32, i32, i32
  }
  func.func @transform_11(%arg0: i32) -> (i32, i32, i32) {
    %c0_i32 = arith.constant 0 : i32
    %c0_i32_0 = arith.constant 0 : i32
    %c0_i32_1 = arith.constant 0 : i32
    %c0_i32_2 = arith.constant 0 : i32
    return %c0_i32, %c0_i32_0, %c0_i32_1 : i32, i32, i32
  }
  func.func @transform_12(%arg0: i32) -> (i32, i32, i32) {
    %c0_i32 = arith.constant 0 : i32
    %c0_i32_0 = arith.constant 0 : i32
    %c0_i32_1 = arith.constant 0 : i32
    %c0_i32_2 = arith.constant 0 : i32
    return %c0_i32, %c0_i32_0, %c0_i32_1 : i32, i32, i32
  }
  func.func @transform_13(%arg0: i32) -> (i32, i32, i32) {
    %c0_i32 = arith.constant 0 : i32
    %c0_i32_0 = arith.constant 0 : i32
    %c0_i32_1 = arith.constant 0 : i32
    %c0_i32_2 = arith.constant 0 : i32
    return %c0_i32, %c0_i32_0, %c0_i32_1 : i32, i32, i32
  }
  func.func @transform_14(%arg0: i32) -> (i32, i32, i32) {
    %c0_i32 = arith.constant 0 : i32
    %c0_i32_0 = arith.constant 0 : i32
    %c0_i32_1 = arith.constant 0 : i32
    %c0_i32_2 = arith.constant 0 : i32
    return %c0_i32, %c0_i32_0, %c0_i32_1 : i32, i32, i32
  }
  func.func @transform_15(%arg0: i32) -> (i32, i32, i32) {
    %c0_i32 = arith.constant 0 : i32
    %c0_i32_0 = arith.constant 0 : i32
    %c0_i32_1 = arith.constant 0 : i32
    %c0_i32_2 = arith.constant 0 : i32
    return %c0_i32, %c0_i32_0, %c0_i32_1 : i32, i32, i32
  }
  func.func @transform_16(%arg0: i32) -> (i32, i32, i32) {
    %c0_i32 = arith.constant 0 : i32
    %c0_i32_0 = arith.constant 0 : i32
    %c0_i32_1 = arith.constant 0 : i32
    %c0_i32_2 = arith.constant 0 : i32
    return %c0_i32, %c0_i32_0, %c0_i32_1 : i32, i32, i32
  }
  func.func @transform_17(%arg0: i32) -> (i32, i32, i32) {
    %c0_i32 = arith.constant 0 : i32
    %c0_i32_0 = arith.constant 0 : i32
    %c0_i32_1 = arith.constant 0 : i32
    %c0_i32_2 = arith.constant 0 : i32
    return %c0_i32, %c0_i32_0, %c0_i32_1 : i32, i32, i32
  }
  func.func @transform_18(%arg0: i32) -> (i32, i32) {
    %c0_i32 = arith.constant 0 : i32
    %c0_i32_0 = arith.constant 0 : i32
    %c0_i32_1 = arith.constant 0 : i32
    return %c0_i32, %c0_i32_0 : i32, i32
  }
}

</mosaic_0001>

<llo_original>
// kernel: tpu_custom_call.1
$region0: #{tpu_custom_call.1}
  #allocation0 [shape = 'u32[]', space=smem, size = 0x4, offset = 0x4, fixed_abs, tag = 'smem constant byte address 0x4 - core index']
  #allocation1 [shape = 'u32[144,128]{1,0:T(1,128)}', space=vmem, size = 0x12000, scoped, tag = 'internal scratch']
  %s0 = inlined_call_operand.vmem [shape: f32[16,16], index: 0, kind: input, shape index: {}]
  %s1 = inlined_call_operand.vmem [shape: f32[32,8], index: 1, kind: input, shape index: {}]
  %s2 = inlined_call_operand.hbm [shape: f32[8,32], index: 2, kind: input, shape index: {}]
  %s3 = inlined_call_operand.hbm [shape: f32[16,32], index: 3, kind: input, shape index: {}]
  %s4 = inlined_call_operand.vmem [shape: f32[1,32], index: 4, kind: input, shape index: {}]
  %s5 = inlined_call_operand.vmem [shape: f32[2,32,32], index: 5, kind: input, shape index: {}]
  %s6 = inlined_call_operand.vmem [shape: f32[2,32,32], index: 6, kind: input, shape index: {}]
  %s7 = inlined_call_operand.vmem [shape: f32[2,32,32], index: 7, kind: input, shape index: {}]
  %s8 = inlined_call_operand.vmem [shape: f32[2,32,32], index: 8, kind: input, shape index: {}]
  %s9 = inlined_call_operand.vmem [shape: f32[2,1,32], index: 9, kind: input, shape index: {}]
  %s10 = inlined_call_operand.vmem [shape: f32[2,32,128], index: 10, kind: input, shape index: {}]
  %s11 = inlined_call_operand.vmem [shape: f32[2,1,128], index: 11, kind: input, shape index: {}]
  %s12 = inlined_call_operand.vmem [shape: f32[2,128,32], index: 12, kind: input, shape index: {}]
  %s13 = inlined_call_operand.hbm [shape: f32[2,1,32], index: 13, kind: input, shape index: {}]
  %s14 = inlined_call_operand.vmem [shape: f32[2,1,32], index: 14, kind: input, shape index: {}]
  %s15 = inlined_call_operand.vmem [shape: f32[2,1,32], index: 15, kind: input, shape index: {}]
  %s16 = inlined_call_operand.vmem [shape: f32[2,1,32], index: 16, kind: input, shape index: {}]
  %s17 = inlined_call_operand.vmem [shape: f32[2,1,32], index: 17, kind: input, shape index: {}]
  %s18 = inlined_call_operand.hbm [shape: f32[16,32], index: 18, kind: output, shape index: {}]
  %s19 = sld [smem:[#allocation0]]
  $region94: #{tpu_custom_call.1} parent=0
    _
  %s21 = ssub.s32 1, %s19
  %s22 = scalar_select 0, %s21, %s19
  $region1: #{tpu_custom_call.1} parent=0
    #allocation2 [shape = 'u8[4096]{0}', space=vmem, size = 0x1000, scoped, tag = 'input window, operand 2, single buffered']
    #allocation3 [shape = 's32[1]{0}', space=sflag, size = 0x4, scoped, tag = 'scoped memory for tpu_custom_call.1']
    #allocation4 [shape = 's32[1]{0}', space=sflag, size = 0x4, scoped, tag = 'scoped memory for tpu_custom_call.1']
    #allocation5 [shape = 'u8[8192]{0}', space=vmem, size = 0x2000, scoped, tag = 'input window, operand 3, single buffered']
    #allocation6 [shape = 's32[1]{0}', space=sflag, size = 0x4, scoped, tag = 'scoped memory for tpu_custom_call.1']
    #allocation7 [shape = 'u8[1024]{0}', space=vmem, size = 0x400, scoped, tag = 'input window, operand 13, single buffered']
    #allocation8 [shape = 'u8[8192]{0}', space=vmem, size = 0x2000, scoped, tag = 'output window, operand 0, single buffered']
    %23 = vsyncpa [#allocation3], 0
    %24 = vsyncpa [#allocation6], 0
    %25 = vsyncpa [#allocation4], 0
    // Predicated region
    $region2: #{tpu_custom_call.1} parent=1 // pred_check
      _
    $region3: #{tpu_custom_call.1} parent=1 // pred_check_branch
      %27 = sbr.rel (0) target = $region5
    $region4: #{tpu_custom_call.1} parent=1 // pred_region
      _
    $region5: #{tpu_custom_call.1} parent=1 // pred_fallthru
      _
    // Predicated region
    $region6: #{tpu_custom_call.1} parent=1 // pred_check
      _
    $region7: #{tpu_custom_call.1} parent=1 // pred_check_branch
      %29 = sbr.rel (0) target = $region9
    $region8: #{tpu_custom_call.1} parent=1 // pred_region
      _
    $region9: #{tpu_custom_call.1} parent=1 // pred_fallthru
      _
    // Predicated region
    $region10: #{tpu_custom_call.1} parent=1 // pred_check
      _
    $region11: #{tpu_custom_call.1} parent=1 // pred_check_branch
      %31 = sbr.rel (0) target = $region13
    $region12: #{tpu_custom_call.1} parent=1 // pred_region
      %s33 = ssub.s32 128, 128
      %34 = vsyncadd [#allocation3], %s33
      %s36 = sshll.u32 [#allocation2], 4
      %s37 = int_to_ptr.vmem [resolvable:$true] %s36
      %39 = dma.hbm_to_vmem [thread:$0]  %s2, 128, %s37, [#allocation3]
    $region13: #{tpu_custom_call.1} parent=1 // pred_fallthru
      _
    // Predicated region
    $region14: #{tpu_custom_call.1} parent=1 // pred_check
      _
    $region15: #{tpu_custom_call.1} parent=1 // pred_check_branch
      %41 = sbr.rel (0) target = $region17
    $region16: #{tpu_custom_call.1} parent=1 // pred_region
      %s43 = ssub.s32 256, 256
      %44 = vsyncadd [#allocation6], %s43
      %s45 = sshll.u32 [#allocation5], 4
      %s46 = int_to_ptr.vmem [resolvable:$true] %s45
      %51 = dma.hbm_to_vmem [thread:$0]  %s3, 256, %s46, [#allocation6], 128, 128, 8
    $region17: #{tpu_custom_call.1} parent=1 // pred_fallthru
      _
    // Predicated region
    $region18: #{tpu_custom_call.1} parent=1 // pred_check
      _
    $region19: #{tpu_custom_call.1} parent=1 // pred_check_branch
      %53 = sbr.rel (0) target = $region21
    $region20: #{tpu_custom_call.1} parent=1 // pred_region
      _
    $region21: #{tpu_custom_call.1} parent=1 // pred_fallthru
      _
    // Predicated region
    $region22: #{tpu_custom_call.1} parent=1 // pred_check
      _
    $region23: #{tpu_custom_call.1} parent=1 // pred_check_branch
      %55 = sbr.rel (0) target = $region25
    $region24: #{tpu_custom_call.1} parent=1 // pred_region
      _
    $region25: #{tpu_custom_call.1} parent=1 // pred_fallthru
      _
    // Predicated region
    $region26: #{tpu_custom_call.1} parent=1 // pred_check
      _
    $region27: #{tpu_custom_call.1} parent=1 // pred_check_branch
      %57 = sbr.rel (0) target = $region29
    $region28: #{tpu_custom_call.1} parent=1 // pred_region
      _
    $region29: #{tpu_custom_call.1} parent=1 // pred_fallthru
      _
    // Predicated region
    $region30: #{tpu_custom_call.1} parent=1 // pred_check
      _
    $region31: #{tpu_custom_call.1} parent=1 // pred_check_branch
      %59 = sbr.rel (0) target = $region33
    $region32: #{tpu_custom_call.1} parent=1 // pred_region
      _
    $region33: #{tpu_custom_call.1} parent=1 // pred_fallthru
      _
    // Predicated region
    $region34: #{tpu_custom_call.1} parent=1 // pred_check
      _
    $region35: #{tpu_custom_call.1} parent=1 // pred_check_branch
      %61 = sbr.rel (0) target = $region37
    $region36: #{tpu_custom_call.1} parent=1 // pred_region
      _
    $region37: #{tpu_custom_call.1} parent=1 // pred_fallthru
      _
    // Predicated region
    $region38: #{tpu_custom_call.1} parent=1 // pred_check
      _
    $region39: #{tpu_custom_call.1} parent=1 // pred_check_branch
      %63 = sbr.rel (0) target = $region41
    $region40: #{tpu_custom_call.1} parent=1 // pred_region
      _
    $region41: #{tpu_custom_call.1} parent=1 // pred_fallthru
      _
    // Predicated region
    $region42: #{tpu_custom_call.1} parent=1 // pred_check
      _
    $region43: #{tpu_custom_call.1} parent=1 // pred_check_branch
      %65 = sbr.rel (0) target = $region45
    $region44: #{tpu_custom_call.1} parent=1 // pred_region
      _
    $region45: #{tpu_custom_call.1} parent=1 // pred_fallthru
      _
    // Predicated region
    $region46: #{tpu_custom_call.1} parent=1 // pred_check
      _
    $region47: #{tpu_custom_call.1} parent=1 // pred_check_branch
      %67 = sbr.rel (0) target = $region49
    $region48: #{tpu_custom_call.1} parent=1 // pred_region
      _
    $region49: #{tpu_custom_call.1} parent=1 // pred_fallthru
      _
    // Predicated region
    $region50: #{tpu_custom_call.1} parent=1 // pred_check
      _
    $region51: #{tpu_custom_call.1} parent=1 // pred_check_branch
      %69 = sbr.rel (0) target = $region53
    $region52: #{tpu_custom_call.1} parent=1 // pred_region
      _
    $region53: #{tpu_custom_call.1} parent=1 // pred_fallthru
      _
    // Predicated region
    $region54: #{tpu_custom_call.1} parent=1 // pred_check
      _
    $region55: #{tpu_custom_call.1} parent=1 // pred_check_branch
      %71 = sbr.rel (0) target = $region57
    $region56: #{tpu_custom_call.1} parent=1 // pred_region
      %s73 = ssub.s32 32, 32
      %74 = vsyncadd [#allocation6], %s73
      %s75 = sshll.u32 [#allocation7], 4
      %s76 = int_to_ptr.vmem [resolvable:$true] %s75
      %81 = dma.hbm_to_vmem [thread:$0]  %s13, 32, %s76, [#allocation6], 16, 16, 1
    $region57: #{tpu_custom_call.1} parent=1 // pred_fallthru
      _
    // Predicated region
    $region58: #{tpu_custom_call.1} parent=1 // pred_check
      _
    $region59: #{tpu_custom_call.1} parent=1 // pred_check_branch
      %83 = sbr.rel (0) target = $region61
    $region60: #{tpu_custom_call.1} parent=1 // pred_region
      _
    $region61: #{tpu_custom_call.1} parent=1 // pred_fallthru
      _
    // Predicated region
    $region62: #{tpu_custom_call.1} parent=1 // pred_check
      _
    $region63: #{tpu_custom_call.1} parent=1 // pred_check_branch
      %85 = sbr.rel (0) target = $region65
    $region64: #{tpu_custom_call.1} parent=1 // pred_region
      _
    $region65: #{tpu_custom_call.1} parent=1 // pred_fallthru
      _
    // Predicated region
    $region66: #{tpu_custom_call.1} parent=1 // pred_check
      _
    $region67: #{tpu_custom_call.1} parent=1 // pred_check_branch
      %87 = sbr.rel (0) target = $region69
    $region68: #{tpu_custom_call.1} parent=1 // pred_region
      _
    $region69: #{tpu_custom_call.1} parent=1 // pred_fallthru
      _
    // Predicated region
    $region70: #{tpu_custom_call.1} parent=1 // pred_check
      _
    $region71: #{tpu_custom_call.1} parent=1 // pred_check_branch
      %89 = sbr.rel (0) target = $region73
    $region72: #{tpu_custom_call.1} parent=1 // pred_region
      _
    $region73: #{tpu_custom_call.1} parent=1 // pred_fallthru
      _
    // Predicated region
    $region74: #{tpu_custom_call.1} parent=1 // pred_check
      _
    $region75: #{tpu_custom_call.1} parent=1 // pred_check_branch
      %91 = sbr.rel (0) target = $region77
    $region76: #{tpu_custom_call.1} parent=1 // pred_region
      %92 = dma.done [#allocation3], 128
    $region77: #{tpu_custom_call.1} parent=1 // pred_fallthru
      _
    // Predicated region
    $region78: #{tpu_custom_call.1} parent=1 // pred_check
      _
    $region79: #{tpu_custom_call.1} parent=1 // pred_check_branch
      %94 = sbr.rel (0) target = $region81
    $region80: #{tpu_custom_call.1} parent=1 // pred_region
      %95 = dma.done [#allocation6], 256
    $region81: #{tpu_custom_call.1} parent=1 // pred_fallthru
      _
    // Predicated region
    $region82: #{tpu_custom_call.1} parent=1 // pred_check
      _
    $region83: #{tpu_custom_call.1} parent=1 // pred_check_branch
      %97 = sbr.rel (0) target = $region85
    $region84: #{tpu_custom_call.1} parent=1 // pred_region
      %98 = dma.done [#allocation6], 32
    $region85: #{tpu_custom_call.1} parent=1 // pred_fallthru
      _
    %v99 = vld [vmem:[%s1] sm:$0xff]
    %v100 = vld [vmem:[%s1 + $0x8] sm:$0xff]
    %v101 = vld [vmem:[%s1 + $0x10] sm:$0xff]
    %v102 = vld [vmem:[%s1 + $0x18] sm:$0xff]
    %v103 = vld [vmem:[#allocation2] sm:$0xff]
    %v104 = vld [vmem:[%s0] sm:$0xff]
    %v105 = vld [vmem:[%s0 + $0x8] sm:$0xff]
    %v106 = vld [vmem:[#allocation5] sm:$0xff]
    %v107 = vld [vmem:[#allocation5 + $0x8] sm:$0xff]
    %v108 = vld [vmem:[%s4] sm:$0x1]
    %v110 = vlaneseq
    %v111 = vshrl.u32 %v110, 7
    %v112 = vsub.s32 0, %v111
    %v113 = vrot.slane %v108, %v112
    %vm115 = vcmask 130048
    %v117 = vsel %vm115, %v104, 0
    %v120 = vsel %vm115, %v105, 0
    %122 = vmatprep.subr.mxu0 0.0
    %123 = vmatpush1.msra.mxu0 %v106
    %124 = vmatprep.subr.mxu0 0.0
    %125 = vmatpush1.msra.mxu0 %v107
    %126 = vmatprep.subr.mxu0 0.0
    %127 = vmatpush1.msra.mxu0 0.0
    %128 = vmatprep.subr.mxu0 0.0
    %129 = vmatpush1.msra.mxu0 0.0
    %130 = vmatprep.subr.mxu0 0.0
    %131 = vmatpush1.msra.mxu0 0.0
    %132 = vmatprep.subr.mxu0 0.0
    %133 = vmatpush1.msra.mxu0 0.0
    %134 = vmatprep.subr.mxu0 0.0
    %135 = vmatpush1.msra.mxu0 0.0
    %136 = vmatprep.subr.mxu0 0.0
    %137 = vmatpush1.msra.mxu0 0.0
    %138 = vmatprep.subr.mxu0 0.0
    %139 = vmatpush1.msra.mxu0 0.0
    %140 = vmatprep.subr.mxu0 0.0
    %141 = vmatpush1.msra.mxu0 0.0
    %142 = vmatprep.subr.mxu0 0.0
    %143 = vmatpush1.msra.mxu0 0.0
    %144 = vmatprep.subr.mxu0 0.0
    %145 = vmatpush1.msra.mxu0 0.0
    %146 = vmatprep.subr.mxu0 0.0
    %147 = vmatpush1.msra.mxu0 0.0
    %148 = vmatprep.subr.mxu0 0.0
    %149 = vmatpush1.msra.mxu0 0.0
    %150 = vmatprep.subr.mxu0 0.0
    %151 = vmatpush1.msra.mxu0 0.0
    %152 = vmatprep.subr.mxu0 0.0
    %153 = vmatpush1.msra.mxu0 0.0
    %154 = vmatprep.subr.mxu0 0.0
    %155 = vmatpush1.msra.mxu0 0.0
    %156 = vmatprep.subr.mxu0 0.0
    %157 = vmatpush1.msra.mxu0 0.0
    %158 = vmatprep.subr.mxu0 0.0
    %159 = vmatpush1.msra.mxu0 0.0
    %160 = vmatprep.subr.mxu0 0.0
    %161 = vmatpush1.msra.mxu0 0.0
    %162 = vmatprep.subr.mxu0 0.0
    %163 = vmatpush1.msra.mxu0 0.0
    %164 = vmatprep.subr.mxu0 0.0
    %165 = vmatpush1.msra.mxu0 0.0
    %166 = vmatprep.subr.mxu0 0.0
    %167 = vmatpush1.msra.mxu0 0.0
    %168 = vmatprep.subr.mxu0 0.0
    %169 = vmatpush1.msra.mxu0 0.0
    %170 = vmatprep.subr.mxu0 0.0
    %171 = vmatpush1.msra.mxu0 0.0
    %172 = vmatprep.subr.mxu0 0.0
    %173 = vmatpush1.msra.mxu0 0.0
    %174 = vmatprep.subr.mxu0 0.0
    %175 = vmatpush1.msra.mxu0 0.0
    %176 = vmatprep.subr.mxu0 0.0
    %177 = vmatpush1.msra.mxu0 0.0
    %178 = vmatprep.subr.mxu0 0.0
    %179 = vmatpush1.msra.mxu0 0.0
    %180 = vmatprep.subr.mxu0 0.0
    %181 = vmatpush1.msra.mxu0 0.0
    %182 = vmatprep.subr.mxu0 0.0
    %183 = vmatpush1.msra.mxu0 0.0
    %184 = vmatprep.subr.mxu0 0.0
    %185 = vmatpush1.msra.mxu0 0.0
    %186 = vmatprep.mubr.f32.mxu0 0.0
    %187 = vmatmul.mubr.f32.gmra.mrb[0].mxu0 %v117
    %v188 = vpop.f32.mrb[0].mxu0
    %v189 = vadd.f32 %v113, %v188
    %v190 = vpop.f32.mrb[0].mxu0
    %191 = vmatprep.mubr.f32.mxu0 0.0
    %192 = vmatmul.mubr.f32.gmra.mrb[0].mxu0 %v120
    %v193 = vpop.f32.mrb[0].mxu0
    %v194 = vadd.f32 %v113, %v193
    %v195 = vpop.f32.mrb[0].mxu0
    %196 = vdwg.mxu0
    %v197 = vld [vmem:[%s5] sm:$0xff]
    %v198 = vld [vmem:[%s5 + $0x8] sm:$0xff]
    %v199 = vld [vmem:[%s5 + $0x10] sm:$0xff]
    %v200 = vld [vmem:[%s5 + $0x18] sm:$0xff]
    %vm201 = vcmask 261120
    %v203 = vsel %vm201, %v189, 0
    %v206 = vsel %vm201, %v194, 0
    %208 = vmatprep.subr.mxu0 0.0
    %209 = vmatpush1.msra.mxu0 %v197
    %210 = vmatprep.subr.mxu0 0.0
    %211 = vmatpush1.msra.mxu0 %v198
    %212 = vmatprep.subr.mxu0 0.0
    %213 = vmatpush1.msra.mxu0 %v199
    %214 = vmatprep.subr.mxu0 0.0
    %215 = vmatpush1.msra.mxu0 %v200
    %216 = vmatprep.subr.mxu0 0.0
    %217 = vmatpush1.msra.mxu0 0.0
    %218 = vmatprep.subr.mxu0 0.0
    %219 = vmatpush1.msra.mxu0 0.0
    %220 = vmatprep.subr.mxu0 0.0
    %221 = vmatpush1.msra.mxu0 0.0
    %222 = vmatprep.subr.mxu0 0.0
    %223 = vmatpush1.msra.mxu0 0.0
    %224 = vmatprep.subr.mxu0 0.0
    %225 = vmatpush1.msra.mxu0 0.0
    %226 = vmatprep.subr.mxu0 0.0
    %227 = vmatpush1.msra.mxu0 0.0
    %228 = vmatprep.subr.mxu0 0.0
    %229 = vmatpush1.msra.mxu0 0.0
    %230 = vmatprep.subr.mxu0 0.0
    %231 = vmatpush1.msra.mxu0 0.0
    %232 = vmatprep.subr.mxu0 0.0
    %233 = vmatpush1.msra.mxu0 0.0
    %234 = vmatprep.subr.mxu0 0.0
    %235 = vmatpush1.msra.mxu0 0.0
    %236 = vmatprep.subr.mxu0 0.0
    %237 = vmatpush1.msra.mxu0 0.0
    %238 = vmatprep.subr.mxu0 0.0
    %239 = vmatpush1.msra.mxu0 0.0
    %240 = vmatprep.subr.mxu0 0.0
    %241 = vmatpush1.msra.mxu0 0.0
    %242 = vmatprep.subr.mxu0 0.0
    %243 = vmatpush1.msra.mxu0 0.0
    %244 = vmatprep.subr.mxu0 0.0
    %245 = vmatpush1.msra.mxu0 0.0
    %246 = vmatprep.subr.mxu0 0.0
    %247 = vmatpush1.msra.mxu0 0.0
    %248 = vmatprep.subr.mxu0 0.0
    %249 = vmatpush1.msra.mxu0 0.0
    %250 = vmatprep.subr.mxu0 0.0
    %251 = vmatpush1.msra.mxu0 0.0
    %252 = vmatprep.subr.mxu0 0.0
    %253 = vmatpush1.msra.mxu0 0.0
    %254 = vmatprep.subr.mxu0 0.0
    %255 = vmatpush1.msra.mxu0 0.0
    %256 = vmatprep.subr.mxu0 0.0
    %257 = vmatpush1.msra.mxu0 0.0
    %258 = vmatprep.subr.mxu0 0.0
    %259 = vmatpush1.msra.mxu0 0.0
    %260 = vmatprep.subr.mxu0 0.0
    %261 = vmatpush1.msra.mxu0 0.0
    %262 = vmatprep.subr.mxu0 0.0
    %263 = vmatpush1.msra.mxu0 0.0
    %264 = vmatprep.subr.mxu0 0.0
    %265 = vmatpush1.msra.mxu0 0.0
    %266 = vmatprep.subr.mxu0 0.0
    %267 = vmatpush1.msra.mxu0 0.0
    %268 = vmatprep.subr.mxu0 0.0
    %269 = vmatpush1.msra.mxu0 0.0
    %270 = vmatprep.subr.mxu0 0.0
    %271 = vmatpush1.msra.mxu0 0.0
    %272 = vmatprep.mubr.f32.mxu0 0.0
    %273 = vmatmul.mubr.f32.gmra.mrb[0].mxu0 %v203
    %v274 = vpop.f32.mrb[0].mxu0
    %v275 = vadd.f32 0.0, %v274
    %v276 = vpop.f32.mrb[0].mxu0
    %277 = vmatprep.mubr.f32.mxu0 0.0
    %278 = vmatmul.mubr.f32.gmra.mrb[0].mxu0 %v206
    %v279 = vpop.f32.mrb[0].mxu0
    %v280 = vadd.f32 0.0, %v279
    %v281 = vpop.f32.mrb[0].mxu0
    %282 = vdwg.mxu0
    %v283 = vld [vmem:[%s6] sm:$0xff]
    %v284 = vld [vmem:[%s6 + $0x8] sm:$0xff]
    %v285 = vld [vmem:[%s6 + $0x10] sm:$0xff]
    %v286 = vld [vmem:[%s6 + $0x18] sm:$0xff]
    %287 = vmatprep.subr.mxu0 0.0
    %288 = vmatpush1.msra.mxu0 %v283
    %289 = vmatprep.subr.mxu0 0.0
    %290 = vmatpush1.msra.mxu0 %v284
    %291 = vmatprep.subr.mxu0 0.0
    %292 = vmatpush1.msra.mxu0 %v285
    %293 = vmatprep.subr.mxu0 0.0
    %294 = vmatpush1.msra.mxu0 %v286
    %295 = vmatprep.subr.mxu0 0.0
    %296 = vmatpush1.msra.mxu0 0.0
    %297 = vmatprep.subr.mxu0 0.0
    %298 = vmatpush1.msra.mxu0 0.0
    %299 = vmatprep.subr.mxu0 0.0
    %300 = vmatpush1.msra.mxu0 0.0
    %301 = vmatprep.subr.mxu0 0.0
    %302 = vmatpush1.msra.mxu0 0.0
    %303 = vmatprep.subr.mxu0 0.0
    %304 = vmatpush1.msra.mxu0 0.0
    %305 = vmatprep.subr.mxu0 0.0
    %306 = vmatpush1.msra.mxu0 0.0
    %307 = vmatprep.subr.mxu0 0.0
    %308 = vmatpush1.msra.mxu0 0.0
    %309 = vmatprep.subr.mxu0 0.0
    %310 = vmatpush1.msra.mxu0 0.0
    %311 = vmatprep.subr.mxu0 0.0
    %312 = vmatpush1.msra.mxu0 0.0
    %313 = vmatprep.subr.mxu0 0.0
    %314 = vmatpush1.msra.mxu0 0.0
    %315 = vmatprep.subr.mxu0 0.0
    %316 = vmatpush1.msra.mxu0 0.0
    %317 = vmatprep.subr.mxu0 0.0
    %318 = vmatpush1.msra.mxu0 0.0
    %319 = vmatprep.subr.mxu0 0.0
    %320 = vmatpush1.msra.mxu0 0.0
    %321 = vmatprep.subr.mxu0 0.0
    %322 = vmatpush1.msra.mxu0 0.0
    %323 = vmatprep.subr.mxu0 0.0
    %324 = vmatpush1.msra.mxu0 0.0
    %325 = vmatprep.subr.mxu0 0.0
    %326 = vmatpush1.msra.mxu0 0.0
    %327 = vmatprep.subr.mxu0 0.0
    %328 = vmatpush1.msra.mxu0 0.0
    %329 = vmatprep.subr.mxu0 0.0
    %330 = vmatpush1.msra.mxu0 0.0
    %331 = vmatprep.subr.mxu0 0.0
    %332 = vmatpush1.msra.mxu0 0.0
    %333 = vmatprep.subr.mxu0 0.0
    %334 = vmatpush1.msra.mxu0 0.0
    %335 = vmatprep.subr.mxu0 0.0
    %336 = vmatpush1.msra.mxu0 0.0
    %337 = vmatprep.subr.mxu0 0.0
    %338 = vmatpush1.msra.mxu0 0.0
    %339 = vmatprep.subr.mxu0 0.0
    %340 = vmatpush1.msra.mxu0 0.0
    %341 = vmatprep.subr.mxu0 0.0
    %342 = vmatpush1.msra.mxu0 0.0
    %343 = vmatprep.subr.mxu0 0.0
    %344 = vmatpush1.msra.mxu0 0.0
    %345 = vmatprep.subr.mxu0 0.0
    %346 = vmatpush1.msra.mxu0 0.0
    %347 = vmatprep.subr.mxu0 0.0
    %348 = vmatpush1.msra.mxu0 0.0
    %349 = vmatprep.subr.mxu0 0.0
    %350 = vmatpush1.msra.mxu0 0.0
    %351 = vmatprep.mubr.f32.mxu0 0.0
    %352 = vmatmul.mubr.f32.gmra.mrb[0].mxu0 %v203
    %v353 = vpop.f32.mrb[0].mxu0
    %v354 = vadd.f32 0.0, %v353
    %v355 = vpop.f32.mrb[0].mxu0
    %356 = vmatprep.mubr.f32.mxu0 0.0
    %357 = vmatmul.mubr.f32.gmra.mrb[0].mxu0 %v206
    %v358 = vpop.f32.mrb[0].mxu0
    %v359 = vadd.f32 0.0, %v358
    %v360 = vpop.f32.mrb[0].mxu0
    %361 = vdwg.mxu0
    %v362 = vld [vmem:[%s7] sm:$0xff]
    %v363 = vld [vmem:[%s7 + $0x8] sm:$0xff]
    %v364 = vld [vmem:[%s7 + $0x10] sm:$0xff]
    %v365 = vld [vmem:[%s7 + $0x18] sm:$0xff]
    %366 = vmatprep.subr.mxu0 0.0
    %367 = vmatpush1.msra.mxu0 %v362
    %368 = vmatprep.subr.mxu0 0.0
    %369 = vmatpush1.msra.mxu0 %v363
    %370 = vmatprep.subr.mxu0 0.0
    %371 = vmatpush1.msra.mxu0 %v364
    %372 = vmatprep.subr.mxu0 0.0
    %373 = vmatpush1.msra.mxu0 %v365
    %374 = vmatprep.subr.mxu0 0.0
    %375 = vmatpush1.msra.mxu0 0.0
    %376 = vmatprep.subr.mxu0 0.0
    %377 = vmatpush1.msra.mxu0 0.0
    %378 = vmatprep.subr.mxu0 0.0
    %379 = vmatpush1.msra.mxu0 0.0
    %380 = vmatprep.subr.mxu0 0.0
    %381 = vmatpush1.msra.mxu0 0.0
    %382 = vmatprep.subr.mxu0 0.0
    %383 = vmatpush1.msra.mxu0 0.0
    %384 = vmatprep.subr.mxu0 0.0
    %385 = vmatpush1.msra.mxu0 0.0
    %386 = vmatprep.subr.mxu0 0.0
    %387 = vmatpush1.msra.mxu0 0.0
    %388 = vmatprep.subr.mxu0 0.0
    %389 = vmatpush1.msra.mxu0 0.0
    %390 = vmatprep.subr.mxu0 0.0
    %391 = vmatpush1.msra.mxu0 0.0
    %392 = vmatprep.subr.mxu0 0.0
    %393 = vmatpush1.msra.mxu0 0.0
    %394 = vmatprep.subr.mxu0 0.0
    %395 = vmatpush1.msra.mxu0 0.0
    %396 = vmatprep.subr.mxu0 0.0
    %397 = vmatpush1.msra.mxu0 0.0
    %398 = vmatprep.subr.mxu0 0.0
    %399 = vmatpush1.msra.mxu0 0.0
    %400 = vmatprep.subr.mxu0 0.0
    %401 = vmatpush1.msra.mxu0 0.0
    %402 = vmatprep.subr.mxu0 0.0
    %403 = vmatpush1.msra.mxu0 0.0
    %404 = vmatprep.subr.mxu0 0.0
    %405 = vmatpush1.msra.mxu0 0.0
    %406 = vmatprep.subr.mxu0 0.0
    %407 = vmatpush1.msra.mxu0 0.0
    %408 = vmatprep.subr.mxu0 0.0
    %409 = vmatpush1.msra.mxu0 0.0
    %410 = vmatprep.subr.mxu0 0.0
    %411 = vmatpush1.msra.mxu0 0.0
    %412 = vmatprep.subr.mxu0 0.0
    %413 = vmatpush1.msra.mxu0 0.0
    %414 = vmatprep.subr.mxu0 0.0
    %415 = vmatpush1.msra.mxu0 0.0
    %416 = vmatprep.subr.mxu0 0.0
    %417 = vmatpush1.msra.mxu0 0.0
    %418 = vmatprep.subr.mxu0 0.0
    %419 = vmatpush1.msra.mxu0 0.0
    %420 = vmatprep.subr.mxu0 0.0
    %421 = vmatpush1.msra.mxu0 0.0
    %422 = vmatprep.subr.mxu0 0.0
    %423 = vmatpush1.msra.mxu0 0.0
    %424 = vmatprep.subr.mxu0 0.0
    %425 = vmatpush1.msra.mxu0 0.0
    %426 = vmatprep.subr.mxu0 0.0
    %427 = vmatpush1.msra.mxu0 0.0
    %428 = vmatprep.subr.mxu0 0.0
    %429 = vmatpush1.msra.mxu0 0.0
    %430 = vmatprep.mubr.f32.mxu0 0.0
    %431 = vmatmul.mubr.f32.gmra.mrb[0].mxu0 %v203
    %v432 = vpop.f32.mrb[0].mxu0
    %v433 = vadd.f32 0.0, %v432
    %v434 = vpop.f32.mrb[0].mxu0
    %435 = vmatprep.mubr.f32.mxu0 0.0
    %436 = vmatmul.mubr.f32.gmra.mrb[0].mxu0 %v206
    %v437 = vpop.f32.mrb[0].mxu0
    %v438 = vadd.f32 0.0, %v437
    %v439 = vpop.f32.mrb[0].mxu0
    %440 = vdwg.mxu0
    %v443 = vcombine.high %v275, %v275
    %v445 = vunpack.c.l.s4 1966171168
    %v446 = vunpack.c.0.s8 %v445
    %v447 = vlaneseq
    %v448 = vshrl.u32 %v447, 7
    %v449 = vsub.s32 %v446, %v448
    %v450 = vrot.slane %v275, %v449
    %v452 = vunpack.c.l.s4 1966171168
    %v453 = vunpack.c.0.s8 %v452
    %v454 = vlaneseq
    %v455 = vshrl.u32 %v454, 7
    %v456 = vsub.s32 %v453, %v455
    %v457 = vrot.slane %v443, %v456
    %v458 = vcombine.high %v450, %v450
    %v459 = vcombine.high %v457, %v457
    %v461 = vunpack.c.l.s4 1966171168
    %v462 = vunpack.c.0.s8 %v461
    %v463 = vlaneseq
    %v464 = vshrl.u32 %v463, 7
    %v465 = vsub.s32 %v462, %v464
    %v466 = vrot.slane %v450, %v465
    %v468 = vunpack.c.l.s4 1966171168
    %v469 = vunpack.c.0.s8 %v468
    %v470 = vlaneseq
    %v471 = vshrl.u32 %v470, 7
    %v472 = vsub.s32 %v469, %v471
    %v473 = vrot.slane %v457, %v472
    %v475 = vunpack.c.l.s4 1966171168
    %v476 = vunpack.c.0.s8 %v475
    %v477 = vlaneseq
    %v478 = vshrl.u32 %v477, 7
    %v479 = vsub.s32 %v476, %v478
    %v480 = vrot.slane %v458, %v479
    %v482 = vunpack.c.l.s4 1966171168
    %v483 = vunpack.c.0.s8 %v482
    %v484 = vlaneseq
    %v485 = vshrl.u32 %v484, 7
    %v486 = vsub.s32 %v483, %v485
    %v487 = vrot.slane %v459, %v486
    %v488 = vcombine.high %v466, %v466
    %v489 = vcombine.high %v473, %v473
    %v490 = vcombine.high %v480, %v480
    %v491 = vcombine.high %v487, %v487
    %v492 = vcombine.high %v280, %v280
    %v494 = vunpack.c.l.s4 1966171168
    %v495 = vunpack.c.0.s8 %v494
    %v496 = vlaneseq
    %v497 = vshrl.u32 %v496, 7
    %v498 = vsub.s32 %v495, %v497
    %v499 = vrot.slane %v280, %v498
    %v501 = vunpack.c.l.s4 1966171168
    %v502 = vunpack.c.0.s8 %v501
    %v503 = vlaneseq
    %v504 = vshrl.u32 %v503, 7
    %v505 = vsub.s32 %v502, %v504
    %v506 = vrot.slane %v492, %v505
    %v507 = vcombine.high %v499, %v499
    %v508 = vcombine.high %v506, %v506
    %v510 = vunpack.c.l.s4 1966171168
    %v511 = vunpack.c.0.s8 %v510
    %v512 = vlaneseq
    %v513 = vshrl.u32 %v512, 7
    %v514 = vsub.s32 %v511, %v513
    %v515 = vrot.slane %v499, %v514
    %v517 = vunpack.c.l.s4 1966171168
    %v518 = vunpack.c.0.s8 %v517
    %v519 = vlaneseq
    %v520 = vshrl.u32 %v519, 7
    %v521 = vsub.s32 %v518, %v520
    %v522 = vrot.slane %v506, %v521
    %v524 = vunpack.c.l.s4 1966171168
    %v525 = vunpack.c.0.s8 %v524
    %v526 = vlaneseq
    %v527 = vshrl.u32 %v526, 7
    %v528 = vsub.s32 %v525, %v527
    %v529 = vrot.slane %v507, %v528
    %v531 = vunpack.c.l.s4 1966171168
    %v532 = vunpack.c.0.s8 %v531
    %v533 = vlaneseq
    %v534 = vshrl.u32 %v533, 7
    %v535 = vsub.s32 %v532, %v534
    %v536 = vrot.slane %v508, %v535
    %v537 = vcombine.high %v515, %v515
    %v538 = vcombine.high %v522, %v522
    %v539 = vcombine.high %v529, %v529
    %v540 = vcombine.high %v536, %v536
    %v541 = vlaneseq
    %v542 = vshrl.u32 %v541, 7
    %v543 = vsub.s32 0, %v542
    %v544 = vrot.slane %v466, %v543
    %v545 = vlaneseq
    %v546 = vshrl.u32 %v545, 7
    %v547 = vsub.s32 0, %v546
    %v548 = vrot.slane %v480, %v547
    %v549 = vlaneseq
    %v550 = vshrl.u32 %v549, 7
    %v551 = vsub.s32 0, %v550
    %v552 = vrot.slane %v488, %v551
    %v553 = vlaneseq
    %v554 = vshrl.u32 %v553, 7
    %v555 = vsub.s32 0, %v554
    %v556 = vrot.slane %v490, %v555
    %v557 = vlaneseq
    %v558 = vshrl.u32 %v557, 7
    %v559 = vsub.s32 0, %v558
    %v560 = vrot.slane %v473, %v559
    %v561 = vlaneseq
    %v562 = vshrl.u32 %v561, 7
    %v563 = vsub.s32 0, %v562
    %v564 = vrot.slane %v487, %v563
    %v565 = vlaneseq
    %v566 = vshrl.u32 %v565, 7
    %v567 = vsub.s32 0, %v566
    %v568 = vrot.slane %v489, %v567
    %v569 = vlaneseq
    %v570 = vshrl.u32 %v569, 7
    %v571 = vsub.s32 0, %v570
    %v572 = vrot.slane %v491, %v571
    %v573 = vlaneseq
    %v574 = vshrl.u32 %v573, 7
    %v575 = vsub.s32 0, %v574
    %v576 = vrot.slane %v515, %v575
    %v577 = vlaneseq
    %v578 = vshrl.u32 %v577, 7
    %v579 = vsub.s32 0, %v578
    %v580 = vrot.slane %v529, %v579
    %v581 = vlaneseq
    %v582 = vshrl.u32 %v581, 7
    %v583 = vsub.s32 0, %v582
    %v584 = vrot.slane %v537, %v583
    %v585 = vlaneseq
    %v586 = vshrl.u32 %v585, 7
    %v587 = vsub.s32 0, %v586
    %v588 = vrot.slane %v539, %v587
    %v589 = vlaneseq
    %v590 = vshrl.u32 %v589, 7
    %v591 = vsub.s32 0, %v590
    %v592 = vrot.slane %v522, %v591
    %v593 = vlaneseq
    %v594 = vshrl.u32 %v593, 7
    %v595 = vsub.s32 0, %v594
    %v596 = vrot.slane %v536, %v595
    %v597 = vlaneseq
    %v598 = vshrl.u32 %v597, 7
    %v599 = vsub.s32 0, %v598
    %v600 = vrot.slane %v538, %v599
    %v601 = vlaneseq
    %v602 = vshrl.u32 %v601, 7
    %v603 = vsub.s32 0, %v602
    %v604 = vrot.slane %v540, %v603
    %v621 = vmul.f32 %v544, %v354
    %v622 = vmul.f32 %v548, %v354
    %v623 = vmul.f32 %v552, %v354
    %v624 = vmul.f32 %v556, %v354
    %v625 = vmul.f32 %v560, %v354
    %v626 = vmul.f32 %v564, %v354
    %v627 = vmul.f32 %v568, %v354
    %v628 = vmul.f32 %v572, %v354
    %v629 = vmul.f32 %v576, %v359
    %v630 = vmul.f32 %v580, %v359
    %v631 = vmul.f32 %v584, %v359
    %v632 = vmul.f32 %v588, %v359
    %v633 = vmul.f32 %v592, %v359
    %v634 = vmul.f32 %v596, %v359
    %v635 = vmul.f32 %v600, %v359
    %v636 = vmul.f32 %v604, %v359
    %v638 = vsel %vm201, %v621, 0
    %v641 = vsel %vm201, %v622, 0
    %v644 = vsel %vm201, %v623, 0
    %v647 = vsel %vm201, %v624, 0
    %v650 = vsel %vm201, %v625, 0
    %v653 = vsel %vm201, %v626, 0
    %v656 = vsel %vm201, %v627, 0
    %v659 = vsel %vm201, %v628, 0
    %v662 = vsel %vm201, %v629, 0
    %v665 = vsel %vm201, %v630, 0
    %v668 = vsel %vm201, %v631, 0
    %v671 = vsel %vm201, %v632, 0
    %v674 = vsel %vm201, %v633, 0
    %v677 = vsel %vm201, %v634, 0
    %v680 = vsel %vm201, %v635, 0
    %v683 = vsel %vm201, %v636, 0
    %685 = vmatprep.subr.mxu0 0.0
    %686 = vmatpush1.msra.mxu0 %v99
    %687 = vmatprep.subr.mxu0 0.0
    %688 = vmatpush1.msra.mxu0 %v100
    %689 = vmatprep.subr.mxu0 0.0
    %690 = vmatpush1.msra.mxu0 %v101
    %691 = vmatprep.subr.mxu0 0.0
    %692 = vmatpush1.msra.mxu0 %v102
    %693 = vmatprep.subr.mxu0 0.0
    %694 = vmatpush1.msra.mxu0 0.0
    %695 = vmatprep.subr.mxu0 0.0
    %696 = vmatpush1.msra.mxu0 0.0
    %697 = vmatprep.subr.mxu0 0.0
    %698 = vmatpush1.msra.mxu0 0.0
    %699 = vmatprep.subr.mxu0 0.0
    %700 = vmatpush1.msra.mxu0 0.0
    %701 = vmatprep.subr.mxu0 0.0
    %702 = vmatpush1.msra.mxu0 0.0
    %703 = vmatprep.subr.mxu0 0.0
    %704 = vmatpush1.msra.mxu0 0.0
    %705 = vmatprep.subr.mxu0 0.0
    %706 = vmatpush1.msra.mxu0 0.0
    %707 = vmatprep.subr.mxu0 0.0
    %708 = vmatpush1.msra.mxu0 0.0
    %709 = vmatprep.subr.mxu0 0.0
    %710 = vmatpush1.msra.mxu0 0.0
    %711 = vmatprep.subr.mxu0 0.0
    %712 = vmatpush1.msra.mxu0 0.0
    %713 = vmatprep.subr.mxu0 0.0
    %714 = vmatpush1.msra.mxu0 0.0
    %715 = vmatprep.subr.mxu0 0.0
    %716 = vmatpush1.msra.mxu0 0.0
    %717 = vmatprep.subr.mxu0 0.0
    %718 = vmatpush1.msra.mxu0 0.0
    %719 = vmatprep.subr.mxu0 0.0
    %720 = vmatpush1.msra.mxu0 0.0
    %721 = vmatprep.subr.mxu0 0.0
    %722 = vmatpush1.msra.mxu0 0.0
    %723 = vmatprep.subr.mxu0 0.0
    %724 = vmatpush1.msra.mxu0 0.0
    %725 = vmatprep.subr.mxu0 0.0
    %726 = vmatpush1.msra.mxu0 0.0
    %727 = vmatprep.subr.mxu0 0.0
    %728 = vmatpush1.msra.mxu0 0.0
    %729 = vmatprep.subr.mxu0 0.0
    %730 = vmatpush1.msra.mxu0 0.0
    %731 = vmatprep.subr.mxu0 0.0
    %732 = vmatpush1.msra.mxu0 0.0
    %733 = vmatprep.subr.mxu0 0.0
    %734 = vmatpush1.msra.mxu0 0.0
    %735 = vmatprep.subr.mxu0 0.0
    %736 = vmatpush1.msra.mxu0 0.0
    %737 = vmatprep.subr.mxu0 0.0
    %738 = vmatpush1.msra.mxu0 0.0
    %739 = vmatprep.subr.mxu0 0.0
    %740 = vmatpush1.msra.mxu0 0.0
    %741 = vmatprep.subr.mxu0 0.0
    %742 = vmatpush1.msra.mxu0 0.0
    %743 = vmatprep.subr.mxu0 0.0
    %744 = vmatpush1.msra.mxu0 0.0
    %745 = vmatprep.subr.mxu0 0.0
    %746 = vmatpush1.msra.mxu0 0.0
    %747 = vmatprep.subr.mxu0 0.0
    %748 = vmatpush1.msra.mxu0 0.0
    %749 = vmatprep.mubr.f32.mxu0 0.0
    %750 = vmatmul.mubr.f32.gmra.mrb[0].mxu0 %v638
    %v751 = vpop.f32.mrb[0].mxu0
    %v752 = vadd.f32 0.0, %v751
    %v753 = vpop.f32.mrb[0].mxu0
    %754 = vmatprep.mubr.f32.mxu0 0.0
    %755 = vmatmul.mubr.f32.gmra.mrb[0].mxu0 %v641
    %v756 = vpop.f32.mrb[0].mxu0
    %v757 = vadd.f32 0.0, %v756
    %v758 = vpop.f32.mrb[0].mxu0
    %759 = vmatprep.mubr.f32.mxu0 0.0
    %760 = vmatmul.mubr.f32.gmra.mrb[0].mxu0 %v644
    %v761 = vpop.f32.mrb[0].mxu0
    %v762 = vadd.f32 0.0, %v761
    %v763 = vpop.f32.mrb[0].mxu0
    %764 = vmatprep.mubr.f32.mxu0 0.0
    %765 = vmatmul.mubr.f32.gmra.mrb[0].mxu0 %v647
    %v766 = vpop.f32.mrb[0].mxu0
    %v767 = vadd.f32 0.0, %v766
    %v768 = vpop.f32.mrb[0].mxu0
    %769 = vmatprep.mubr.f32.mxu0 0.0
    %770 = vmatmul.mubr.f32.gmra.mrb[0].mxu0 %v650
    %v771 = vpop.f32.mrb[0].mxu0
    %v772 = vadd.f32 0.0, %v771
    %v773 = vpop.f32.mrb[0].mxu0
    %774 = vmatprep.mubr.f32.mxu0 0.0
    %775 = vmatmul.mubr.f32.gmra.mrb[0].mxu0 %v653
    %v776 = vpop.f32.mrb[0].mxu0
    %v777 = vadd.f32 0.0, %v776
    %v778 = vpop.f32.mrb[0].mxu0
    %779 = vmatprep.mubr.f32.mxu0 0.0
    %780 = vmatmul.mubr.f32.gmra.mrb[0].mxu0 %v656
    %v781 = vpop.f32.mrb[0].mxu0
    %v782 = vadd.f32 0.0, %v781
    %v783 = vpop.f32.mrb[0].mxu0
    %784 = vmatprep.mubr.f32.mxu0 0.0
    %785 = vmatmul.mubr.f32.gmra.mrb[0].mxu0 %v659
    %v786 = vpop.f32.mrb[0].mxu0
    %v787 = vadd.f32 0.0, %v786
    %v788 = vpop.f32.mrb[0].mxu0
    %789 = vmatprep.mubr.f32.mxu0 0.0
    %790 = vmatmul.mubr.f32.gmra.mrb[0].mxu0 %v662
    %v791 = vpop.f32.mrb[0].mxu0
    %v792 = vadd.f32 0.0, %v791
    %v793 = vpop.f32.mrb[0].mxu0
    %794 = vmatprep.mubr.f32.mxu0 0.0
    %795 = vmatmul.mubr.f32.gmra.mrb[0].mxu0 %v665
    %v796 = vpop.f32.mrb[0].mxu0
    %v797 = vadd.f32 0.0, %v796
    %v798 = vpop.f32.mrb[0].mxu0
    %799 = vmatprep.mubr.f32.mxu0 0.0
    %800 = vmatmul.mubr.f32.gmra.mrb[0].mxu0 %v668
    %v801 = vpop.f32.mrb[0].mxu0
    %v802 = vadd.f32 0.0, %v801
    %v803 = vpop.f32.mrb[0].mxu0
    %804 = vmatprep.mubr.f32.mxu0 0.0
    %805 = vmatmul.mubr.f32.gmra.mrb[0].mxu0 %v671
    %v806 = vpop.f32.mrb[0].mxu0
    %v807 = vadd.f32 0.0, %v806
    %v808 = vpop.f32.mrb[0].mxu0
    %809 = vmatprep.mubr.f32.mxu0 0.0
    %810 = vmatmul.mubr.f32.gmra.mrb[0].mxu0 %v674
    %v811 = vpop.f32.mrb[0].mxu0
    %v812 = vadd.f32 0.0, %v811
    %v813 = vpop.f32.mrb[0].mxu0
    %814 = vmatprep.mubr.f32.mxu0 0.0
    %815 = vmatmul.mubr.f32.gmra.mrb[0].mxu0 %v677
    %v816 = vpop.f32.mrb[0].mxu0
    %v817 = vadd.f32 0.0, %v816
    %v818 = vpop.f32.mrb[0].mxu0
    %819 = vmatprep.mubr.f32.mxu0 0.0
    %820 = vmatmul.mubr.f32.gmra.mrb[0].mxu0 %v680
    %v821 = vpop.f32.mrb[0].mxu0
    %v822 = vadd.f32 0.0, %v821
    %v823 = vpop.f32.mrb[0].mxu0
    %824 = vmatprep.mubr.f32.mxu0 0.0
    %825 = vmatmul.mubr.f32.gmra.mrb[0].mxu0 %v683
    %v826 = vpop.f32.mrb[0].mxu0
    %v827 = vadd.f32 0.0, %v826
    %v828 = vpop.f32.mrb[0].mxu0
    %829 = vdwg.mxu0
    %v830 = vmul.f32 %v752, 0.5
    %v831 = vmul.f32 %v757, 0.5
    %v832 = vmul.f32 %v762, 0.5
    %v833 = vmul.f32 %v767, 0.5
    %v834 = vmul.f32 %v772, 0.5
    %v835 = vmul.f32 %v777, 0.5
    %v836 = vmul.f32 %v782, 0.5
    %v837 = vmul.f32 %v787, 0.5
    %v838 = vmul.f32 %v792, 0.5
    %v839 = vmul.f32 %v797, 0.5
    %v840 = vmul.f32 %v802, 0.5
    %v841 = vmul.f32 %v807, 0.5
    %v842 = vmul.f32 %v812, 0.5
    %v843 = vmul.f32 %v817, 0.5
    %v844 = vmul.f32 %v822, 0.5
    %v845 = vmul.f32 %v827, 0.5
    %vm846 = vcmask 64512
    %v847 = vsel %vm846, %v830, -inf
    %v848 = vrot.slane %v847, 4
    %v849 = vmax.f32 %v847, %v848
    %v850 = vrot.slane %v849, 2
    %v851 = vmax.f32 %v849, %v850
    %v852 = vrot.slane %v851, 1
    %v853 = vmax.f32 %v851, %v852
    %v854 = vsel %vm846, %v831, -inf
    %v855 = vrot.slane %v854, 4
    %v856 = vmax.f32 %v854, %v855
    %v857 = vrot.slane %v856, 2
    %v858 = vmax.f32 %v856, %v857
    %v859 = vrot.slane %v858, 1
    %v860 = vmax.f32 %v858, %v859
    %v861 = vsel %vm846, %v832, -inf
    %v862 = vrot.slane %v861, 4
    %v863 = vmax.f32 %v861, %v862
    %v864 = vrot.slane %v863, 2
    %v865 = vmax.f32 %v863, %v864
    %v866 = vrot.slane %v865, 1
    %v867 = vmax.f32 %v865, %v866
    %v868 = vsel %vm846, %v833, -inf
    %v869 = vrot.slane %v868, 4
    %v870 = vmax.f32 %v868, %v869
    %v871 = vrot.slane %v870, 2
    %v872 = vmax.f32 %v870, %v871
    %v873 = vrot.slane %v872, 1
    %v874 = vmax.f32 %v872, %v873
    %v875 = vsel %vm846, %v834, -inf
    %v876 = vrot.slane %v875, 4
    %v877 = vmax.f32 %v875, %v876
    %v878 = vrot.slane %v877, 2
    %v879 = vmax.f32 %v877, %v878
    %v880 = vrot.slane %v879, 1
    %v881 = vmax.f32 %v879, %v880
    %v882 = vsel %vm846, %v835, -inf
    %v883 = vrot.slane %v882, 4
    %v884 = vmax.f32 %v882, %v883
    %v885 = vrot.slane %v884, 2
    %v886 = vmax.f32 %v884, %v885
    %v887 = vrot.slane %v886, 1
    %v888 = vmax.f32 %v886, %v887
    %v889 = vsel %vm846, %v836, -inf
    %v890 = vrot.slane %v889, 4
    %v891 = vmax.f32 %v889, %v890
    %v892 = vrot.slane %v891, 2
    %v893 = vmax.f32 %v891, %v892
    %v894 = vrot.slane %v893, 1
    %v895 = vmax.f32 %v893, %v894
    %v896 = vsel %vm846, %v837, -inf
    %v897 = vrot.slane %v896, 4
    %v898 = vmax.f32 %v896, %v897
    %v899 = vrot.slane %v898, 2
    %v900 = vmax.f32 %v898, %v899
    %v901 = vrot.slane %v900, 1
    %v902 = vmax.f32 %v900, %v901
    %v903 = vsel %vm846, %v838, -inf
    %v904 = vrot.slane %v903, 4
    %v905 = vmax.f32 %v903, %v904
    %v906 = vrot.slane %v905, 2
    %v907 = vmax.f32 %v905, %v906
    %v908 = vrot.slane %v907, 1
    %v909 = vmax.f32 %v907, %v908
    %v910 = vsel %vm846, %v839, -inf
    %v911 = vrot.slane %v910, 4
    %v912 = vmax.f32 %v910, %v911
    %v913 = vrot.slane %v912, 2
    %v914 = vmax.f32 %v912, %v913
    %v915 = vrot.slane %v914, 1
    %v916 = vmax.f32 %v914, %v915
    %v917 = vsel %vm846, %v840, -inf
    %v918 = vrot.slane %v917, 4
    %v919 = vmax.f32 %v917, %v918
    %v920 = vrot.slane %v919, 2
    %v921 = vmax.f32 %v919, %v920
    %v922 = vrot.slane %v921, 1
    %v923 = vmax.f32 %v921, %v922
    %v924 = vsel %vm846, %v841, -inf
    %v925 = vrot.slane %v924, 4
    %v926 = vmax.f32 %v924, %v925
    %v927 = vrot.slane %v926, 2
    %v928 = vmax.f32 %v926, %v927
    %v929 = vrot.slane %v928, 1
    %v930 = vmax.f32 %v928, %v929
    %v931 = vsel %vm846, %v842, -inf
    %v932 = vrot.slane %v931, 4
    %v933 = vmax.f32 %v931, %v932
    %v934 = vrot.slane %v933, 2
    %v935 = vmax.f32 %v933, %v934
    %v936 = vrot.slane %v935, 1
    %v937 = vmax.f32 %v935, %v936
    %v938 = vsel %vm846, %v843, -inf
    %v939 = vrot.slane %v938, 4
    %v940 = vmax.f32 %v938, %v939
    %v941 = vrot.slane %v940, 2
    %v942 = vmax.f32 %v940, %v941
    %v943 = vrot.slane %v942, 1
    %v944 = vmax.f32 %v942, %v943
    %v945 = vsel %vm846, %v844, -inf
    %v946 = vrot.slane %v945, 4
    %v947 = vmax.f32 %v945, %v946
    %v948 = vrot.slane %v947, 2
    %v949 = vmax.f32 %v947, %v948
    %v950 = vrot.slane %v949, 1
    %v951 = vmax.f32 %v949, %v950
    %v952 = vsel %vm846, %v845, -inf
    %v953 = vrot.slane %v952, 4
    %v954 = vmax.f32 %v952, %v953
    %v955 = vrot.slane %v954, 2
    %v956 = vmax.f32 %v954, %v955
    %v957 = vrot.slane %v956, 1
    %v958 = vmax.f32 %v956, %v957
    %v959 = vsub.f32 %v830, %v853
    %v960 = vsub.f32 %v831, %v860
    %v961 = vsub.f32 %v832, %v867
    %v962 = vsub.f32 %v833, %v874
    %v963 = vsub.f32 %v834, %v881
    %v964 = vsub.f32 %v835, %v888
    %v965 = vsub.f32 %v836, %v895
    %v966 = vsub.f32 %v837, %v902
    %v967 = vsub.f32 %v838, %v909
    %v968 = vsub.f32 %v839, %v916
    %v969 = vsub.f32 %v840, %v923
    %v970 = vsub.f32 %v841, %v930
    %v971 = vsub.f32 %v842, %v937
    %v972 = vsub.f32 %v843, %v944
    %v973 = vsub.f32 %v844, %v951
    %v974 = vsub.f32 %v845, %v958
    %v975 = vmul.f32 %v959, 1.442695
    %v976 = vpow.pop %v975
    %v977 = vmul.f32 %v960, 1.442695
    %v978 = vpow.pop %v977
    %v979 = vmul.f32 %v961, 1.442695
    %v980 = vpow.pop %v979
    %v981 = vmul.f32 %v962, 1.442695
    %v982 = vpow.pop %v981
    %v983 = vmul.f32 %v963, 1.442695
    %v984 = vpow.pop %v983
    %v985 = vmul.f32 %v964, 1.442695
    %v986 = vpow.pop %v985
    %v987 = vmul.f32 %v965, 1.442695
    %v988 = vpow.pop %v987
    %v989 = vmul.f32 %v966, 1.442695
    %v990 = vpow.pop %v989
    %v991 = vmul.f32 %v967, 1.442695
    %v992 = vpow.pop %v991
    %v993 = vmul.f32 %v968, 1.442695
    %v994 = vpow.pop %v993
    %v995 = vmul.f32 %v969, 1.442695
    %v996 = vpow.pop %v995
    %v997 = vmul.f32 %v970, 1.442695
    %v998 = vpow.pop %v997
    %v999 = vmul.f32 %v971, 1.442695
    %v1000 = vpow.pop %v999
    %v1001 = vmul.f32 %v972, 1.442695
    %v1002 = vpow.pop %v1001
    %v1003 = vmul.f32 %v973, 1.442695
    %v1004 = vpow.pop %v1003
    %v1005 = vmul.f32 %v974, 1.442695
    %v1006 = vpow.pop %v1005
    %v1007 = vsel %vm846, %v976, 0.0
    %v1008 = vrot.slane %v1007, 4
    %v1009 = vadd.f32 %v1007, %v1008
    %v1010 = vrot.slane %v1009, 2
    %v1011 = vadd.f32 %v1009, %v1010
    %v1012 = vrot.slane %v1011, 1
    %v1013 = vadd.f32 %v1011, %v1012
    %v1014 = vsel %vm846, %v978, 0.0
    %v1015 = vrot.slane %v1014, 4
    %v1016 = vadd.f32 %v1014, %v1015
    %v1017 = vrot.slane %v1016, 2
    %v1018 = vadd.f32 %v1016, %v1017
    %v1019 = vrot.slane %v1018, 1
    %v1020 = vadd.f32 %v1018, %v1019
    %v1021 = vsel %vm846, %v980, 0.0
    %v1022 = vrot.slane %v1021, 4
    %v1023 = vadd.f32 %v1021, %v1022
    %v1024 = vrot.slane %v1023, 2
    %v1025 = vadd.f32 %v1023, %v1024
    %v1026 = vrot.slane %v1025, 1
    %v1027 = vadd.f32 %v1025, %v1026
    %v1028 = vsel %vm846, %v982, 0.0
    %v1029 = vrot.slane %v1028, 4
    %v1030 = vadd.f32 %v1028, %v1029
    %v1031 = vrot.slane %v1030, 2
    %v1032 = vadd.f32 %v1030, %v1031
    %v1033 = vrot.slane %v1032, 1
    %v1034 = vadd.f32 %v1032, %v1033
    %v1035 = vsel %vm846, %v984, 0.0
    %v1036 = vrot.slane %v1035, 4
    %v1037 = vadd.f32 %v1035, %v1036
    %v1038 = vrot.slane %v1037, 2
    %v1039 = vadd.f32 %v1037, %v1038
    %v1040 = vrot.slane %v1039, 1
    %v1041 = vadd.f32 %v1039, %v1040
    %v1042 = vsel %vm846, %v986, 0.0
    %v1043 = vrot.slane %v1042, 4
    %v1044 = vadd.f32 %v1042, %v1043
    %v1045 = vrot.slane %v1044, 2
    %v1046 = vadd.f32 %v1044, %v1045
    %v1047 = vrot.slane %v1046, 1
    %v1048 = vadd.f32 %v1046, %v1047
    %v1049 = vsel %vm846, %v988, 0.0
    %v1050 = vrot.slane %v1049, 4
    %v1051 = vadd.f32 %v1049, %v1050
    %v1052 = vrot.slane %v1051, 2
    %v1053 = vadd.f32 %v1051, %v1052
    %v1054 = vrot.slane %v1053, 1
    %v1055 = vadd.f32 %v1053, %v1054
    %v1056 = vsel %vm846, %v990, 0.0
    %v1057 = vrot.slane %v1056, 4
    %v1058 = vadd.f32 %v1056, %v1057
    %v1059 = vrot.slane %v1058, 2
    %v1060 = vadd.f32 %v1058, %v1059
    %v1061 = vrot.slane %v1060, 1
    %v1062 = vadd.f32 %v1060, %v1061
    %v1063 = vsel %vm846, %v992, 0.0
    %v1064 = vrot.slane %v1063, 4
    %v1065 = vadd.f32 %v1063, %v1064
    %v1066 = vrot.slane %v1065, 2
    %v1067 = vadd.f32 %v1065, %v1066
    %v1068 = vrot.slane %v1067, 1
    %v1069 = vadd.f32 %v1067, %v1068
    %v1070 = vsel %vm846, %v994, 0.0
    %v1071 = vrot.slane %v1070, 4
    %v1072 = vadd.f32 %v1070, %v1071
    %v1073 = vrot.slane %v1072, 2
    %v1074 = vadd.f32 %v1072, %v1073
    %v1075 = vrot.slane %v1074, 1
    %v1076 = vadd.f32 %v1074, %v1075
    %v1077 = vsel %vm846, %v996, 0.0
    %v1078 = vrot.slane %v1077, 4
    %v1079 = vadd.f32 %v1077, %v1078
    %v1080 = vrot.slane %v1079, 2
    %v1081 = vadd.f32 %v1079, %v1080
    %v1082 = vrot.slane %v1081, 1
    %v1083 = vadd.f32 %v1081, %v1082
    %v1084 = vsel %vm846, %v998, 0.0
    %v1085 = vrot.slane %v1084, 4
    %v1086 = vadd.f32 %v1084, %v1085
    %v1087 = vrot.slane %v1086, 2
    %v1088 = vadd.f32 %v1086, %v1087
    %v1089 = vrot.slane %v1088, 1
    %v1090 = vadd.f32 %v1088, %v1089
    %v1091 = vsel %vm846, %v1000, 0.0
    %v1092 = vrot.slane %v1091, 4
    %v1093 = vadd.f32 %v1091, %v1092
    %v1094 = vrot.slane %v1093, 2
    %v1095 = vadd.f32 %v1093, %v1094
    %v1096 = vrot.slane %v1095, 1
    %v1097 = vadd.f32 %v1095, %v1096
    %v1098 = vsel %vm846, %v1002, 0.0
    %v1099 = vrot.slane %v1098, 4
    %v1100 = vadd.f32 %v1098, %v1099
    %v1101 = vrot.slane %v1100, 2
    %v1102 = vadd.f32 %v1100, %v1101
    %v1103 = vrot.slane %v1102, 1
    %v1104 = vadd.f32 %v1102, %v1103
    %v1105 = vsel %vm846, %v1004, 0.0
    %v1106 = vrot.slane %v1105, 4
    %v1107 = vadd.f32 %v1105, %v1106
    %v1108 = vrot.slane %v1107, 2
    %v1109 = vadd.f32 %v1107, %v1108
    %v1110 = vrot.slane %v1109, 1
    %v1111 = vadd.f32 %v1109, %v1110
    %v1112 = vsel %vm846, %v1006, 0.0
    %v1113 = vrot.slane %v1112, 4
    %v1114 = vadd.f32 %v1112, %v1113
    %v1115 = vrot.slane %v1114, 2
    %v1116 = vadd.f32 %v1114, %v1115
    %v1117 = vrot.slane %v1116, 1
    %v1118 = vadd.f32 %v1116, %v1117
    %v1119 = vrcp.pop %v1013
    %v1120 = vrcp.pop %v1020
    %v1121 = vrcp.pop %v1027
    %v1122 = vrcp.pop %v1034
    %v1123 = vrcp.pop %v1041
    %v1124 = vrcp.pop %v1048
    %v1125 = vrcp.pop %v1055
    %v1126 = vrcp.pop %v1062
    %v1127 = vrcp.pop %v1069
    %v1128 = vrcp.pop %v1076
    %v1129 = vrcp.pop %v1083
    %v1130 = vrcp.pop %v1090
    %v1131 = vrcp.pop %v1097
    %v1132 = vrcp.pop %v1104
    %v1133 = vrcp.pop %v1111
    %v1134 = vrcp.pop %v1118
    %v1135 = vmul.f32 %v976, %v1119
    %v1136 = vmul.f32 %v978, %v1120
    %v1137 = vmul.f32 %v980, %v1121
    %v1138 = vmul.f32 %v982, %v1122
    %v1139 = vmul.f32 %v984, %v1123
    %v1140 = vmul.f32 %v986, %v1124
    %v1141 = vmul.f32 %v988, %v1125
    %v1142 = vmul.f32 %v990, %v1126
    %v1143 = vmul.f32 %v992, %v1127
    %v1144 = vmul.f32 %v994, %v1128
    %v1145 = vmul.f32 %v996, %v1129
    %v1146 = vmul.f32 %v998, %v1130
    %v1147 = vmul.f32 %v1000, %v1131
    %v1148 = vmul.f32 %v1002, %v1132
    %v1149 = vmul.f32 %v1004, %v1133
    %v1150 = vmul.f32 %v1006, %v1134
    %v1152 = vsel %vm846, %v1135, 0
    %v1155 = vsel %vm846, %v1136, 0
    %v1158 = vsel %vm846, %v1137, 0
    %v1161 = vsel %vm846, %v1138, 0
    %v1164 = vsel %vm846, %v1139, 0
    %v1167 = vsel %vm846, %v1140, 0
    %v1170 = vsel %vm846, %v1141, 0
    %v1173 = vsel %vm846, %v1142, 0
    %v1176 = vsel %vm846, %v1143, 0
    %v1179 = vsel %vm846, %v1144, 0
    %v1182 = vsel %vm846, %v1145, 0
    %v1185 = vsel %vm846, %v1146, 0
    %v1188 = vsel %vm846, %v1147, 0
    %v1191 = vsel %vm846, %v1148, 0
    %v1194 = vsel %vm846, %v1149, 0
    %v1197 = vsel %vm846, %v1150, 0
    %1199 = vmatprep.subr.mxu0 0.0
    %1200 = vmatpush1.msra.mxu0 %v103
    %1201 = vmatprep.subr.mxu0 0.0
    %1202 = vmatpush1.msra.mxu0 0.0
    %1203 = vmatprep.subr.mxu0 0.0
    %1204 = vmatpush1.msra.mxu0 0.0
    %1205 = vmatprep.subr.mxu0 0.0
    %1206 = vmatpush1.msra.mxu0 0.0
    %1207 = vmatprep.subr.mxu0 0.0
    %1208 = vmatpush1.msra.mxu0 0.0
    %1209 = vmatprep.subr.mxu0 0.0
    %1210 = vmatpush1.msra.mxu0 0.0
    %1211 = vmatprep.subr.mxu0 0.0
    %1212 = vmatpush1.msra.mxu0 0.0
    %1213 = vmatprep.subr.mxu0 0.0
    %1214 = vmatpush1.msra.mxu0 0.0
    %1215 = vmatprep.subr.mxu0 0.0
    %1216 = vmatpush1.msra.mxu0 0.0
    %1217 = vmatprep.subr.mxu0 0.0
    %1218 = vmatpush1.msra.mxu0 0.0
    %1219 = vmatprep.subr.mxu0 0.0
    %1220 = vmatpush1.msra.mxu0 0.0
    %1221 = vmatprep.subr.mxu0 0.0
    %1222 = vmatpush1.msra.mxu0 0.0
    %1223 = vmatprep.subr.mxu0 0.0
    %1224 = vmatpush1.msra.mxu0 0.0
    %1225 = vmatprep.subr.mxu0 0.0
    %1226 = vmatpush1.msra.mxu0 0.0
    %1227 = vmatprep.subr.mxu0 0.0
    %1228 = vmatpush1.msra.mxu0 0.0
    %1229 = vmatprep.subr.mxu0 0.0
    %1230 = vmatpush1.msra.mxu0 0.0
    %1231 = vmatprep.subr.mxu0 0.0
    %1232 = vmatpush1.msra.mxu0 0.0
    %1233 = vmatprep.subr.mxu0 0.0
    %1234 = vmatpush1.msra.mxu0 0.0
    %1235 = vmatprep.subr.mxu0 0.0
    %1236 = vmatpush1.msra.mxu0 0.0
    %1237 = vmatprep.subr.mxu0 0.0
    %1238 = vmatpush1.msra.mxu0 0.0
    %1239 = vmatprep.subr.mxu0 0.0
    %1240 = vmatpush1.msra.mxu0 0.0
    %1241 = vmatprep.subr.mxu0 0.0
    %1242 = vmatpush1.msra.mxu0 0.0
    %1243 = vmatprep.subr.mxu0 0.0
    %1244 = vmatpush1.msra.mxu0 0.0
    %1245 = vmatprep.subr.mxu0 0.0
    %1246 = vmatpush1.msra.mxu0 0.0
    %1247 = vmatprep.subr.mxu0 0.0
    %1248 = vmatpush1.msra.mxu0 0.0
    %1249 = vmatprep.subr.mxu0 0.0
    %1250 = vmatpush1.msra.mxu0 0.0
    %1251 = vmatprep.subr.mxu0 0.0
    %1252 = vmatpush1.msra.mxu0 0.0
    %1253 = vmatprep.subr.mxu0 0.0
    %1254 = vmatpush1.msra.mxu0 0.0
    %1255 = vmatprep.subr.mxu0 0.0
    %1256 = vmatpush1.msra.mxu0 0.0
    %1257 = vmatprep.subr.mxu0 0.0
    %1258 = vmatpush1.msra.mxu0 0.0
    %1259 = vmatprep.subr.mxu0 0.0
    %1260 = vmatpush1.msra.mxu0 0.0
    %1261 = vmatprep.subr.mxu0 0.0
    %1262 = vmatpush1.msra.mxu0 0.0
    %1263 = vmatprep.mubr.f32.mxu0 0.0
    %1264 = vmatmul.mubr.f32.gmra.mrb[0].mxu0 %v1152
    %v1265 = vpop.f32.mrb[0].mxu0
    %v1266 = vadd.f32 0.0, %v1265
    %v1267 = vpop.f32.mrb[0].mxu0
    %1268 = vmatprep.mubr.f32.mxu0 0.0
    %1269 = vmatmul.mubr.f32.gmra.mrb[0].mxu0 %v1155
    %v1270 = vpop.f32.mrb[0].mxu0
    %v1271 = vadd.f32 0.0, %v1270
    %v1272 = vpop.f32.mrb[0].mxu0
    %1273 = vmatprep.mubr.f32.mxu0 0.0
    %1274 = vmatmul.mubr.f32.gmra.mrb[0].mxu0 %v1158
    %v1275 = vpop.f32.mrb[0].mxu0
    %v1276 = vadd.f32 0.0, %v1275
    %v1277 = vpop.f32.mrb[0].mxu0
    %1278 = vmatprep.mubr.f32.mxu0 0.0
    %1279 = vmatmul.mubr.f32.gmra.mrb[0].mxu0 %v1161
    %v1280 = vpop.f32.mrb[0].mxu0
    %v1281 = vadd.f32 0.0, %v1280
    %v1282 = vpop.f32.mrb[0].mxu0
    %1283 = vmatprep.mubr.f32.mxu0 0.0
    %1284 = vmatmul.mubr.f32.gmra.mrb[0].mxu0 %v1164
    %v1285 = vpop.f32.mrb[0].mxu0
    %v1286 = vadd.f32 0.0, %v1285
    %v1287 = vpop.f32.mrb[0].mxu0
    %1288 = vmatprep.mubr.f32.mxu0 0.0
    %1289 = vmatmul.mubr.f32.gmra.mrb[0].mxu0 %v1167
    %v1290 = vpop.f32.mrb[0].mxu0
    %v1291 = vadd.f32 0.0, %v1290
    %v1292 = vpop.f32.mrb[0].mxu0
    %1293 = vmatprep.mubr.f32.mxu0 0.0
    %1294 = vmatmul.mubr.f32.gmra.mrb[0].mxu0 %v1170
    %v1295 = vpop.f32.mrb[0].mxu0
    %v1296 = vadd.f32 0.0, %v1295
    %v1297 = vpop.f32.mrb[0].mxu0
    %1298 = vmatprep.mubr.f32.mxu0 0.0
    %1299 = vmatmul.mubr.f32.gmra.mrb[0].mxu0 %v1173
    %v1300 = vpop.f32.mrb[0].mxu0
    %v1301 = vadd.f32 0.0, %v1300
    %v1302 = vpop.f32.mrb[0].mxu0
    %1303 = vmatprep.mubr.f32.mxu0 0.0
    %1304 = vmatmul.mubr.f32.gmra.mrb[0].mxu0 %v1176
    %v1305 = vpop.f32.mrb[0].mxu0
    %v1306 = vadd.f32 0.0, %v1305
    %v1307 = vpop.f32.mrb[0].mxu0
    %1308 = vmatprep.mubr.f32.mxu0 0.0
    %1309 = vmatmul.mubr.f32.gmra.mrb[0].mxu0 %v1179
    %v1310 = vpop.f32.mrb[0].mxu0
    %v1311 = vadd.f32 0.0, %v1310
    %v1312 = vpop.f32.mrb[0].mxu0
    %1313 = vmatprep.mubr.f32.mxu0 0.0
    %1314 = vmatmul.mubr.f32.gmra.mrb[0].mxu0 %v1182
    %v1315 = vpop.f32.mrb[0].mxu0
    %v1316 = vadd.f32 0.0, %v1315
    %v1317 = vpop.f32.mrb[0].mxu0
    %1318 = vmatprep.mubr.f32.mxu0 0.0
    %1319 = vmatmul.mubr.f32.gmra.mrb[0].mxu0 %v1185
    %v1320 = vpop.f32.mrb[0].mxu0
    %v1321 = vadd.f32 0.0, %v1320
    %v1322 = vpop.f32.mrb[0].mxu0
    %1323 = vmatprep.mubr.f32.mxu0 0.0
    %1324 = vmatmul.mubr.f32.gmra.mrb[0].mxu0 %v1188
    %v1325 = vpop.f32.mrb[0].mxu0
    %v1326 = vadd.f32 0.0, %v1325
    %v1327 = vpop.f32.mrb[0].mxu0
    %1328 = vmatprep.mubr.f32.mxu0 0.0
    %1329 = vmatmul.mubr.f32.gmra.mrb[0].mxu0 %v1191
    %v1330 = vpop.f32.mrb[0].mxu0
    %v1331 = vadd.f32 0.0, %v1330
    %v1332 = vpop.f32.mrb[0].mxu0
    %1333 = vmatprep.mubr.f32.mxu0 0.0
    %1334 = vmatmul.mubr.f32.gmra.mrb[0].mxu0 %v1194
    %v1335 = vpop.f32.mrb[0].mxu0
    %v1336 = vadd.f32 0.0, %v1335
    %v1337 = vpop.f32.mrb[0].mxu0
    %1338 = vmatprep.mubr.f32.mxu0 0.0
    %1339 = vmatmul.mubr.f32.gmra.mrb[0].mxu0 %v1197
    %v1340 = vpop.f32.mrb[0].mxu0
    %v1341 = vadd.f32 0.0, %v1340
    %v1342 = vpop.f32.mrb[0].mxu0
    %1343 = vdwg.mxu0
    %v1344 = vmul.f32 %v1266, %v433
    %v1345 = vmul.f32 %v1271, %v433
    %v1346 = vmul.f32 %v1276, %v433
    %v1347 = vmul.f32 %v1281, %v433
    %v1348 = vmul.f32 %v1286, %v433
    %v1349 = vmul.f32 %v1291, %v433
    %v1350 = vmul.f32 %v1296, %v433
    %v1351 = vmul.f32 %v1301, %v433
    %v1352 = vmul.f32 %v1306, %v438
    %v1353 = vmul.f32 %v1311, %v438
    %v1354 = vmul.f32 %v1316, %v438
    %v1355 = vmul.f32 %v1321, %v438
    %v1356 = vmul.f32 %v1326, %v438
    %v1357 = vmul.f32 %v1331, %v438
    %v1358 = vmul.f32 %v1336, %v438
    %v1359 = vmul.f32 %v1341, %v438
    %v1360 = vsel %vm201, %v1344, 0.0
    %v1361 = vrot.slane %v1360, 4
    %v1362 = vadd.f32 %v1360, %v1361
    %v1363 = vrot.slane %v1362, 2
    %v1364 = vadd.f32 %v1362, %v1363
    %v1365 = vrot.slane %v1364, 1
    %v1366 = vadd.f32 %v1364, %v1365
    %v1367 = vsel %vm201, %v1345, 0.0
    %v1368 = vrot.slane %v1367, 4
    %v1369 = vadd.f32 %v1367, %v1368
    %v1370 = vrot.slane %v1369, 2
    %v1371 = vadd.f32 %v1369, %v1370
    %v1372 = vrot.slane %v1371, 1
    %v1373 = vadd.f32 %v1371, %v1372
    %v1374 = vsel %vm201, %v1346, 0.0
    %v1375 = vrot.slane %v1374, 4
    %v1376 = vadd.f32 %v1374, %v1375
    %v1377 = vrot.slane %v1376, 2
    %v1378 = vadd.f32 %v1376, %v1377
    %v1379 = vrot.slane %v1378, 1
    %v1380 = vadd.f32 %v1378, %v1379
    %v1381 = vsel %vm201, %v1347, 0.0
    %v1382 = vrot.slane %v1381, 4
    %v1383 = vadd.f32 %v1381, %v1382
    %v1384 = vrot.slane %v1383, 2
    %v1385 = vadd.f32 %v1383, %v1384
    %v1386 = vrot.slane %v1385, 1
    %v1387 = vadd.f32 %v1385, %v1386
    %v1388 = vsel %vm201, %v1348, 0.0
    %v1389 = vrot.slane %v1388, 4
    %v1390 = vadd.f32 %v1388, %v1389
    %v1391 = vrot.slane %v1390, 2
    %v1392 = vadd.f32 %v1390, %v1391
    %v1393 = vrot.slane %v1392, 1
    %v1394 = vadd.f32 %v1392, %v1393
    %v1395 = vsel %vm201, %v1349, 0.0
    %v1396 = vrot.slane %v1395, 4
    %v1397 = vadd.f32 %v1395, %v1396
    %v1398 = vrot.slane %v1397, 2
    %v1399 = vadd.f32 %v1397, %v1398
    %v1400 = vrot.slane %v1399, 1
    %v1401 = vadd.f32 %v1399, %v1400
    %v1402 = vsel %vm201, %v1350, 0.0
    %v1403 = vrot.slane %v1402, 4
    %v1404 = vadd.f32 %v1402, %v1403
    %v1405 = vrot.slane %v1404, 2
    %v1406 = vadd.f32 %v1404, %v1405
    %v1407 = vrot.slane %v1406, 1
    %v1408 = vadd.f32 %v1406, %v1407
    %v1409 = vsel %vm201, %v1351, 0.0
    %v1410 = vrot.slane %v1409, 4
    %v1411 = vadd.f32 %v1409, %v1410
    %v1412 = vrot.slane %v1411, 2
    %v1413 = vadd.f32 %v1411, %v1412
    %v1414 = vrot.slane %v1413, 1
    %v1415 = vadd.f32 %v1413, %v1414
    %v1416 = vsel %vm201, %v1352, 0.0
    %v1417 = vrot.slane %v1416, 4
    %v1418 = vadd.f32 %v1416, %v1417
    %v1419 = vrot.slane %v1418, 2
    %v1420 = vadd.f32 %v1418, %v1419
    %v1421 = vrot.slane %v1420, 1
    %v1422 = vadd.f32 %v1420, %v1421
    %v1423 = vsel %vm201, %v1353, 0.0
    %v1424 = vrot.slane %v1423, 4
    %v1425 = vadd.f32 %v1423, %v1424
    %v1426 = vrot.slane %v1425, 2
    %v1427 = vadd.f32 %v1425, %v1426
    %v1428 = vrot.slane %v1427, 1
    %v1429 = vadd.f32 %v1427, %v1428
    %v1430 = vsel %vm201, %v1354, 0.0
    %v1431 = vrot.slane %v1430, 4
    %v1432 = vadd.f32 %v1430, %v1431
    %v1433 = vrot.slane %v1432, 2
    %v1434 = vadd.f32 %v1432, %v1433
    %v1435 = vrot.slane %v1434, 1
    %v1436 = vadd.f32 %v1434, %v1435
    %v1437 = vsel %vm201, %v1355, 0.0
    %v1438 = vrot.slane %v1437, 4
    %v1439 = vadd.f32 %v1437, %v1438
    %v1440 = vrot.slane %v1439, 2
    %v1441 = vadd.f32 %v1439, %v1440
    %v1442 = vrot.slane %v1441, 1
    %v1443 = vadd.f32 %v1441, %v1442
    %v1444 = vsel %vm201, %v1356, 0.0
    %v1445 = vrot.slane %v1444, 4
    %v1446 = vadd.f32 %v1444, %v1445
    %v1447 = vrot.slane %v1446, 2
    %v1448 = vadd.f32 %v1446, %v1447
    %v1449 = vrot.slane %v1448, 1
    %v1450 = vadd.f32 %v1448, %v1449
    %v1451 = vsel %vm201, %v1357, 0.0
    %v1452 = vrot.slane %v1451, 4
    %v1453 = vadd.f32 %v1451, %v1452
    %v1454 = vrot.slane %v1453, 2
    %v1455 = vadd.f32 %v1453, %v1454
    %v1456 = vrot.slane %v1455, 1
    %v1457 = vadd.f32 %v1455, %v1456
    %v1458 = vsel %vm201, %v1358, 0.0
    %v1459 = vrot.slane %v1458, 4
    %v1460 = vadd.f32 %v1458, %v1459
    %v1461 = vrot.slane %v1460, 2
    %v1462 = vadd.f32 %v1460, %v1461
    %v1463 = vrot.slane %v1462, 1
    %v1464 = vadd.f32 %v1462, %v1463
    %v1465 = vsel %vm201, %v1359, 0.0
    %v1466 = vrot.slane %v1465, 4
    %v1467 = vadd.f32 %v1465, %v1466
    %v1468 = vrot.slane %v1467, 2
    %v1469 = vadd.f32 %v1467, %v1468
    %v1470 = vrot.slane %v1469, 1
    %v1471 = vadd.f32 %v1469, %v1470
    %v1472 = vld [vmem:[%s8] sm:$0xff]
    %v1473 = vld [vmem:[%s8 + $0x8] sm:$0xff]
    %v1474 = vld [vmem:[%s8 + $0x10] sm:$0xff]
    %v1475 = vld [vmem:[%s8 + $0x18] sm:$0xff]
    %vm1492 = vcmask 1041409
    %v1493 = vsel %vm1492, %v1373, %v1366
    %vm1494 = vcmask 1042434
    %v1495 = vsel %vm1494, %v1380, %v1493
    %vm1496 = vcmask 1043459
    %v1497 = vsel %vm1496, %v1387, %v1495
    %vm1498 = vcmask 1044484
    %v1499 = vsel %vm1498, %v1394, %v1497
    %vm1500 = vcmask 1045509
    %v1501 = vsel %vm1500, %v1401, %v1499
    %vm1502 = vcmask 1046534
    %v1503 = vsel %vm1502, %v1408, %v1501
    %vm1504 = vcmask 1047559
    %v1505 = vsel %vm1504, %v1415, %v1503
    %v1506 = vsel %vm1492, %v1429, %v1422
    %v1507 = vsel %vm1494, %v1436, %v1506
    %v1508 = vsel %vm1496, %v1443, %v1507
    %v1509 = vsel %vm1498, %v1450, %v1508
    %v1510 = vsel %vm1500, %v1457, %v1509
    %v1511 = vsel %vm1502, %v1464, %v1510
    %v1512 = vsel %vm1504, %v1471, %v1511
    %v1513 = vsel %vm201, %v1505, 0
    %v1515 = vsel %vm201, %v1512, 0
    %1517 = vmatprep.subr.mxu0 0.0
    %1518 = vmatpush1.msra.mxu0 %v1472
    %1519 = vmatprep.subr.mxu0 0.0
    %1520 = vmatpush1.msra.mxu0 %v1473
    %1521 = vmatprep.subr.mxu0 0.0
    %1522 = vmatpush1.msra.mxu0 %v1474
    %1523 = vmatprep.subr.mxu0 0.0
    %1524 = vmatpush1.msra.mxu0 %v1475
    %1525 = vmatprep.subr.mxu0 0.0
    %1526 = vmatpush1.msra.mxu0 0.0
    %1527 = vmatprep.subr.mxu0 0.0
    %1528 = vmatpush1.msra.mxu0 0.0
    %1529 = vmatprep.subr.mxu0 0.0
    %1530 = vmatpush1.msra.mxu0 0.0
    %1531 = vmatprep.subr.mxu0 0.0
    %1532 = vmatpush1.msra.mxu0 0.0
    %1533 = vmatprep.subr.mxu0 0.0
    %1534 = vmatpush1.msra.mxu0 0.0
    %1535 = vmatprep.subr.mxu0 0.0
    %1536 = vmatpush1.msra.mxu0 0.0
    %1537 = vmatprep.subr.mxu0 0.0
    %1538 = vmatpush1.msra.mxu0 0.0
    %1539 = vmatprep.subr.mxu0 0.0
    %1540 = vmatpush1.msra.mxu0 0.0
    %1541 = vmatprep.subr.mxu0 0.0
    %1542 = vmatpush1.msra.mxu0 0.0
    %1543 = vmatprep.subr.mxu0 0.0
    %1544 = vmatpush1.msra.mxu0 0.0
    %1545 = vmatprep.subr.mxu0 0.0
    %1546 = vmatpush1.msra.mxu0 0.0
    %1547 = vmatprep.subr.mxu0 0.0
    %1548 = vmatpush1.msra.mxu0 0.0
    %1549 = vmatprep.subr.mxu0 0.0
    %1550 = vmatpush1.msra.mxu0 0.0
    %1551 = vmatprep.subr.mxu0 0.0
    %1552 = vmatpush1.msra.mxu0 0.0
    %1553 = vmatprep.subr.mxu0 0.0
    %1554 = vmatpush1.msra.mxu0 0.0
    %1555 = vmatprep.subr.mxu0 0.0
    %1556 = vmatpush1.msra.mxu0 0.0
    %1557 = vmatprep.subr.mxu0 0.0
    %1558 = vmatpush1.msra.mxu0 0.0
    %1559 = vmatprep.subr.mxu0 0.0
    %1560 = vmatpush1.msra.mxu0 0.0
    %1561 = vmatprep.subr.mxu0 0.0
    %1562 = vmatpush1.msra.mxu0 0.0
    %1563 = vmatprep.subr.mxu0 0.0
    %1564 = vmatpush1.msra.mxu0 0.0
    %1565 = vmatprep.subr.mxu0 0.0
    %1566 = vmatpush1.msra.mxu0 0.0
    %1567 = vmatprep.subr.mxu0 0.0
    %1568 = vmatpush1.msra.mxu0 0.0
    %1569 = vmatprep.subr.mxu0 0.0
    %1570 = vmatpush1.msra.mxu0 0.0
    %1571 = vmatprep.subr.mxu0 0.0
    %1572 = vmatpush1.msra.mxu0 0.0
    %1573 = vmatprep.subr.mxu0 0.0
    %1574 = vmatpush1.msra.mxu0 0.0
    %1575 = vmatprep.subr.mxu0 0.0
    %1576 = vmatpush1.msra.mxu0 0.0
    %1577 = vmatprep.subr.mxu0 0.0
    %1578 = vmatpush1.msra.mxu0 0.0
    %1579 = vmatprep.subr.mxu0 0.0
    %1580 = vmatpush1.msra.mxu0 0.0
    %1581 = vmatprep.mubr.f32.mxu0 0.0
    %1582 = vmatmul.mubr.f32.gmra.mrb[0].mxu0 %v1513
    %v1583 = vpop.f32.mrb[0].mxu0
    %v1584 = vadd.f32 0.0, %v1583
    %v1585 = vpop.f32.mrb[0].mxu0
    %1586 = vmatprep.mubr.f32.mxu0 0.0
    %1587 = vmatmul.mubr.f32.gmra.mrb[0].mxu0 %v1515
    %v1588 = vpop.f32.mrb[0].mxu0
    %v1589 = vadd.f32 0.0, %v1588
    %v1590 = vpop.f32.mrb[0].mxu0
    %1591 = vdwg.mxu0
    %v1592 = vadd.f32 %v189, %v1584
    %v1593 = vadd.f32 %v194, %v1589
    %v1594 = vld [vmem:[%s9] sm:$0x1]
    %v1596 = vlaneseq
    %v1597 = vshrl.u32 %v1596, 7
    %v1598 = vsub.s32 0, %v1597
    %v1599 = vrot.slane %v1594, %v1598
    %v1601 = vadd.f32 %v1592, %v1599
    %v1602 = vadd.f32 %v1593, %v1599
    %v1603 = vld [vmem:[%s14] sm:$0x1]
    %v1604 = vld [vmem:[%s15] sm:$0x1]
    %v1605 = vsel %vm201, %v1601, 0.0
    %v1606 = vsel %vm201, %v1602, 0.0
    %v1607 = vadd.f32 %v1605, %v1606
    %v1608 = vrot.slane %v1607, 4
    %v1609 = vadd.f32 %v1607, %v1608
    %v1610 = vrot.slane %v1609, 2
    %v1611 = vadd.f32 %v1609, %v1610
    %v1612 = vrot.slane %v1611, 1
    %v1613 = vadd.f32 %v1611, %v1612
    %v1614 = vrcp.pop 16.0
    %v1615 = vmul.f32 %v1613, %v1614
    %v1616 = vsub.f32 %v1601, %v1615
    %v1617 = vsub.f32 %v1602, %v1615
    %v1618 = vmul.f32 %v1616, %v1616
    %v1619 = vmul.f32 %v1617, %v1617
    %v1620 = vsel %vm201, %v1618, 0.0
    %v1621 = vsel %vm201, %v1619, 0.0
    %v1622 = vadd.f32 %v1620, %v1621
    %v1623 = vrot.slane %v1622, 4
    %v1624 = vadd.f32 %v1622, %v1623
    %v1625 = vrot.slane %v1624, 2
    %v1626 = vadd.f32 %v1624, %v1625
    %v1627 = vrot.slane %v1626, 1
    %v1628 = vadd.f32 %v1626, %v1627
    %v1629 = vmul.f32 %v1628, %v1614
    %v1630 = vadd.f32 %v1629, 1e-05
    %v1631 = vrsqrt.pop %v1630
    %v1632 = vmul.f32 %v1616, %v1631
    %v1633 = vmul.f32 %v1617, %v1631
    %v1635 = vlaneseq
    %v1636 = vshrl.u32 %v1635, 7
    %v1637 = vsub.s32 0, %v1636
    %v1638 = vrot.slane %v1603, %v1637
    %v1640 = vmul.f32 %v1632, %v1638
    %v1641 = vmul.f32 %v1633, %v1638
    %v1643 = vlaneseq
    %v1644 = vshrl.u32 %v1643, 7
    %v1645 = vsub.s32 0, %v1644
    %v1646 = vrot.slane %v1604, %v1645
    %v1648 = vadd.f32 %v1640, %v1646
    %v1649 = vadd.f32 %v1641, %v1646
    %v1650 = vld [vmem:[%s10] sm:$0xff]
    %v1651 = vld [vmem:[%s10 + $0x8] sm:$0xff]
    %v1652 = vld [vmem:[%s10 + $0x10] sm:$0xff]
    %v1653 = vld [vmem:[%s10 + $0x18] sm:$0xff]
    %v1654 = vld [vmem:[%s11] sm:$0x1]
    %v1656 = vlaneseq
    %v1657 = vshrl.u32 %v1656, 7
    %v1658 = vsub.s32 0, %v1657
    %v1659 = vrot.slane %v1654, %v1658
    %v1662 = vsel %vm201, %v1648, 0
    %v1665 = vsel %vm201, %v1649, 0
    %1667 = vmatprep.subr.mxu0 0.0
    %1668 = vmatpush1.msra.mxu0 %v1650
    %1669 = vmatprep.subr.mxu0 0.0
    %1670 = vmatpush1.msra.mxu0 %v1651
    %1671 = vmatprep.subr.mxu0 0.0
    %1672 = vmatpush1.msra.mxu0 %v1652
    %1673 = vmatprep.subr.mxu0 0.0
    %1674 = vmatpush1.msra.mxu0 %v1653
    %1675 = vmatprep.subr.mxu0 0.0
    %1676 = vmatpush1.msra.mxu0 0.0
    %1677 = vmatprep.subr.mxu0 0.0
    %1678 = vmatpush1.msra.mxu0 0.0
    %1679 = vmatprep.subr.mxu0 0.0
    %1680 = vmatpush1.msra.mxu0 0.0
    %1681 = vmatprep.subr.mxu0 0.0
    %1682 = vmatpush1.msra.mxu0 0.0
    %1683 = vmatprep.subr.mxu0 0.0
    %1684 = vmatpush1.msra.mxu0 0.0
    %1685 = vmatprep.subr.mxu0 0.0
    %1686 = vmatpush1.msra.mxu0 0.0
    %1687 = vmatprep.subr.mxu0 0.0
    %1688 = vmatpush1.msra.mxu0 0.0
    %1689 = vmatprep.subr.mxu0 0.0
    %1690 = vmatpush1.msra.mxu0 0.0
    %1691 = vmatprep.subr.mxu0 0.0
    %1692 = vmatpush1.msra.mxu0 0.0
    %1693 = vmatprep.subr.mxu0 0.0
    %1694 = vmatpush1.msra.mxu0 0.0
    %1695 = vmatprep.subr.mxu0 0.0
    %1696 = vmatpush1.msra.mxu0 0.0
    %1697 = vmatprep.subr.mxu0 0.0
    %1698 = vmatpush1.msra.mxu0 0.0
    %1699 = vmatprep.subr.mxu0 0.0
    %1700 = vmatpush1.msra.mxu0 0.0
    %1701 = vmatprep.subr.mxu0 0.0
    %1702 = vmatpush1.msra.mxu0 0.0
    %1703 = vmatprep.subr.mxu0 0.0
    %1704 = vmatpush1.msra.mxu0 0.0
    %1705 = vmatprep.subr.mxu0 0.0
    %1706 = vmatpush1.msra.mxu0 0.0
    %1707 = vmatprep.subr.mxu0 0.0
    %1708 = vmatpush1.msra.mxu0 0.0
    %1709 = vmatprep.subr.mxu0 0.0
    %1710 = vmatpush1.msra.mxu0 0.0
    %1711 = vmatprep.subr.mxu0 0.0
    %1712 = vmatpush1.msra.mxu0 0.0
    %1713 = vmatprep.subr.mxu0 0.0
    %1714 = vmatpush1.msra.mxu0 0.0
    %1715 = vmatprep.subr.mxu0 0.0
    %1716 = vmatpush1.msra.mxu0 0.0
    %1717 = vmatprep.subr.mxu0 0.0
    %1718 = vmatpush1.msra.mxu0 0.0
    %1719 = vmatprep.subr.mxu0 0.0
    %1720 = vmatpush1.msra.mxu0 0.0
    %1721 = vmatprep.subr.mxu0 0.0
    %1722 = vmatpush1.msra.mxu0 0.0
    %1723 = vmatprep.subr.mxu0 0.0
    %1724 = vmatpush1.msra.mxu0 0.0
    %1725 = vmatprep.subr.mxu0 0.0
    %1726 = vmatpush1.msra.mxu0 0.0
    %1727 = vmatprep.subr.mxu0 0.0
    %1728 = vmatpush1.msra.mxu0 0.0
    %1729 = vmatprep.subr.mxu0 0.0
    %1730 = vmatpush1.msra.mxu0 0.0
    %1731 = vmatprep.mubr.f32.mxu0 0.0
    %1732 = vmatmul.mubr.f32.gmra.mrb[0].mxu0 %v1662
    %v1733 = vpop.f32.mrb[0].mxu0
    %v1734 = vadd.f32 %v1659, %v1733
    %v1735 = vpop.f32.mrb[0].mxu0
    %1736 = vmatprep.mubr.f32.mxu0 0.0
    %1737 = vmatmul.mubr.f32.gmra.mrb[0].mxu0 %v1665
    %v1738 = vpop.f32.mrb[0].mxu0
    %v1739 = vadd.f32 %v1659, %v1738
    %v1740 = vpop.f32.mrb[0].mxu0
    %1741 = vdwg.mxu0
    %v1742 = vmax.f32 %v1734, 0.0
    %v1743 = vmax.f32 %v1739, 0.0
    %v1744 = vld [vmem:[%s12] sm:$0xff]
    %v1745 = vld [vmem:[%s12 + $0x8] sm:$0xff]
    %v1746 = vld [vmem:[%s12 + $0x10] sm:$0xff]
    %v1747 = vld [vmem:[%s12 + $0x18] sm:$0xff]
    %v1748 = vld [vmem:[%s12 + $0x20] sm:$0xff]
    %v1749 = vld [vmem:[%s12 + $0x28] sm:$0xff]
    %v1750 = vld [vmem:[%s12 + $0x30] sm:$0xff]
    %v1751 = vld [vmem:[%s12 + $0x38] sm:$0xff]
    %v1752 = vld [vmem:[%s12 + $0x40] sm:$0xff]
    %v1753 = vld [vmem:[%s12 + $0x48] sm:$0xff]
    %v1754 = vld [vmem:[%s12 + $0x50] sm:$0xff]
    %v1755 = vld [vmem:[%s12 + $0x58] sm:$0xff]
    %v1756 = vld [vmem:[%s12 + $0x60] sm:$0xff]
    %v1757 = vld [vmem:[%s12 + $0x68] sm:$0xff]
    %v1758 = vld [vmem:[%s12 + $0x70] sm:$0xff]
    %v1759 = vld [vmem:[%s12 + $0x78] sm:$0xff]
    %v1760 = vld [vmem:[#allocation7] sm:$0x1]
    %v1762 = vlaneseq
    %v1763 = vshrl.u32 %v1762, 7
    %v1764 = vsub.s32 0, %v1763
    %v1765 = vrot.slane %v1760, %v1764
    %1767 = vmatprep.subr.mxu0 0.0
    %1768 = vmatpush1.msra.mxu0 %v1744
    %1769 = vmatprep.subr.mxu0 0.0
    %1770 = vmatpush1.msra.mxu0 %v1745
    %1771 = vmatprep.subr.mxu0 0.0
    %1772 = vmatpush1.msra.mxu0 %v1746
    %1773 = vmatprep.subr.mxu0 0.0
    %1774 = vmatpush1.msra.mxu0 %v1747
    %1775 = vmatprep.subr.mxu0 0.0
    %1776 = vmatpush1.msra.mxu0 %v1748
    %1777 = vmatprep.subr.mxu0 0.0
    %1778 = vmatpush1.msra.mxu0 %v1749
    %1779 = vmatprep.subr.mxu0 0.0
    %1780 = vmatpush1.msra.mxu0 %v1750
    %1781 = vmatprep.subr.mxu0 0.0
    %1782 = vmatpush1.msra.mxu0 %v1751
    %1783 = vmatprep.subr.mxu0 0.0
    %1784 = vmatpush1.msra.mxu0 %v1752
    %1785 = vmatprep.subr.mxu0 0.0
    %1786 = vmatpush1.msra.mxu0 %v1753
    %1787 = vmatprep.subr.mxu0 0.0
    %1788 = vmatpush1.msra.mxu0 %v1754
    %1789 = vmatprep.subr.mxu0 0.0
    %1790 = vmatpush1.msra.mxu0 %v1755
    %1791 = vmatprep.subr.mxu0 0.0
    %1792 = vmatpush1.msra.mxu0 %v1756
    %1793 = vmatprep.subr.mxu0 0.0
    %1794 = vmatpush1.msra.mxu0 %v1757
    %1795 = vmatprep.subr.mxu0 0.0
    %1796 = vmatpush1.msra.mxu0 %v1758
    %1797 = vmatprep.subr.mxu0 0.0
    %1798 = vmatpush1.msra.mxu0 %v1759
    %1799 = vmatprep.subr.mxu0 0.0
    %1800 = vmatpush1.msra.mxu0 0.0
    %1801 = vmatprep.subr.mxu0 0.0
    %1802 = vmatpush1.msra.mxu0 0.0
    %1803 = vmatprep.subr.mxu0 0.0
    %1804 = vmatpush1.msra.mxu0 0.0
    %1805 = vmatprep.subr.mxu0 0.0
    %1806 = vmatpush1.msra.mxu0 0.0
    %1807 = vmatprep.subr.mxu0 0.0
    %1808 = vmatpush1.msra.mxu0 0.0
    %1809 = vmatprep.subr.mxu0 0.0
    %1810 = vmatpush1.msra.mxu0 0.0
    %1811 = vmatprep.subr.mxu0 0.0
    %1812 = vmatpush1.msra.mxu0 0.0
    %1813 = vmatprep.subr.mxu0 0.0
    %1814 = vmatpush1.msra.mxu0 0.0
    %1815 = vmatprep.subr.mxu0 0.0
    %1816 = vmatpush1.msra.mxu0 0.0
    %1817 = vmatprep.subr.mxu0 0.0
    %1818 = vmatpush1.msra.mxu0 0.0
    %1819 = vmatprep.subr.mxu0 0.0
    %1820 = vmatpush1.msra.mxu0 0.0
    %1821 = vmatprep.subr.mxu0 0.0
    %1822 = vmatpush1.msra.mxu0 0.0
    %1823 = vmatprep.subr.mxu0 0.0
    %1824 = vmatpush1.msra.mxu0 0.0
    %1825 = vmatprep.subr.mxu0 0.0
    %1826 = vmatpush1.msra.mxu0 0.0
    %1827 = vmatprep.subr.mxu0 0.0
    %1828 = vmatpush1.msra.mxu0 0.0
    %1829 = vmatprep.subr.mxu0 0.0
    %1830 = vmatpush1.msra.mxu0 0.0
    %1831 = vmatprep.mubr.f32.mxu0 0.0
    %1832 = vmatmul.mubr.f32.gmra.mrb[0].mxu0 %v1742
    %v1833 = vpop.f32.mrb[0].mxu0
    %v1834 = vadd.f32 %v1765, %v1833
    %v1835 = vpop.f32.mrb[0].mxu0
    %1836 = vmatprep.mubr.f32.mxu0 0.0
    %1837 = vmatmul.mubr.f32.gmra.mrb[0].mxu0 %v1743
    %v1838 = vpop.f32.mrb[0].mxu0
    %v1839 = vadd.f32 %v1765, %v1838
    %v1840 = vpop.f32.mrb[0].mxu0
    %1841 = vdwg.mxu0
    %v1842 = vadd.f32 %v1648, %v1834
    %v1843 = vadd.f32 %v1649, %v1839
    %v1844 = vld [vmem:[%s16] sm:$0x1]
    %v1845 = vld [vmem:[%s17] sm:$0x1]
    %v1846 = vsel %vm201, %v1842, 0.0
    %v1847 = vsel %vm201, %v1843, 0.0
    %v1848 = vadd.f32 %v1846, %v1847
    %v1849 = vrot.slane %v1848, 4
    %v1850 = vadd.f32 %v1848, %v1849
    %v1851 = vrot.slane %v1850, 2
    %v1852 = vadd.f32 %v1850, %v1851
    %v1853 = vrot.slane %v1852, 1
    %v1854 = vadd.f32 %v1852, %v1853
    %v1855 = vmul.f32 %v1854, %v1614
    %v1856 = vsub.f32 %v1842, %v1855
    %v1857 = vsub.f32 %v1843, %v1855
    %v1858 = vmul.f32 %v1856, %v1856
    %v1859 = vmul.f32 %v1857, %v1857
    %v1860 = vsel %vm201, %v1858, 0.0
    %v1861 = vsel %vm201, %v1859, 0.0
    %v1862 = vadd.f32 %v1860, %v1861
    %v1863 = vrot.slane %v1862, 4
    %v1864 = vadd.f32 %v1862, %v1863
    %v1865 = vrot.slane %v1864, 2
    %v1866 = vadd.f32 %v1864, %v1865
    %v1867 = vrot.slane %v1866, 1
    %v1868 = vadd.f32 %v1866, %v1867
    %v1869 = vmul.f32 %v1868, %v1614
    %v1870 = vadd.f32 %v1869, 1e-05
    %v1871 = vrsqrt.pop %v1870
    %v1872 = vmul.f32 %v1856, %v1871
    %v1873 = vmul.f32 %v1857, %v1871
    %v1875 = vlaneseq
    %v1876 = vshrl.u32 %v1875, 7
    %v1877 = vsub.s32 0, %v1876
    %v1878 = vrot.slane %v1844, %v1877
    %v1880 = vmul.f32 %v1872, %v1878
    %v1881 = vmul.f32 %v1873, %v1878
    %v1883 = vlaneseq
    %v1884 = vshrl.u32 %v1883, 7
    %v1885 = vsub.s32 0, %v1884
    %v1886 = vrot.slane %v1845, %v1885
    %v1888 = vadd.f32 %v1880, %v1886
    %v1889 = vadd.f32 %v1881, %v1886
    %s1890 = scalar_lea.vmem %s5, 32
    %v1891 = vld [vmem:[%s1890] sm:$0xff]
    %v1892 = vld [vmem:[%s1890 + $0x8] sm:$0xff]
    %v1893 = vld [vmem:[%s1890 + $0x10] sm:$0xff]
    %v1894 = vld [vmem:[%s1890 + $0x18] sm:$0xff]
    %v1896 = vsel %vm201, %v1888, 0
    %v1899 = vsel %vm201, %v1889, 0
    %1901 = vmatprep.subr.mxu0 0.0
    %1902 = vmatpush1.msra.mxu0 %v1891
    %1903 = vmatprep.subr.mxu0 0.0
    %1904 = vmatpush1.msra.mxu0 %v1892
    %1905 = vmatprep.subr.mxu0 0.0
    %1906 = vmatpush1.msra.mxu0 %v1893
    %1907 = vmatprep.subr.mxu0 0.0
    %1908 = vmatpush1.msra.mxu0 %v1894
    %1909 = vmatprep.subr.mxu0 0.0
    %1910 = vmatpush1.msra.mxu0 0.0
    %1911 = vmatprep.subr.mxu0 0.0
    %1912 = vmatpush1.msra.mxu0 0.0
    %1913 = vmatprep.subr.mxu0 0.0
    %1914 = vmatpush1.msra.mxu0 0.0
    %1915 = vmatprep.subr.mxu0 0.0
    %1916 = vmatpush1.msra.mxu0 0.0
    %1917 = vmatprep.subr.mxu0 0.0
    %1918 = vmatpush1.msra.mxu0 0.0
    %1919 = vmatprep.subr.mxu0 0.0
    %1920 = vmatpush1.msra.mxu0 0.0
    %1921 = vmatprep.subr.mxu0 0.0
    %1922 = vmatpush1.msra.mxu0 0.0
    %1923 = vmatprep.subr.mxu0 0.0
    %1924 = vmatpush1.msra.mxu0 0.0
    %1925 = vmatprep.subr.mxu0 0.0
    %1926 = vmatpush1.msra.mxu0 0.0
    %1927 = vmatprep.subr.mxu0 0.0
    %1928 = vmatpush1.msra.mxu0 0.0
    %1929 = vmatprep.subr.mxu0 0.0
    %1930 = vmatpush1.msra.mxu0 0.0
    %1931 = vmatprep.subr.mxu0 0.0
    %1932 = vmatpush1.msra.mxu0 0.0
    %1933 = vmatprep.subr.mxu0 0.0
    %1934 = vmatpush1.msra.mxu0 0.0
    %1935 = vmatprep.subr.mxu0 0.0
    %1936 = vmatpush1.msra.mxu0 0.0
    %1937 = vmatprep.subr.mxu0 0.0
    %1938 = vmatpush1.msra.mxu0 0.0
    %1939 = vmatprep.subr.mxu0 0.0
    %1940 = vmatpush1.msra.mxu0 0.0
    %1941 = vmatprep.subr.mxu0 0.0
    %1942 = vmatpush1.msra.mxu0 0.0
    %1943 = vmatprep.subr.mxu0 0.0
    %1944 = vmatpush1.msra.mxu0 0.0
    %1945 = vmatprep.subr.mxu0 0.0
    %1946 = vmatpush1.msra.mxu0 0.0
    %1947 = vmatprep.subr.mxu0 0.0
    %1948 = vmatpush1.msra.mxu0 0.0
    %1949 = vmatprep.subr.mxu0 0.0
    %1950 = vmatpush1.msra.mxu0 0.0
    %1951 = vmatprep.subr.mxu0 0.0
    %1952 = vmatpush1.msra.mxu0 0.0
    %1953 = vmatprep.subr.mxu0 0.0
    %1954 = vmatpush1.msra.mxu0 0.0
    %1955 = vmatprep.subr.mxu0 0.0
    %1956 = vmatpush1.msra.mxu0 0.0
    %1957 = vmatprep.subr.mxu0 0.0
    %1958 = vmatpush1.msra.mxu0 0.0
    %1959 = vmatprep.subr.mxu0 0.0
    %1960 = vmatpush1.msra.mxu0 0.0
    %1961 = vmatprep.subr.mxu0 0.0
    %1962 = vmatpush1.msra.mxu0 0.0
    %1963 = vmatprep.subr.mxu0 0.0
    %1964 = vmatpush1.msra.mxu0 0.0
    %1965 = vmatprep.mubr.f32.mxu0 0.0
    %1966 = vmatmul.mubr.f32.gmra.mrb[0].mxu0 %v1896
    %v1967 = vpop.f32.mrb[0].mxu0
    %v1968 = vadd.f32 0.0, %v1967
    %v1969 = vpop.f32.mrb[0].mxu0
    %1970 = vmatprep.mubr.f32.mxu0 0.0
    %1971 = vmatmul.mubr.f32.gmra.mrb[0].mxu0 %v1899
    %v1972 = vpop.f32.mrb[0].mxu0
    %v1973 = vadd.f32 0.0, %v1972
    %v1974 = vpop.f32.mrb[0].mxu0
    %1975 = vdwg.mxu0
    %s1976 = scalar_lea.vmem %s6, 32
    %v1977 = vld [vmem:[%s1976] sm:$0xff]
    %v1978 = vld [vmem:[%s1976 + $0x8] sm:$0xff]
    %v1979 = vld [vmem:[%s1976 + $0x10] sm:$0xff]
    %v1980 = vld [vmem:[%s1976 + $0x18] sm:$0xff]
    %1981 = vmatprep.subr.mxu0 0.0
    %1982 = vmatpush1.msra.mxu0 %v1977
    %1983 = vmatprep.subr.mxu0 0.0
    %1984 = vmatpush1.msra.mxu0 %v1978
    %1985 = vmatprep.subr.mxu0 0.0
    %1986 = vmatpush1.msra.mxu0 %v1979
    %1987 = vmatprep.subr.mxu0 0.0
    %1988 = vmatpush1.msra.mxu0 %v1980
    %1989 = vmatprep.subr.mxu0 0.0
    %1990 = vmatpush1.msra.mxu0 0.0
    %1991 = vmatprep.subr.mxu0 0.0
    %1992 = vmatpush1.msra.mxu0 0.0
    %1993 = vmatprep.subr.mxu0 0.0
    %1994 = vmatpush1.msra.mxu0 0.0
    %1995 = vmatprep.subr.mxu0 0.0
    %1996 = vmatpush1.msra.mxu0 0.0
    %1997 = vmatprep.subr.mxu0 0.0
    %1998 = vmatpush1.msra.mxu0 0.0
    %1999 = vmatprep.subr.mxu0 0.0
    %2000 = vmatpush1.msra.mxu0 0.0
    %2001 = vmatprep.subr.mxu0 0.0
    %2002 = vmatpush1.msra.mxu0 0.0
    %2003 = vmatprep.subr.mxu0 0.0
    %2004 = vmatpush1.msra.mxu0 0.0
    %2005 = vmatprep.subr.mxu0 0.0
    %2006 = vmatpush1.msra.mxu0 0.0
    %2007 = vmatprep.subr.mxu0 0.0
    %2008 = vmatpush1.msra.mxu0 0.0
    %2009 = vmatprep.subr.mxu0 0.0
    %2010 = vmatpush1.msra.mxu0 0.0
    %2011 = vmatprep.subr.mxu0 0.0
    %2012 = vmatpush1.msra.mxu0 0.0
    %2013 = vmatprep.subr.mxu0 0.0
    %2014 = vmatpush1.msra.mxu0 0.0
    %2015 = vmatprep.subr.mxu0 0.0
    %2016 = vmatpush1.msra.mxu0 0.0
    %2017 = vmatprep.subr.mxu0 0.0
    %2018 = vmatpush1.msra.mxu0 0.0
    %2019 = vmatprep.subr.mxu0 0.0
    %2020 = vmatpush1.msra.mxu0 0.0
    %2021 = vmatprep.subr.mxu0 0.0
    %2022 = vmatpush1.msra.mxu0 0.0
    %2023 = vmatprep.subr.mxu0 0.0
    %2024 = vmatpush1.msra.mxu0 0.0
    %2025 = vmatprep.subr.mxu0 0.0
    %2026 = vmatpush1.msra.mxu0 0.0
    %2027 = vmatprep.subr.mxu0 0.0
    %2028 = vmatpush1.msra.mxu0 0.0
    %2029 = vmatprep.subr.mxu0 0.0
    %2030 = vmatpush1.msra.mxu0 0.0
    %2031 = vmatprep.subr.mxu0 0.0
    %2032 = vmatpush1.msra.mxu0 0.0
    %2033 = vmatprep.subr.mxu0 0.0
    %2034 = vmatpush1.msra.mxu0 0.0
    %2035 = vmatprep.subr.mxu0 0.0
    %2036 = vmatpush1.msra.mxu0 0.0
    %2037 = vmatprep.subr.mxu0 0.0
    %2038 = vmatpush1.msra.mxu0 0.0
    %2039 = vmatprep.subr.mxu0 0.0
    %2040 = vmatpush1.msra.mxu0 0.0
    %2041 = vmatprep.subr.mxu0 0.0
    %2042 = vmatpush1.msra.mxu0 0.0
    %2043 = vmatprep.subr.mxu0 0.0
    %2044 = vmatpush1.msra.mxu0 0.0
    %2045 = vmatprep.mubr.f32.mxu0 0.0
    %2046 = vmatmul.mubr.f32.gmra.mrb[0].mxu0 %v1896
    %v2047 = vpop.f32.mrb[0].mxu0
    %v2048 = vadd.f32 0.0, %v2047
    %v2049 = vpop.f32.mrb[0].mxu0
    %2050 = vmatprep.mubr.f32.mxu0 0.0
    %2051 = vmatmul.mubr.f32.gmra.mrb[0].mxu0 %v1899
    %v2052 = vpop.f32.mrb[0].mxu0
    %v2053 = vadd.f32 0.0, %v2052
    %v2054 = vpop.f32.mrb[0].mxu0
    %2055 = vdwg.mxu0
    %s2056 = scalar_lea.vmem %s7, 32
    %v2057 = vld [vmem:[%s2056] sm:$0xff]
    %v2058 = vld [vmem:[%s2056 + $0x8] sm:$0xff]
    %v2059 = vld [vmem:[%s2056 + $0x10] sm:$0xff]
    %v2060 = vld [vmem:[%s2056 + $0x18] sm:$0xff]
    %2061 = vmatprep.subr.mxu0 0.0
    %2062 = vmatpush1.msra.mxu0 %v2057
    %2063 = vmatprep.subr.mxu0 0.0
    %2064 = vmatpush1.msra.mxu0 %v2058
    %2065 = vmatprep.subr.mxu0 0.0
    %2066 = vmatpush1.msra.mxu0 %v2059
    %2067 = vmatprep.subr.mxu0 0.0
    %2068 = vmatpush1.msra.mxu0 %v2060
    %2069 = vmatprep.subr.mxu0 0.0
    %2070 = vmatpush1.msra.mxu0 0.0
    %2071 = vmatprep.subr.mxu0 0.0
    %2072 = vmatpush1.msra.mxu0 0.0
    %2073 = vmatprep.subr.mxu0 0.0
    %2074 = vmatpush1.msra.mxu0 0.0
    %2075 = vmatprep.subr.mxu0 0.0
    %2076 = vmatpush1.msra.mxu0 0.0
    %2077 = vmatprep.subr.mxu0 0.0
    %2078 = vmatpush1.msra.mxu0 0.0
    %2079 = vmatprep.subr.mxu0 0.0
    %2080 = vmatpush1.msra.mxu0 0.0
    %2081 = vmatprep.subr.mxu0 0.0
    %2082 = vmatpush1.msra.mxu0 0.0
    %2083 = vmatprep.subr.mxu0 0.0
    %2084 = vmatpush1.msra.mxu0 0.0
    %2085 = vmatprep.subr.mxu0 0.0
    %2086 = vmatpush1.msra.mxu0 0.0
    %2087 = vmatprep.subr.mxu0 0.0
    %2088 = vmatpush1.msra.mxu0 0.0
    %2089 = vmatprep.subr.mxu0 0.0
    %2090 = vmatpush1.msra.mxu0 0.0
    %2091 = vmatprep.subr.mxu0 0.0
    %2092 = vmatpush1.msra.mxu0 0.0
    %2093 = vmatprep.subr.mxu0 0.0
    %2094 = vmatpush1.msra.mxu0 0.0
    %2095 = vmatprep.subr.mxu0 0.0
    %2096 = vmatpush1.msra.mxu0 0.0
    %2097 = vmatprep.subr.mxu0 0.0
    %2098 = vmatpush1.msra.mxu0 0.0
    %2099 = vmatprep.subr.mxu0 0.0
    %2100 = vmatpush1.msra.mxu0 0.0
    %2101 = vmatprep.subr.mxu0 0.0
    %2102 = vmatpush1.msra.mxu0 0.0
    %2103 = vmatprep.subr.mxu0 0.0
    %2104 = vmatpush1.msra.mxu0 0.0
    %2105 = vmatprep.subr.mxu0 0.0
    %2106 = vmatpush1.msra.mxu0 0.0
    %2107 = vmatprep.subr.mxu0 0.0
    %2108 = vmatpush1.msra.mxu0 0.0
    %2109 = vmatprep.subr.mxu0 0.0
    %2110 = vmatpush1.msra.mxu0 0.0
    %2111 = vmatprep.subr.mxu0 0.0
    %2112 = vmatpush1.msra.mxu0 0.0
    %2113 = vmatprep.subr.mxu0 0.0
    %2114 = vmatpush1.msra.mxu0 0.0
    %2115 = vmatprep.subr.mxu0 0.0
    %2116 = vmatpush1.msra.mxu0 0.0
    %2117 = vmatprep.subr.mxu0 0.0
    %2118 = vmatpush1.msra.mxu0 0.0
    %2119 = vmatprep.subr.mxu0 0.0
    %2120 = vmatpush1.msra.mxu0 0.0
    %2121 = vmatprep.subr.mxu0 0.0
    %2122 = vmatpush1.msra.mxu0 0.0
    %2123 = vmatprep.subr.mxu0 0.0
    %2124 = vmatpush1.msra.mxu0 0.0
    %2125 = vmatprep.mubr.f32.mxu0 0.0
    %2126 = vmatmul.mubr.f32.gmra.mrb[0].mxu0 %v1896
    %v2127 = vpop.f32.mrb[0].mxu0
    %v2128 = vadd.f32 0.0, %v2127
    %v2129 = vpop.f32.mrb[0].mxu0
    %2130 = vmatprep.mubr.f32.mxu0 0.0
    %2131 = vmatmul.mubr.f32.gmra.mrb[0].mxu0 %v1899
    %v2132 = vpop.f32.mrb[0].mxu0
    %v2133 = vadd.f32 0.0, %v2132
    %v2134 = vpop.f32.mrb[0].mxu0
    %2135 = vdwg.mxu0
    %v2138 = vcombine.high %v1968, %v1968
    %v2140 = vunpack.c.l.s4 1966171168
    %v2141 = vunpack.c.0.s8 %v2140
    %v2142 = vlaneseq
    %v2143 = vshrl.u32 %v2142, 7
    %v2144 = vsub.s32 %v2141, %v2143
    %v2145 = vrot.slane %v1968, %v2144
    %v2147 = vunpack.c.l.s4 1966171168
    %v2148 = vunpack.c.0.s8 %v2147
    %v2149 = vlaneseq
    %v2150 = vshrl.u32 %v2149, 7
    %v2151 = vsub.s32 %v2148, %v2150
    %v2152 = vrot.slane %v2138, %v2151
    %v2153 = vcombine.high %v2145, %v2145
    %v2154 = vcombine.high %v2152, %v2152
    %v2156 = vunpack.c.l.s4 1966171168
    %v2157 = vunpack.c.0.s8 %v2156
    %v2158 = vlaneseq
    %v2159 = vshrl.u32 %v2158, 7
    %v2160 = vsub.s32 %v2157, %v2159
    %v2161 = vrot.slane %v2145, %v2160
    %v2163 = vunpack.c.l.s4 1966171168
    %v2164 = vunpack.c.0.s8 %v2163
    %v2165 = vlaneseq
    %v2166 = vshrl.u32 %v2165, 7
    %v2167 = vsub.s32 %v2164, %v2166
    %v2168 = vrot.slane %v2152, %v2167
    %v2170 = vunpack.c.l.s4 1966171168
    %v2171 = vunpack.c.0.s8 %v2170
    %v2172 = vlaneseq
    %v2173 = vshrl.u32 %v2172, 7
    %v2174 = vsub.s32 %v2171, %v2173
    %v2175 = vrot.slane %v2153, %v2174
    %v2177 = vunpack.c.l.s4 1966171168
    %v2178 = vunpack.c.0.s8 %v2177
    %v2179 = vlaneseq
    %v2180 = vshrl.u32 %v2179, 7
    %v2181 = vsub.s32 %v2178, %v2180
    %v2182 = vrot.slane %v2154, %v2181
    %v2183 = vcombine.high %v2161, %v2161
    %v2184 = vcombine.high %v2168, %v2168
    %v2185 = vcombine.high %v2175, %v2175
    %v2186 = vcombine.high %v2182, %v2182
    %v2187 = vcombine.high %v1973, %v1973
    %v2189 = vunpack.c.l.s4 1966171168
    %v2190 = vunpack.c.0.s8 %v2189
    %v2191 = vlaneseq
    %v2192 = vshrl.u32 %v2191, 7
    %v2193 = vsub.s32 %v2190, %v2192
    %v2194 = vrot.slane %v1973, %v2193
    %v2196 = vunpack.c.l.s4 1966171168
    %v2197 = vunpack.c.0.s8 %v2196
    %v2198 = vlaneseq
    %v2199 = vshrl.u32 %v2198, 7
    %v2200 = vsub.s32 %v2197, %v2199
    %v2201 = vrot.slane %v2187, %v2200
    %v2202 = vcombine.high %v2194, %v2194
    %v2203 = vcombine.high %v2201, %v2201
    %v2205 = vunpack.c.l.s4 1966171168
    %v2206 = vunpack.c.0.s8 %v2205
    %v2207 = vlaneseq
    %v2208 = vshrl.u32 %v2207, 7
    %v2209 = vsub.s32 %v2206, %v2208
    %v2210 = vrot.slane %v2194, %v2209
    %v2212 = vunpack.c.l.s4 1966171168
    %v2213 = vunpack.c.0.s8 %v2212
    %v2214 = vlaneseq
    %v2215 = vshrl.u32 %v2214, 7
    %v2216 = vsub.s32 %v2213, %v2215
    %v2217 = vrot.slane %v2201, %v2216
    %v2219 = vunpack.c.l.s4 1966171168
    %v2220 = vunpack.c.0.s8 %v2219
    %v2221 = vlaneseq
    %v2222 = vshrl.u32 %v2221, 7
    %v2223 = vsub.s32 %v2220, %v2222
    %v2224 = vrot.slane %v2202, %v2223
    %v2226 = vunpack.c.l.s4 1966171168
    %v2227 = vunpack.c.0.s8 %v2226
    %v2228 = vlaneseq
    %v2229 = vshrl.u32 %v2228, 7
    %v2230 = vsub.s32 %v2227, %v2229
    %v2231 = vrot.slane %v2203, %v2230
    %v2232 = vcombine.high %v2210, %v2210
    %v2233 = vcombine.high %v2217, %v2217
    %v2234 = vcombine.high %v2224, %v2224
    %v2235 = vcombine.high %v2231, %v2231
    %v2236 = vlaneseq
    %v2237 = vshrl.u32 %v2236, 7
    %v2238 = vsub.s32 0, %v2237
    %v2239 = vrot.slane %v2161, %v2238
    %v2240 = vlaneseq
    %v2241 = vshrl.u32 %v2240, 7
    %v2242 = vsub.s32 0, %v2241
    %v2243 = vrot.slane %v2175, %v2242
    %v2244 = vlaneseq
    %v2245 = vshrl.u32 %v2244, 7
    %v2246 = vsub.s32 0, %v2245
    %v2247 = vrot.slane %v2183, %v2246
    %v2248 = vlaneseq
    %v2249 = vshrl.u32 %v2248, 7
    %v2250 = vsub.s32 0, %v2249
    %v2251 = vrot.slane %v2185, %v2250
    %v2252 = vlaneseq
    %v2253 = vshrl.u32 %v2252, 7
    %v2254 = vsub.s32 0, %v2253
    %v2255 = vrot.slane %v2168, %v2254
    %v2256 = vlaneseq
    %v2257 = vshrl.u32 %v2256, 7
    %v2258 = vsub.s32 0, %v2257
    %v2259 = vrot.slane %v2182, %v2258
    %v2260 = vlaneseq
    %v2261 = vshrl.u32 %v2260, 7
    %v2262 = vsub.s32 0, %v2261
    %v2263 = vrot.slane %v2184, %v2262
    %v2264 = vlaneseq
    %v2265 = vshrl.u32 %v2264, 7
    %v2266 = vsub.s32 0, %v2265
    %v2267 = vrot.slane %v2186, %v2266
    %v2268 = vlaneseq
    %v2269 = vshrl.u32 %v2268, 7
    %v2270 = vsub.s32 0, %v2269
    %v2271 = vrot.slane %v2210, %v2270
    %v2272 = vlaneseq
    %v2273 = vshrl.u32 %v2272, 7
    %v2274 = vsub.s32 0, %v2273
    %v2275 = vrot.slane %v2224, %v2274
    %v2276 = vlaneseq
    %v2277 = vshrl.u32 %v2276, 7
    %v2278 = vsub.s32 0, %v2277
    %v2279 = vrot.slane %v2232, %v2278
    %v2280 = vlaneseq
    %v2281 = vshrl.u32 %v2280, 7
    %v2282 = vsub.s32 0, %v2281
    %v2283 = vrot.slane %v2234, %v2282
    %v2284 = vlaneseq
    %v2285 = vshrl.u32 %v2284, 7
    %v2286 = vsub.s32 0, %v2285
    %v2287 = vrot.slane %v2217, %v2286
    %v2288 = vlaneseq
    %v2289 = vshrl.u32 %v2288, 7
    %v2290 = vsub.s32 0, %v2289
    %v2291 = vrot.slane %v2231, %v2290
    %v2292 = vlaneseq
    %v2293 = vshrl.u32 %v2292, 7
    %v2294 = vsub.s32 0, %v2293
    %v2295 = vrot.slane %v2233, %v2294
    %v2296 = vlaneseq
    %v2297 = vshrl.u32 %v2296, 7
    %v2298 = vsub.s32 0, %v2297
    %v2299 = vrot.slane %v2235, %v2298
    %v2316 = vmul.f32 %v2239, %v2048
    %v2317 = vmul.f32 %v2243, %v2048
    %v2318 = vmul.f32 %v2247, %v2048
    %v2319 = vmul.f32 %v2251, %v2048
    %v2320 = vmul.f32 %v2255, %v2048
    %v2321 = vmul.f32 %v2259, %v2048
    %v2322 = vmul.f32 %v2263, %v2048
    %v2323 = vmul.f32 %v2267, %v2048
    %v2324 = vmul.f32 %v2271, %v2053
    %v2325 = vmul.f32 %v2275, %v2053
    %v2326 = vmul.f32 %v2279, %v2053
    %v2327 = vmul.f32 %v2283, %v2053
    %v2328 = vmul.f32 %v2287, %v2053
    %v2329 = vmul.f32 %v2291, %v2053
    %v2330 = vmul.f32 %v2295, %v2053
    %v2331 = vmul.f32 %v2299, %v2053
    %v2333 = vsel %vm201, %v2316, 0
    %v2336 = vsel %vm201, %v2317, 0
    %v2339 = vsel %vm201, %v2318, 0
    %v2342 = vsel %vm201, %v2319, 0
    %v2345 = vsel %vm201, %v2320, 0
    %v2348 = vsel %vm201, %v2321, 0
    %v2351 = vsel %vm201, %v2322, 0
    %v2354 = vsel %vm201, %v2323, 0
    %v2357 = vsel %vm201, %v2324, 0
    %v2360 = vsel %vm201, %v2325, 0
    %v2363 = vsel %vm201, %v2326, 0
    %v2366 = vsel %vm201, %v2327, 0
    %v2369 = vsel %vm201, %v2328, 0
    %v2372 = vsel %vm201, %v2329, 0
    %v2375 = vsel %vm201, %v2330, 0
    %v2378 = vsel %vm201, %v2331, 0
    %2380 = vmatprep.subr.mxu0 0.0
    %2381 = vmatpush1.msra.mxu0 %v99
    %2382 = vmatprep.subr.mxu0 0.0
    %2383 = vmatpush1.msra.mxu0 %v100
    %2384 = vmatprep.subr.mxu0 0.0
    %2385 = vmatpush1.msra.mxu0 %v101
    %2386 = vmatprep.subr.mxu0 0.0
    %2387 = vmatpush1.msra.mxu0 %v102
    %2388 = vmatprep.subr.mxu0 0.0
    %2389 = vmatpush1.msra.mxu0 0.0
    %2390 = vmatprep.subr.mxu0 0.0
    %2391 = vmatpush1.msra.mxu0 0.0
    %2392 = vmatprep.subr.mxu0 0.0
    %2393 = vmatpush1.msra.mxu0 0.0
    %2394 = vmatprep.subr.mxu0 0.0
    %2395 = vmatpush1.msra.mxu0 0.0
    %2396 = vmatprep.subr.mxu0 0.0
    %2397 = vmatpush1.msra.mxu0 0.0
    %2398 = vmatprep.subr.mxu0 0.0
    %2399 = vmatpush1.msra.mxu0 0.0
    %2400 = vmatprep.subr.mxu0 0.0
    %2401 = vmatpush1.msra.mxu0 0.0
    %2402 = vmatprep.subr.mxu0 0.0
    %2403 = vmatpush1.msra.mxu0 0.0
    %2404 = vmatprep.subr.mxu0 0.0
    %2405 = vmatpush1.msra.mxu0 0.0
    %2406 = vmatprep.subr.mxu0 0.0
    %2407 = vmatpush1.msra.mxu0 0.0
    %2408 = vmatprep.subr.mxu0 0.0
    %2409 = vmatpush1.msra.mxu0 0.0
    %2410 = vmatprep.subr.mxu0 0.0
    %2411 = vmatpush1.msra.mxu0 0.0
    %2412 = vmatprep.subr.mxu0 0.0
    %2413 = vmatpush1.msra.mxu0 0.0
    %2414 = vmatprep.subr.mxu0 0.0
    %2415 = vmatpush1.msra.mxu0 0.0
    %2416 = vmatprep.subr.mxu0 0.0
    %2417 = vmatpush1.msra.mxu0 0.0
    %2418 = vmatprep.subr.mxu0 0.0
    %2419 = vmatpush1.msra.mxu0 0.0
    %2420 = vmatprep.subr.mxu0 0.0
    %2421 = vmatpush1.msra.mxu0 0.0
    %2422 = vmatprep.subr.mxu0 0.0
    %2423 = vmatpush1.msra.mxu0 0.0
    %2424 = vmatprep.subr.mxu0 0.0
    %2425 = vmatpush1.msra.mxu0 0.0
    %2426 = vmatprep.subr.mxu0 0.0
    %2427 = vmatpush1.msra.mxu0 0.0
    %2428 = vmatprep.subr.mxu0 0.0
    %2429 = vmatpush1.msra.mxu0 0.0
    %2430 = vmatprep.subr.mxu0 0.0
    %2431 = vmatpush1.msra.mxu0 0.0
    %2432 = vmatprep.subr.mxu0 0.0
    %2433 = vmatpush1.msra.mxu0 0.0
    %2434 = vmatprep.subr.mxu0 0.0
    %2435 = vmatpush1.msra.mxu0 0.0
    %2436 = vmatprep.subr.mxu0 0.0
    %2437 = vmatpush1.msra.mxu0 0.0
    %2438 = vmatprep.subr.mxu0 0.0
    %2439 = vmatpush1.msra.mxu0 0.0
    %2440 = vmatprep.subr.mxu0 0.0
    %2441 = vmatpush1.msra.mxu0 0.0
    %2442 = vmatprep.subr.mxu0 0.0
    %2443 = vmatpush1.msra.mxu0 0.0
    %2444 = vmatprep.mubr.f32.mxu0 0.0
    %2445 = vmatmul.mubr.f32.gmra.mrb[0].mxu0 %v2333
    %v2446 = vpop.f32.mrb[0].mxu0
    %v2447 = vadd.f32 0.0, %v2446
    %v2448 = vpop.f32.mrb[0].mxu0
    %2449 = vmatprep.mubr.f32.mxu0 0.0
    %2450 = vmatmul.mubr.f32.gmra.mrb[0].mxu0 %v2336
    %v2451 = vpop.f32.mrb[0].mxu0
    %v2452 = vadd.f32 0.0, %v2451
    %v2453 = vpop.f32.mrb[0].mxu0
    %2454 = vmatprep.mubr.f32.mxu0 0.0
    %2455 = vmatmul.mubr.f32.gmra.mrb[0].mxu0 %v2339
    %v2456 = vpop.f32.mrb[0].mxu0
    %v2457 = vadd.f32 0.0, %v2456
    %v2458 = vpop.f32.mrb[0].mxu0
    %2459 = vmatprep.mubr.f32.mxu0 0.0
    %2460 = vmatmul.mubr.f32.gmra.mrb[0].mxu0 %v2342
    %v2461 = vpop.f32.mrb[0].mxu0
    %v2462 = vadd.f32 0.0, %v2461
    %v2463 = vpop.f32.mrb[0].mxu0
    %2464 = vmatprep.mubr.f32.mxu0 0.0
    %2465 = vmatmul.mubr.f32.gmra.mrb[0].mxu0 %v2345
    %v2466 = vpop.f32.mrb[0].mxu0
    %v2467 = vadd.f32 0.0, %v2466
    %v2468 = vpop.f32.mrb[0].mxu0
    %2469 = vmatprep.mubr.f32.mxu0 0.0
    %2470 = vmatmul.mubr.f32.gmra.mrb[0].mxu0 %v2348
    %v2471 = vpop.f32.mrb[0].mxu0
    %v2472 = vadd.f32 0.0, %v2471
    %v2473 = vpop.f32.mrb[0].mxu0
    %2474 = vmatprep.mubr.f32.mxu0 0.0
    %2475 = vmatmul.mubr.f32.gmra.mrb[0].mxu0 %v2351
    %v2476 = vpop.f32.mrb[0].mxu0
    %v2477 = vadd.f32 0.0, %v2476
    %v2478 = vpop.f32.mrb[0].mxu0
    %2479 = vmatprep.mubr.f32.mxu0 0.0
    %2480 = vmatmul.mubr.f32.gmra.mrb[0].mxu0 %v2354
    %v2481 = vpop.f32.mrb[0].mxu0
    %v2482 = vadd.f32 0.0, %v2481
    %v2483 = vpop.f32.mrb[0].mxu0
    %2484 = vmatprep.mubr.f32.mxu0 0.0
    %2485 = vmatmul.mubr.f32.gmra.mrb[0].mxu0 %v2357
    %v2486 = vpop.f32.mrb[0].mxu0
    %v2487 = vadd.f32 0.0, %v2486
    %v2488 = vpop.f32.mrb[0].mxu0
    %2489 = vmatprep.mubr.f32.mxu0 0.0
    %2490 = vmatmul.mubr.f32.gmra.mrb[0].mxu0 %v2360
    %v2491 = vpop.f32.mrb[0].mxu0
    %v2492 = vadd.f32 0.0, %v2491
    %v2493 = vpop.f32.mrb[0].mxu0
    %2494 = vmatprep.mubr.f32.mxu0 0.0
    %2495 = vmatmul.mubr.f32.gmra.mrb[0].mxu0 %v2363
    %v2496 = vpop.f32.mrb[0].mxu0
    %v2497 = vadd.f32 0.0, %v2496
    %v2498 = vpop.f32.mrb[0].mxu0
    %2499 = vmatprep.mubr.f32.mxu0 0.0
    %2500 = vmatmul.mubr.f32.gmra.mrb[0].mxu0 %v2366
    %v2501 = vpop.f32.mrb[0].mxu0
    %v2502 = vadd.f32 0.0, %v2501
    %v2503 = vpop.f32.mrb[0].mxu0
    %2504 = vmatprep.mubr.f32.mxu0 0.0
    %2505 = vmatmul.mubr.f32.gmra.mrb[0].mxu0 %v2369
    %v2506 = vpop.f32.mrb[0].mxu0
    %v2507 = vadd.f32 0.0, %v2506
    %v2508 = vpop.f32.mrb[0].mxu0
    %2509 = vmatprep.mubr.f32.mxu0 0.0
    %2510 = vmatmul.mubr.f32.gmra.mrb[0].mxu0 %v2372
    %v2511 = vpop.f32.mrb[0].mxu0
    %v2512 = vadd.f32 0.0, %v2511
    %v2513 = vpop.f32.mrb[0].mxu0
    %2514 = vmatprep.mubr.f32.mxu0 0.0
    %2515 = vmatmul.mubr.f32.gmra.mrb[0].mxu0 %v2375
    %v2516 = vpop.f32.mrb[0].mxu0
    %v2517 = vadd.f32 0.0, %v2516
    %v2518 = vpop.f32.mrb[0].mxu0
    %2519 = vmatprep.mubr.f32.mxu0 0.0
    %2520 = vmatmul.mubr.f32.gmra.mrb[0].mxu0 %v2378
    %v2521 = vpop.f32.mrb[0].mxu0
    %v2522 = vadd.f32 0.0, %v2521
    %v2523 = vpop.f32.mrb[0].mxu0
    %2524 = vdwg.mxu0
    %v2525 = vmul.f32 %v2447, 0.5
    %v2526 = vmul.f32 %v2452, 0.5
    %v2527 = vmul.f32 %v2457, 0.5
    %v2528 = vmul.f32 %v2462, 0.5
    %v2529 = vmul.f32 %v2467, 0.5
    %v2530 = vmul.f32 %v2472, 0.5
    %v2531 = vmul.f32 %v2477, 0.5
    %v2532 = vmul.f32 %v2482, 0.5
    %v2533 = vmul.f32 %v2487, 0.5
    %v2534 = vmul.f32 %v2492, 0.5
    %v2535 = vmul.f32 %v2497, 0.5
    %v2536 = vmul.f32 %v2502, 0.5
    %v2537 = vmul.f32 %v2507, 0.5
    %v2538 = vmul.f32 %v2512, 0.5
    %v2539 = vmul.f32 %v2517, 0.5
    %v2540 = vmul.f32 %v2522, 0.5
    %v2541 = vsel %vm846, %v2525, -inf
    %v2542 = vrot.slane %v2541, 4
    %v2543 = vmax.f32 %v2541, %v2542
    %v2544 = vrot.slane %v2543, 2
    %v2545 = vmax.f32 %v2543, %v2544
    %v2546 = vrot.slane %v2545, 1
    %v2547 = vmax.f32 %v2545, %v2546
    %v2548 = vsel %vm846, %v2526, -inf
    %v2549 = vrot.slane %v2548, 4
    %v2550 = vmax.f32 %v2548, %v2549
    %v2551 = vrot.slane %v2550, 2
    %v2552 = vmax.f32 %v2550, %v2551
    %v2553 = vrot.slane %v2552, 1
    %v2554 = vmax.f32 %v2552, %v2553
    %v2555 = vsel %vm846, %v2527, -inf
    %v2556 = vrot.slane %v2555, 4
    %v2557 = vmax.f32 %v2555, %v2556
    %v2558 = vrot.slane %v2557, 2
    %v2559 = vmax.f32 %v2557, %v2558
    %v2560 = vrot.slane %v2559, 1
    %v2561 = vmax.f32 %v2559, %v2560
    %v2562 = vsel %vm846, %v2528, -inf
    %v2563 = vrot.slane %v2562, 4
    %v2564 = vmax.f32 %v2562, %v2563
    %v2565 = vrot.slane %v2564, 2
    %v2566 = vmax.f32 %v2564, %v2565
    %v2567 = vrot.slane %v2566, 1
    %v2568 = vmax.f32 %v2566, %v2567
    %v2569 = vsel %vm846, %v2529, -inf
    %v2570 = vrot.slane %v2569, 4
    %v2571 = vmax.f32 %v2569, %v2570
    %v2572 = vrot.slane %v2571, 2
    %v2573 = vmax.f32 %v2571, %v2572
    %v2574 = vrot.slane %v2573, 1
    %v2575 = vmax.f32 %v2573, %v2574
    %v2576 = vsel %vm846, %v2530, -inf
    %v2577 = vrot.slane %v2576, 4
    %v2578 = vmax.f32 %v2576, %v2577
    %v2579 = vrot.slane %v2578, 2
    %v2580 = vmax.f32 %v2578, %v2579
    %v2581 = vrot.slane %v2580, 1
    %v2582 = vmax.f32 %v2580, %v2581
    %v2583 = vsel %vm846, %v2531, -inf
    %v2584 = vrot.slane %v2583, 4
    %v2585 = vmax.f32 %v2583, %v2584
    %v2586 = vrot.slane %v2585, 2
    %v2587 = vmax.f32 %v2585, %v2586
    %v2588 = vrot.slane %v2587, 1
    %v2589 = vmax.f32 %v2587, %v2588
    %v2590 = vsel %vm846, %v2532, -inf
    %v2591 = vrot.slane %v2590, 4
    %v2592 = vmax.f32 %v2590, %v2591
    %v2593 = vrot.slane %v2592, 2
    %v2594 = vmax.f32 %v2592, %v2593
    %v2595 = vrot.slane %v2594, 1
    %v2596 = vmax.f32 %v2594, %v2595
    %v2597 = vsel %vm846, %v2533, -inf
    %v2598 = vrot.slane %v2597, 4
    %v2599 = vmax.f32 %v2597, %v2598
    %v2600 = vrot.slane %v2599, 2
    %v2601 = vmax.f32 %v2599, %v2600
    %v2602 = vrot.slane %v2601, 1
    %v2603 = vmax.f32 %v2601, %v2602
    %v2604 = vsel %vm846, %v2534, -inf
    %v2605 = vrot.slane %v2604, 4
    %v2606 = vmax.f32 %v2604, %v2605
    %v2607 = vrot.slane %v2606, 2
    %v2608 = vmax.f32 %v2606, %v2607
    %v2609 = vrot.slane %v2608, 1
    %v2610 = vmax.f32 %v2608, %v2609
    %v2611 = vsel %vm846, %v2535, -inf
    %v2612 = vrot.slane %v2611, 4
    %v2613 = vmax.f32 %v2611, %v2612
    %v2614 = vrot.slane %v2613, 2
    %v2615 = vmax.f32 %v2613, %v2614
    %v2616 = vrot.slane %v2615, 1
    %v2617 = vmax.f32 %v2615, %v2616
    %v2618 = vsel %vm846, %v2536, -inf
    %v2619 = vrot.slane %v2618, 4
    %v2620 = vmax.f32 %v2618, %v2619
    %v2621 = vrot.slane %v2620, 2
    %v2622 = vmax.f32 %v2620, %v2621
    %v2623 = vrot.slane %v2622, 1
    %v2624 = vmax.f32 %v2622, %v2623
    %v2625 = vsel %vm846, %v2537, -inf
    %v2626 = vrot.slane %v2625, 4
    %v2627 = vmax.f32 %v2625, %v2626
    %v2628 = vrot.slane %v2627, 2
    %v2629 = vmax.f32 %v2627, %v2628
    %v2630 = vrot.slane %v2629, 1
    %v2631 = vmax.f32 %v2629, %v2630
    %v2632 = vsel %vm846, %v2538, -inf
    %v2633 = vrot.slane %v2632, 4
    %v2634 = vmax.f32 %v2632, %v2633
    %v2635 = vrot.slane %v2634, 2
    %v2636 = vmax.f32 %v2634, %v2635
    %v2637 = vrot.slane %v2636, 1
    %v2638 = vmax.f32 %v2636, %v2637
    %v2639 = vsel %vm846, %v2539, -inf
    %v2640 = vrot.slane %v2639, 4
    %v2641 = vmax.f32 %v2639, %v2640
    %v2642 = vrot.slane %v2641, 2
    %v2643 = vmax.f32 %v2641, %v2642
    %v2644 = vrot.slane %v2643, 1
    %v2645 = vmax.f32 %v2643, %v2644
    %v2646 = vsel %vm846, %v2540, -inf
    %v2647 = vrot.slane %v2646, 4
    %v2648 = vmax.f32 %v2646, %v2647
    %v2649 = vrot.slane %v2648, 2
    %v2650 = vmax.f32 %v2648, %v2649
    %v2651 = vrot.slane %v2650, 1
    %v2652 = vmax.f32 %v2650, %v2651
    %v2653 = vsub.f32 %v2525, %v2547
    %v2654 = vsub.f32 %v2526, %v2554
    %v2655 = vsub.f32 %v2527, %v2561
    %v2656 = vsub.f32 %v2528, %v2568
    %v2657 = vsub.f32 %v2529, %v2575
    %v2658 = vsub.f32 %v2530, %v2582
    %v2659 = vsub.f32 %v2531, %v2589
    %v2660 = vsub.f32 %v2532, %v2596
    %v2661 = vsub.f32 %v2533, %v2603
    %v2662 = vsub.f32 %v2534, %v2610
    %v2663 = vsub.f32 %v2535, %v2617
    %v2664 = vsub.f32 %v2536, %v2624
    %v2665 = vsub.f32 %v2537, %v2631
    %v2666 = vsub.f32 %v2538, %v2638
    %v2667 = vsub.f32 %v2539, %v2645
    %v2668 = vsub.f32 %v2540, %v2652
    %v2669 = vmul.f32 %v2653, 1.442695
    %v2670 = vpow.pop %v2669
    %v2671 = vmul.f32 %v2654, 1.442695
    %v2672 = vpow.pop %v2671
    %v2673 = vmul.f32 %v2655, 1.442695
    %v2674 = vpow.pop %v2673
    %v2675 = vmul.f32 %v2656, 1.442695
    %v2676 = vpow.pop %v2675
    %v2677 = vmul.f32 %v2657, 1.442695
    %v2678 = vpow.pop %v2677
    %v2679 = vmul.f32 %v2658, 1.442695
    %v2680 = vpow.pop %v2679
    %v2681 = vmul.f32 %v2659, 1.442695
    %v2682 = vpow.pop %v2681
    %v2683 = vmul.f32 %v2660, 1.442695
    %v2684 = vpow.pop %v2683
    %v2685 = vmul.f32 %v2661, 1.442695
    %v2686 = vpow.pop %v2685
    %v2687 = vmul.f32 %v2662, 1.442695
    %v2688 = vpow.pop %v2687
    %v2689 = vmul.f32 %v2663, 1.442695
    %v2690 = vpow.pop %v2689
    %v2691 = vmul.f32 %v2664, 1.442695
    %v2692 = vpow.pop %v2691
    %v2693 = vmul.f32 %v2665, 1.442695
    %v2694 = vpow.pop %v2693
    %v2695 = vmul.f32 %v2666, 1.442695
    %v2696 = vpow.pop %v2695
    %v2697 = vmul.f32 %v2667, 1.442695
    %v2698 = vpow.pop %v2697
    %v2699 = vmul.f32 %v2668, 1.442695
    %v2700 = vpow.pop %v2699
    %v2701 = vsel %vm846, %v2670, 0.0
    %v2702 = vrot.slane %v2701, 4
    %v2703 = vadd.f32 %v2701, %v2702
    %v2704 = vrot.slane %v2703, 2
    %v2705 = vadd.f32 %v2703, %v2704
    %v2706 = vrot.slane %v2705, 1
    %v2707 = vadd.f32 %v2705, %v2706
    %v2708 = vsel %vm846, %v2672, 0.0
    %v2709 = vrot.slane %v2708, 4
    %v2710 = vadd.f32 %v2708, %v2709
    %v2711 = vrot.slane %v2710, 2
    %v2712 = vadd.f32 %v2710, %v2711
    %v2713 = vrot.slane %v2712, 1
    %v2714 = vadd.f32 %v2712, %v2713
    %v2715 = vsel %vm846, %v2674, 0.0
    %v2716 = vrot.slane %v2715, 4
    %v2717 = vadd.f32 %v2715, %v2716
    %v2718 = vrot.slane %v2717, 2
    %v2719 = vadd.f32 %v2717, %v2718
    %v2720 = vrot.slane %v2719, 1
    %v2721 = vadd.f32 %v2719, %v2720
    %v2722 = vsel %vm846, %v2676, 0.0
    %v2723 = vrot.slane %v2722, 4
    %v2724 = vadd.f32 %v2722, %v2723
    %v2725 = vrot.slane %v2724, 2
    %v2726 = vadd.f32 %v2724, %v2725
    %v2727 = vrot.slane %v2726, 1
    %v2728 = vadd.f32 %v2726, %v2727
    %v2729 = vsel %vm846, %v2678, 0.0
    %v2730 = vrot.slane %v2729, 4
    %v2731 = vadd.f32 %v2729, %v2730
    %v2732 = vrot.slane %v2731, 2
    %v2733 = vadd.f32 %v2731, %v2732
    %v2734 = vrot.slane %v2733, 1
    %v2735 = vadd.f32 %v2733, %v2734
    %v2736 = vsel %vm846, %v2680, 0.0
    %v2737 = vrot.slane %v2736, 4
    %v2738 = vadd.f32 %v2736, %v2737
    %v2739 = vrot.slane %v2738, 2
    %v2740 = vadd.f32 %v2738, %v2739
    %v2741 = vrot.slane %v2740, 1
    %v2742 = vadd.f32 %v2740, %v2741
    %v2743 = vsel %vm846, %v2682, 0.0
    %v2744 = vrot.slane %v2743, 4
    %v2745 = vadd.f32 %v2743, %v2744
    %v2746 = vrot.slane %v2745, 2
    %v2747 = vadd.f32 %v2745, %v2746
    %v2748 = vrot.slane %v2747, 1
    %v2749 = vadd.f32 %v2747, %v2748
    %v2750 = vsel %vm846, %v2684, 0.0
    %v2751 = vrot.slane %v2750, 4
    %v2752 = vadd.f32 %v2750, %v2751
    %v2753 = vrot.slane %v2752, 2
    %v2754 = vadd.f32 %v2752, %v2753
    %v2755 = vrot.slane %v2754, 1
    %v2756 = vadd.f32 %v2754, %v2755
    %v2757 = vsel %vm846, %v2686, 0.0
    %v2758 = vrot.slane %v2757, 4
    %v2759 = vadd.f32 %v2757, %v2758
    %v2760 = vrot.slane %v2759, 2
    %v2761 = vadd.f32 %v2759, %v2760
    %v2762 = vrot.slane %v2761, 1
    %v2763 = vadd.f32 %v2761, %v2762
    %v2764 = vsel %vm846, %v2688, 0.0
    %v2765 = vrot.slane %v2764, 4
    %v2766 = vadd.f32 %v2764, %v2765
    %v2767 = vrot.slane %v2766, 2
    %v2768 = vadd.f32 %v2766, %v2767
    %v2769 = vrot.slane %v2768, 1
    %v2770 = vadd.f32 %v2768, %v2769
    %v2771 = vsel %vm846, %v2690, 0.0
    %v2772 = vrot.slane %v2771, 4
    %v2773 = vadd.f32 %v2771, %v2772
    %v2774 = vrot.slane %v2773, 2
    %v2775 = vadd.f32 %v2773, %v2774
    %v2776 = vrot.slane %v2775, 1
    %v2777 = vadd.f32 %v2775, %v2776
    %v2778 = vsel %vm846, %v2692, 0.0
    %v2779 = vrot.slane %v2778, 4
    %v2780 = vadd.f32 %v2778, %v2779
    %v2781 = vrot.slane %v2780, 2
    %v2782 = vadd.f32 %v2780, %v2781
    %v2783 = vrot.slane %v2782, 1
    %v2784 = vadd.f32 %v2782, %v2783
    %v2785 = vsel %vm846, %v2694, 0.0
    %v2786 = vrot.slane %v2785, 4
    %v2787 = vadd.f32 %v2785, %v2786
    %v2788 = vrot.slane %v2787, 2
    %v2789 = vadd.f32 %v2787, %v2788
    %v2790 = vrot.slane %v2789, 1
    %v2791 = vadd.f32 %v2789, %v2790
    %v2792 = vsel %vm846, %v2696, 0.0
    %v2793 = vrot.slane %v2792, 4
    %v2794 = vadd.f32 %v2792, %v2793
    %v2795 = vrot.slane %v2794, 2
    %v2796 = vadd.f32 %v2794, %v2795
    %v2797 = vrot.slane %v2796, 1
    %v2798 = vadd.f32 %v2796, %v2797
    %v2799 = vsel %vm846, %v2698, 0.0
    %v2800 = vrot.slane %v2799, 4
    %v2801 = vadd.f32 %v2799, %v2800
    %v2802 = vrot.slane %v2801, 2
    %v2803 = vadd.f32 %v2801, %v2802
    %v2804 = vrot.slane %v2803, 1
    %v2805 = vadd.f32 %v2803, %v2804
    %v2806 = vsel %vm846, %v2700, 0.0
    %v2807 = vrot.slane %v2806, 4
    %v2808 = vadd.f32 %v2806, %v2807
    %v2809 = vrot.slane %v2808, 2
    %v2810 = vadd.f32 %v2808, %v2809
    %v2811 = vrot.slane %v2810, 1
    %v2812 = vadd.f32 %v2810, %v2811
    %v2813 = vrcp.pop %v2707
    %v2814 = vrcp.pop %v2714
    %v2815 = vrcp.pop %v2721
    %v2816 = vrcp.pop %v2728
    %v2817 = vrcp.pop %v2735
    %v2818 = vrcp.pop %v2742
    %v2819 = vrcp.pop %v2749
    %v2820 = vrcp.pop %v2756
    %v2821 = vrcp.pop %v2763
    %v2822 = vrcp.pop %v2770
    %v2823 = vrcp.pop %v2777
    %v2824 = vrcp.pop %v2784
    %v2825 = vrcp.pop %v2791
    %v2826 = vrcp.pop %v2798
    %v2827 = vrcp.pop %v2805
    %v2828 = vrcp.pop %v2812
    %v2829 = vmul.f32 %v2670, %v2813
    %v2830 = vmul.f32 %v2672, %v2814
    %v2831 = vmul.f32 %v2674, %v2815
    %v2832 = vmul.f32 %v2676, %v2816
    %v2833 = vmul.f32 %v2678, %v2817
    %v2834 = vmul.f32 %v2680, %v2818
    %v2835 = vmul.f32 %v2682, %v2819
    %v2836 = vmul.f32 %v2684, %v2820
    %v2837 = vmul.f32 %v2686, %v2821
    %v2838 = vmul.f32 %v2688, %v2822
    %v2839 = vmul.f32 %v2690, %v2823
    %v2840 = vmul.f32 %v2692, %v2824
    %v2841 = vmul.f32 %v2694, %v2825
    %v2842 = vmul.f32 %v2696, %v2826
    %v2843 = vmul.f32 %v2698, %v2827
    %v2844 = vmul.f32 %v2700, %v2828
    %v2846 = vsel %vm846, %v2829, 0
    %v2849 = vsel %vm846, %v2830, 0
    %v2852 = vsel %vm846, %v2831, 0
    %v2855 = vsel %vm846, %v2832, 0
    %v2858 = vsel %vm846, %v2833, 0
    %v2861 = vsel %vm846, %v2834, 0
    %v2864 = vsel %vm846, %v2835, 0
    %v2867 = vsel %vm846, %v2836, 0
    %v2870 = vsel %vm846, %v2837, 0
    %v2873 = vsel %vm846, %v2838, 0
    %v2876 = vsel %vm846, %v2839, 0
    %v2879 = vsel %vm846, %v2840, 0
    %v2882 = vsel %vm846, %v2841, 0
    %v2885 = vsel %vm846, %v2842, 0
    %v2888 = vsel %vm846, %v2843, 0
    %v2891 = vsel %vm846, %v2844, 0
    %2893 = vmatprep.subr.mxu0 0.0
    %2894 = vmatpush1.msra.mxu0 %v103
    %2895 = vmatprep.subr.mxu0 0.0
    %2896 = vmatpush1.msra.mxu0 0.0
    %2897 = vmatprep.subr.mxu0 0.0
    %2898 = vmatpush1.msra.mxu0 0.0
    %2899 = vmatprep.subr.mxu0 0.0
    %2900 = vmatpush1.msra.mxu0 0.0
    %2901 = vmatprep.subr.mxu0 0.0
    %2902 = vmatpush1.msra.mxu0 0.0
    %2903 = vmatprep.subr.mxu0 0.0
    %2904 = vmatpush1.msra.mxu0 0.0
    %2905 = vmatprep.subr.mxu0 0.0
    %2906 = vmatpush1.msra.mxu0 0.0
    %2907 = vmatprep.subr.mxu0 0.0
    %2908 = vmatpush1.msra.mxu0 0.0
    %2909 = vmatprep.subr.mxu0 0.0
    %2910 = vmatpush1.msra.mxu0 0.0
    %2911 = vmatprep.subr.mxu0 0.0
    %2912 = vmatpush1.msra.mxu0 0.0
    %2913 = vmatprep.subr.mxu0 0.0
    %2914 = vmatpush1.msra.mxu0 0.0
    %2915 = vmatprep.subr.mxu0 0.0
    %2916 = vmatpush1.msra.mxu0 0.0
    %2917 = vmatprep.subr.mxu0 0.0
    %2918 = vmatpush1.msra.mxu0 0.0
    %2919 = vmatprep.subr.mxu0 0.0
    %2920 = vmatpush1.msra.mxu0 0.0
    %2921 = vmatprep.subr.mxu0 0.0
    %2922 = vmatpush1.msra.mxu0 0.0
    %2923 = vmatprep.subr.mxu0 0.0
    %2924 = vmatpush1.msra.mxu0 0.0
    %2925 = vmatprep.subr.mxu0 0.0
    %2926 = vmatpush1.msra.mxu0 0.0
    %2927 = vmatprep.subr.mxu0 0.0
    %2928 = vmatpush1.msra.mxu0 0.0
    %2929 = vmatprep.subr.mxu0 0.0
    %2930 = vmatpush1.msra.mxu0 0.0
    %2931 = vmatprep.subr.mxu0 0.0
    %2932 = vmatpush1.msra.mxu0 0.0
    %2933 = vmatprep.subr.mxu0 0.0
    %2934 = vmatpush1.msra.mxu0 0.0
    %2935 = vmatprep.subr.mxu0 0.0
    %2936 = vmatpush1.msra.mxu0 0.0
    %2937 = vmatprep.subr.mxu0 0.0
    %2938 = vmatpush1.msra.mxu0 0.0
    %2939 = vmatprep.subr.mxu0 0.0
    %2940 = vmatpush1.msra.mxu0 0.0
    %2941 = vmatprep.subr.mxu0 0.0
    %2942 = vmatpush1.msra.mxu0 0.0
    %2943 = vmatprep.subr.mxu0 0.0
    %2944 = vmatpush1.msra.mxu0 0.0
    %2945 = vmatprep.subr.mxu0 0.0
    %2946 = vmatpush1.msra.mxu0 0.0
    %2947 = vmatprep.subr.mxu0 0.0
    %2948 = vmatpush1.msra.mxu0 0.0
    %2949 = vmatprep.subr.mxu0 0.0
    %2950 = vmatpush1.msra.mxu0 0.0
    %2951 = vmatprep.subr.mxu0 0.0
    %2952 = vmatpush1.msra.mxu0 0.0
    %2953 = vmatprep.subr.mxu0 0.0
    %2954 = vmatpush1.msra.mxu0 0.0
    %2955 = vmatprep.subr.mxu0 0.0
    %2956 = vmatpush1.msra.mxu0 0.0
    %2957 = vmatprep.mubr.f32.mxu0 0.0
    %2958 = vmatmul.mubr.f32.gmra.mrb[0].mxu0 %v2846
    %v2959 = vpop.f32.mrb[0].mxu0
    %v2960 = vadd.f32 0.0, %v2959
    %v2961 = vpop.f32.mrb[0].mxu0
    %2962 = vmatprep.mubr.f32.mxu0 0.0
    %2963 = vmatmul.mubr.f32.gmra.mrb[0].mxu0 %v2849
    %v2964 = vpop.f32.mrb[0].mxu0
    %v2965 = vadd.f32 0.0, %v2964
    %v2966 = vpop.f32.mrb[0].mxu0
    %2967 = vmatprep.mubr.f32.mxu0 0.0
    %2968 = vmatmul.mubr.f32.gmra.mrb[0].mxu0 %v2852
    %v2969 = vpop.f32.mrb[0].mxu0
    %v2970 = vadd.f32 0.0, %v2969
    %v2971 = vpop.f32.mrb[0].mxu0
    %2972 = vmatprep.mubr.f32.mxu0 0.0
    %2973 = vmatmul.mubr.f32.gmra.mrb[0].mxu0 %v2855
    %v2974 = vpop.f32.mrb[0].mxu0
    %v2975 = vadd.f32 0.0, %v2974
    %v2976 = vpop.f32.mrb[0].mxu0
    %2977 = vmatprep.mubr.f32.mxu0 0.0
    %2978 = vmatmul.mubr.f32.gmra.mrb[0].mxu0 %v2858
    %v2979 = vpop.f32.mrb[0].mxu0
    %v2980 = vadd.f32 0.0, %v2979
    %v2981 = vpop.f32.mrb[0].mxu0
    %2982 = vmatprep.mubr.f32.mxu0 0.0
    %2983 = vmatmul.mubr.f32.gmra.mrb[0].mxu0 %v2861
    %v2984 = vpop.f32.mrb[0].mxu0
    %v2985 = vadd.f32 0.0, %v2984
    %v2986 = vpop.f32.mrb[0].mxu0
    %2987 = vmatprep.mubr.f32.mxu0 0.0
    %2988 = vmatmul.mubr.f32.gmra.mrb[0].mxu0 %v2864
    %v2989 = vpop.f32.mrb[0].mxu0
    %v2990 = vadd.f32 0.0, %v2989
    %v2991 = vpop.f32.mrb[0].mxu0
    %2992 = vmatprep.mubr.f32.mxu0 0.0
    %2993 = vmatmul.mubr.f32.gmra.mrb[0].mxu0 %v2867
    %v2994 = vpop.f32.mrb[0].mxu0
    %v2995 = vadd.f32 0.0, %v2994
    %v2996 = vpop.f32.mrb[0].mxu0
    %2997 = vmatprep.mubr.f32.mxu0 0.0
    %2998 = vmatmul.mubr.f32.gmra.mrb[0].mxu0 %v2870
    %v2999 = vpop.f32.mrb[0].mxu0
    %v3000 = vadd.f32 0.0, %v2999
    %v3001 = vpop.f32.mrb[0].mxu0
    %3002 = vmatprep.mubr.f32.mxu0 0.0
    %3003 = vmatmul.mubr.f32.gmra.mrb[0].mxu0 %v2873
    %v3004 = vpop.f32.mrb[0].mxu0
    %v3005 = vadd.f32 0.0, %v3004
    %v3006 = vpop.f32.mrb[0].mxu0
    %3007 = vmatprep.mubr.f32.mxu0 0.0
    %3008 = vmatmul.mubr.f32.gmra.mrb[0].mxu0 %v2876
    %v3009 = vpop.f32.mrb[0].mxu0
    %v3010 = vadd.f32 0.0, %v3009
    %v3011 = vpop.f32.mrb[0].mxu0
    %3012 = vmatprep.mubr.f32.mxu0 0.0
    %3013 = vmatmul.mubr.f32.gmra.mrb[0].mxu0 %v2879
    %v3014 = vpop.f32.mrb[0].mxu0
    %v3015 = vadd.f32 0.0, %v3014
    %v3016 = vpop.f32.mrb[0].mxu0
    %3017 = vmatprep.mubr.f32.mxu0 0.0
    %3018 = vmatmul.mubr.f32.gmra.mrb[0].mxu0 %v2882
    %v3019 = vpop.f32.mrb[0].mxu0
    %v3020 = vadd.f32 0.0, %v3019
    %v3021 = vpop.f32.mrb[0].mxu0
    %3022 = vmatprep.mubr.f32.mxu0 0.0
    %3023 = vmatmul.mubr.f32.gmra.mrb[0].mxu0 %v2885
    %v3024 = vpop.f32.mrb[0].mxu0
    %v3025 = vadd.f32 0.0, %v3024
    %v3026 = vpop.f32.mrb[0].mxu0
    %3027 = vmatprep.mubr.f32.mxu0 0.0
    %3028 = vmatmul.mubr.f32.gmra.mrb[0].mxu0 %v2888
    %v3029 = vpop.f32.mrb[0].mxu0
    %v3030 = vadd.f32 0.0, %v3029
    %v3031 = vpop.f32.mrb[0].mxu0
    %3032 = vmatprep.mubr.f32.mxu0 0.0
    %3033 = vmatmul.mubr.f32.gmra.mrb[0].mxu0 %v2891
    %v3034 = vpop.f32.mrb[0].mxu0
    %v3035 = vadd.f32 0.0, %v3034
    %v3036 = vpop.f32.mrb[0].mxu0
    %3037 = vdwg.mxu0
    %v3038 = vmul.f32 %v2960, %v2128
    %v3039 = vmul.f32 %v2965, %v2128
    %v3040 = vmul.f32 %v2970, %v2128
    %v3041 = vmul.f32 %v2975, %v2128
    %v3042 = vmul.f32 %v2980, %v2128
    %v3043 = vmul.f32 %v2985, %v2128
    %v3044 = vmul.f32 %v2990, %v2128
    %v3045 = vmul.f32 %v2995, %v2128
    %v3046 = vmul.f32 %v3000, %v2133
    %v3047 = vmul.f32 %v3005, %v2133
    %v3048 = vmul.f32 %v3010, %v2133
    %v3049 = vmul.f32 %v3015, %v2133
    %v3050 = vmul.f32 %v3020, %v2133
    %v3051 = vmul.f32 %v3025, %v2133
    %v3052 = vmul.f32 %v3030, %v2133
    %v3053 = vmul.f32 %v3035, %v2133
    %v3054 = vsel %vm201, %v3038, 0.0
    %v3055 = vrot.slane %v3054, 4
    %v3056 = vadd.f32 %v3054, %v3055
    %v3057 = vrot.slane %v3056, 2
    %v3058 = vadd.f32 %v3056, %v3057
    %v3059 = vrot.slane %v3058, 1
    %v3060 = vadd.f32 %v3058, %v3059
    %v3061 = vsel %vm201, %v3039, 0.0
    %v3062 = vrot.slane %v3061, 4
    %v3063 = vadd.f32 %v3061, %v3062
    %v3064 = vrot.slane %v3063, 2
    %v3065 = vadd.f32 %v3063, %v3064
    %v3066 = vrot.slane %v3065, 1
    %v3067 = vadd.f32 %v3065, %v3066
    %v3068 = vsel %vm201, %v3040, 0.0
    %v3069 = vrot.slane %v3068, 4
    %v3070 = vadd.f32 %v3068, %v3069
    %v3071 = vrot.slane %v3070, 2
    %v3072 = vadd.f32 %v3070, %v3071
    %v3073 = vrot.slane %v3072, 1
    %v3074 = vadd.f32 %v3072, %v3073
    %v3075 = vsel %vm201, %v3041, 0.0
    %v3076 = vrot.slane %v3075, 4
    %v3077 = vadd.f32 %v3075, %v3076
    %v3078 = vrot.slane %v3077, 2
    %v3079 = vadd.f32 %v3077, %v3078
    %v3080 = vrot.slane %v3079, 1
    %v3081 = vadd.f32 %v3079, %v3080
    %v3082 = vsel %vm201, %v3042, 0.0
    %v3083 = vrot.slane %v3082, 4
    %v3084 = vadd.f32 %v3082, %v3083
    %v3085 = vrot.slane %v3084, 2
    %v3086 = vadd.f32 %v3084, %v3085
    %v3087 = vrot.slane %v3086, 1
    %v3088 = vadd.f32 %v3086, %v3087
    %v3089 = vsel %vm201, %v3043, 0.0
    %v3090 = vrot.slane %v3089, 4
    %v3091 = vadd.f32 %v3089, %v3090
    %v3092 = vrot.slane %v3091, 2
    %v3093 = vadd.f32 %v3091, %v3092
    %v3094 = vrot.slane %v3093, 1
    %v3095 = vadd.f32 %v3093, %v3094
    %v3096 = vsel %vm201, %v3044, 0.0
    %v3097 = vrot.slane %v3096, 4
    %v3098 = vadd.f32 %v3096, %v3097
    %v3099 = vrot.slane %v3098, 2
    %v3100 = vadd.f32 %v3098, %v3099
    %v3101 = vrot.slane %v3100, 1
    %v3102 = vadd.f32 %v3100, %v3101
    %v3103 = vsel %vm201, %v3045, 0.0
    %v3104 = vrot.slane %v3103, 4
    %v3105 = vadd.f32 %v3103, %v3104
    %v3106 = vrot.slane %v3105, 2
    %v3107 = vadd.f32 %v3105, %v3106
    %v3108 = vrot.slane %v3107, 1
    %v3109 = vadd.f32 %v3107, %v3108
    %v3110 = vsel %vm201, %v3046, 0.0
    %v3111 = vrot.slane %v3110, 4
    %v3112 = vadd.f32 %v3110, %v3111
    %v3113 = vrot.slane %v3112, 2
    %v3114 = vadd.f32 %v3112, %v3113
    %v3115 = vrot.slane %v3114, 1
    %v3116 = vadd.f32 %v3114, %v3115
    %v3117 = vsel %vm201, %v3047, 0.0
    %v3118 = vrot.slane %v3117, 4
    %v3119 = vadd.f32 %v3117, %v3118
    %v3120 = vrot.slane %v3119, 2
    %v3121 = vadd.f32 %v3119, %v3120
    %v3122 = vrot.slane %v3121, 1
    %v3123 = vadd.f32 %v3121, %v3122
    %v3124 = vsel %vm201, %v3048, 0.0
    %v3125 = vrot.slane %v3124, 4
    %v3126 = vadd.f32 %v3124, %v3125
    %v3127 = vrot.slane %v3126, 2
    %v3128 = vadd.f32 %v3126, %v3127
    %v3129 = vrot.slane %v3128, 1
    %v3130 = vadd.f32 %v3128, %v3129
    %v3131 = vsel %vm201, %v3049, 0.0
    %v3132 = vrot.slane %v3131, 4
    %v3133 = vadd.f32 %v3131, %v3132
    %v3134 = vrot.slane %v3133, 2
    %v3135 = vadd.f32 %v3133, %v3134
    %v3136 = vrot.slane %v3135, 1
    %v3137 = vadd.f32 %v3135, %v3136
    %v3138 = vsel %vm201, %v3050, 0.0
    %v3139 = vrot.slane %v3138, 4
    %v3140 = vadd.f32 %v3138, %v3139
    %v3141 = vrot.slane %v3140, 2
    %v3142 = vadd.f32 %v3140, %v3141
    %v3143 = vrot.slane %v3142, 1
    %v3144 = vadd.f32 %v3142, %v3143
    %v3145 = vsel %vm201, %v3051, 0.0
    %v3146 = vrot.slane %v3145, 4
    %v3147 = vadd.f32 %v3145, %v3146
    %v3148 = vrot.slane %v3147, 2
    %v3149 = vadd.f32 %v3147, %v3148
    %v3150 = vrot.slane %v3149, 1
    %v3151 = vadd.f32 %v3149, %v3150
    %v3152 = vsel %vm201, %v3052, 0.0
    %v3153 = vrot.slane %v3152, 4
    %v3154 = vadd.f32 %v3152, %v3153
    %v3155 = vrot.slane %v3154, 2
    %v3156 = vadd.f32 %v3154, %v3155
    %v3157 = vrot.slane %v3156, 1
    %v3158 = vadd.f32 %v3156, %v3157
    %v3159 = vsel %vm201, %v3053, 0.0
    %v3160 = vrot.slane %v3159, 4
    %v3161 = vadd.f32 %v3159, %v3160
    %v3162 = vrot.slane %v3161, 2
    %v3163 = vadd.f32 %v3161, %v3162
    %v3164 = vrot.slane %v3163, 1
    %v3165 = vadd.f32 %v3163, %v3164
    %s3166 = scalar_lea.vmem %s8, 32
    %v3167 = vld [vmem:[%s3166] sm:$0xff]
    %v3168 = vld [vmem:[%s3166 + $0x8] sm:$0xff]
    %v3169 = vld [vmem:[%s3166 + $0x10] sm:$0xff]
    %v3170 = vld [vmem:[%s3166 + $0x18] sm:$0xff]
    %v3187 = vsel %vm1492, %v3067, %v3060
    %v3188 = vsel %vm1494, %v3074, %v3187
    %v3189 = vsel %vm1496, %v3081, %v3188
    %v3190 = vsel %vm1498, %v3088, %v3189
    %v3191 = vsel %vm1500, %v3095, %v3190
    %v3192 = vsel %vm1502, %v3102, %v3191
    %v3193 = vsel %vm1504, %v3109, %v3192
    %v3194 = vsel %vm1492, %v3123, %v3116
    %v3195 = vsel %vm1494, %v3130, %v3194
    %v3196 = vsel %vm1496, %v3137, %v3195
    %v3197 = vsel %vm1498, %v3144, %v3196
    %v3198 = vsel %vm1500, %v3151, %v3197
    %v3199 = vsel %vm1502, %v3158, %v3198
    %v3200 = vsel %vm1504, %v3165, %v3199
    %v3201 = vsel %vm201, %v3193, 0
    %v3203 = vsel %vm201, %v3200, 0
    %3205 = vmatprep.subr.mxu0 0.0
    %3206 = vmatpush1.msra.mxu0 %v3167
    %3207 = vmatprep.subr.mxu0 0.0
    %3208 = vmatpush1.msra.mxu0 %v3168
    %3209 = vmatprep.subr.mxu0 0.0
    %3210 = vmatpush1.msra.mxu0 %v3169
    %3211 = vmatprep.subr.mxu0 0.0
    %3212 = vmatpush1.msra.mxu0 %v3170
    %3213 = vmatprep.subr.mxu0 0.0
    %3214 = vmatpush1.msra.mxu0 0.0
    %3215 = vmatprep.subr.mxu0 0.0
    %3216 = vmatpush1.msra.mxu0 0.0
    %3217 = vmatprep.subr.mxu0 0.0
    %3218 = vmatpush1.msra.mxu0 0.0
    %3219 = vmatprep.subr.mxu0 0.0
    %3220 = vmatpush1.msra.mxu0 0.0
    %3221 = vmatprep.subr.mxu0 0.0
    %3222 = vmatpush1.msra.mxu0 0.0
    %3223 = vmatprep.subr.mxu0 0.0
    %3224 = vmatpush1.msra.mxu0 0.0
    %3225 = vmatprep.subr.mxu0 0.0
    %3226 = vmatpush1.msra.mxu0 0.0
    %3227 = vmatprep.subr.mxu0 0.0
    %3228 = vmatpush1.msra.mxu0 0.0
    %3229 = vmatprep.subr.mxu0 0.0
    %3230 = vmatpush1.msra.mxu0 0.0
    %3231 = vmatprep.subr.mxu0 0.0
    %3232 = vmatpush1.msra.mxu0 0.0
    %3233 = vmatprep.subr.mxu0 0.0
    %3234 = vmatpush1.msra.mxu0 0.0
    %3235 = vmatprep.subr.mxu0 0.0
    %3236 = vmatpush1.msra.mxu0 0.0
    %3237 = vmatprep.subr.mxu0 0.0
    %3238 = vmatpush1.msra.mxu0 0.0
    %3239 = vmatprep.subr.mxu0 0.0
    %3240 = vmatpush1.msra.mxu0 0.0
    %3241 = vmatprep.subr.mxu0 0.0
    %3242 = vmatpush1.msra.mxu0 0.0
    %3243 = vmatprep.subr.mxu0 0.0
    %3244 = vmatpush1.msra.mxu0 0.0
    %3245 = vmatprep.subr.mxu0 0.0
    %3246 = vmatpush1.msra.mxu0 0.0
    %3247 = vmatprep.subr.mxu0 0.0
    %3248 = vmatpush1.msra.mxu0 0.0
    %3249 = vmatprep.subr.mxu0 0.0
    %3250 = vmatpush1.msra.mxu0 0.0
    %3251 = vmatprep.subr.mxu0 0.0
    %3252 = vmatpush1.msra.mxu0 0.0
    %3253 = vmatprep.subr.mxu0 0.0
    %3254 = vmatpush1.msra.mxu0 0.0
    %3255 = vmatprep.subr.mxu0 0.0
    %3256 = vmatpush1.msra.mxu0 0.0
    %3257 = vmatprep.subr.mxu0 0.0
    %3258 = vmatpush1.msra.mxu0 0.0
    %3259 = vmatprep.subr.mxu0 0.0
    %3260 = vmatpush1.msra.mxu0 0.0
    %3261 = vmatprep.subr.mxu0 0.0
    %3262 = vmatpush1.msra.mxu0 0.0
    %3263 = vmatprep.subr.mxu0 0.0
    %3264 = vmatpush1.msra.mxu0 0.0
    %3265 = vmatprep.subr.mxu0 0.0
    %3266 = vmatpush1.msra.mxu0 0.0
    %3267 = vmatprep.subr.mxu0 0.0
    %3268 = vmatpush1.msra.mxu0 0.0
    %3269 = vmatprep.mubr.f32.mxu0 0.0
    %3270 = vmatmul.mubr.f32.gmra.mrb[0].mxu0 %v3201
    %v3271 = vpop.f32.mrb[0].mxu0
    %v3272 = vadd.f32 0.0, %v3271
    %v3273 = vpop.f32.mrb[0].mxu0
    %3274 = vmatprep.mubr.f32.mxu0 0.0
    %3275 = vmatmul.mubr.f32.gmra.mrb[0].mxu0 %v3203
    %v3276 = vpop.f32.mrb[0].mxu0
    %v3277 = vadd.f32 0.0, %v3276
    %v3278 = vpop.f32.mrb[0].mxu0
    %3279 = vdwg.mxu0
    %v3280 = vadd.f32 %v1888, %v3272
    %v3281 = vadd.f32 %v1889, %v3277
    %s3282 = scalar_lea.vmem %s9, 1
    %v3283 = vld [vmem:[%s3282] sm:$0x1]
    %v3285 = vlaneseq
    %v3286 = vshrl.u32 %v3285, 7
    %v3287 = vsub.s32 0, %v3286
    %v3288 = vrot.slane %v3283, %v3287
    %v3290 = vadd.f32 %v3280, %v3288
    %v3291 = vadd.f32 %v3281, %v3288
    %s3292 = scalar_lea.vmem %s14, 1
    %v3293 = vld [vmem:[%s3292] sm:$0x1]
    %s3294 = scalar_lea.vmem %s15, 1
    %v3295 = vld [vmem:[%s3294] sm:$0x1]
    %v3296 = vsel %vm201, %v3290, 0.0
    %v3297 = vsel %vm201, %v3291, 0.0
    %v3298 = vadd.f32 %v3296, %v3297
    %v3299 = vrot.slane %v3298, 4
    %v3300 = vadd.f32 %v3298, %v3299
    %v3301 = vrot.slane %v3300, 2
    %v3302 = vadd.f32 %v3300, %v3301
    %v3303 = vrot.slane %v3302, 1
    %v3304 = vadd.f32 %v3302, %v3303
    %v3305 = vmul.f32 %v3304, %v1614
    %v3306 = vsub.f32 %v3290, %v3305
    %v3307 = vsub.f32 %v3291, %v3305
    %v3308 = vmul.f32 %v3306, %v3306
    %v3309 = vmul.f32 %v3307, %v3307
    %v3310 = vsel %vm201, %v3308, 0.0
    %v3311 = vsel %vm201, %v3309, 0.0
    %v3312 = vadd.f32 %v3310, %v3311
    %v3313 = vrot.slane %v3312, 4
    %v3314 = vadd.f32 %v3312, %v3313
    %v3315 = vrot.slane %v3314, 2
    %v3316 = vadd.f32 %v3314, %v3315
    %v3317 = vrot.slane %v3316, 1
    %v3318 = vadd.f32 %v3316, %v3317
    %v3319 = vmul.f32 %v3318, %v1614
    %v3320 = vadd.f32 %v3319, 1e-05
    %v3321 = vrsqrt.pop %v3320
    %v3322 = vmul.f32 %v3306, %v3321
    %v3323 = vmul.f32 %v3307, %v3321
    %v3325 = vlaneseq
    %v3326 = vshrl.u32 %v3325, 7
    %v3327 = vsub.s32 0, %v3326
    %v3328 = vrot.slane %v3293, %v3327
    %v3330 = vmul.f32 %v3322, %v3328
    %v3331 = vmul.f32 %v3323, %v3328
    %v3333 = vlaneseq
    %v3334 = vshrl.u32 %v3333, 7
    %v3335 = vsub.s32 0, %v3334
    %v3336 = vrot.slane %v3295, %v3335
    %v3338 = vadd.f32 %v3330, %v3336
    %v3339 = vadd.f32 %v3331, %v3336
    %s3340 = scalar_lea.vmem %s10, 32
    %v3341 = vld [vmem:[%s3340] sm:$0xff]
    %v3342 = vld [vmem:[%s3340 + $0x8] sm:$0xff]
    %v3343 = vld [vmem:[%s3340 + $0x10] sm:$0xff]
    %v3344 = vld [vmem:[%s3340 + $0x18] sm:$0xff]
    %s3345 = scalar_lea.vmem %s11, 1
    %v3346 = vld [vmem:[%s3345] sm:$0x1]
    %v3348 = vlaneseq
    %v3349 = vshrl.u32 %v3348, 7
    %v3350 = vsub.s32 0, %v3349
    %v3351 = vrot.slane %v3346, %v3350
    %v3354 = vsel %vm201, %v3338, 0
    %v3357 = vsel %vm201, %v3339, 0
    %3359 = vmatprep.subr.mxu0 0.0
    %3360 = vmatpush1.msra.mxu0 %v3341
    %3361 = vmatprep.subr.mxu0 0.0
    %3362 = vmatpush1.msra.mxu0 %v3342
    %3363 = vmatprep.subr.mxu0 0.0
    %3364 = vmatpush1.msra.mxu0 %v3343
    %3365 = vmatprep.subr.mxu0 0.0
    %3366 = vmatpush1.msra.mxu0 %v3344
    %3367 = vmatprep.subr.mxu0 0.0
    %3368 = vmatpush1.msra.mxu0 0.0
    %3369 = vmatprep.subr.mxu0 0.0
    %3370 = vmatpush1.msra.mxu0 0.0
    %3371 = vmatprep.subr.mxu0 0.0
    %3372 = vmatpush1.msra.mxu0 0.0
    %3373 = vmatprep.subr.mxu0 0.0
    %3374 = vmatpush1.msra.mxu0 0.0
    %3375 = vmatprep.subr.mxu0 0.0
    %3376 = vmatpush1.msra.mxu0 0.0
    %3377 = vmatprep.subr.mxu0 0.0
    %3378 = vmatpush1.msra.mxu0 0.0
    %3379 = vmatprep.subr.mxu0 0.0
    %3380 = vmatpush1.msra.mxu0 0.0
    %3381 = vmatprep.subr.mxu0 0.0
    %3382 = vmatpush1.msra.mxu0 0.0
    %3383 = vmatprep.subr.mxu0 0.0
    %3384 = vmatpush1.msra.mxu0 0.0
    %3385 = vmatprep.subr.mxu0 0.0
    %3386 = vmatpush1.msra.mxu0 0.0
    %3387 = vmatprep.subr.mxu0 0.0
    %3388 = vmatpush1.msra.mxu0 0.0
    %3389 = vmatprep.subr.mxu0 0.0
    %3390 = vmatpush1.msra.mxu0 0.0
    %3391 = vmatprep.subr.mxu0 0.0
    %3392 = vmatpush1.msra.mxu0 0.0
    %3393 = vmatprep.subr.mxu0 0.0
    %3394 = vmatpush1.msra.mxu0 0.0
    %3395 = vmatprep.subr.mxu0 0.0
    %3396 = vmatpush1.msra.mxu0 0.0
    %3397 = vmatprep.subr.mxu0 0.0
    %3398 = vmatpush1.msra.mxu0 0.0
    %3399 = vmatprep.subr.mxu0 0.0
    %3400 = vmatpush1.msra.mxu0 0.0
    %3401 = vmatprep.subr.mxu0 0.0
    %3402 = vmatpush1.msra.mxu0 0.0
    %3403 = vmatprep.subr.mxu0 0.0
    %3404 = vmatpush1.msra.mxu0 0.0
    %3405 = vmatprep.subr.mxu0 0.0
    %3406 = vmatpush1.msra.mxu0 0.0
    %3407 = vmatprep.subr.mxu0 0.0
    %3408 = vmatpush1.msra.mxu0 0.0
    %3409 = vmatprep.subr.mxu0 0.0
    %3410 = vmatpush1.msra.mxu0 0.0
    %3411 = vmatprep.subr.mxu0 0.0
    %3412 = vmatpush1.msra.mxu0 0.0
    %3413 = vmatprep.subr.mxu0 0.0
    %3414 = vmatpush1.msra.mxu0 0.0
    %3415 = vmatprep.subr.mxu0 0.0
    %3416 = vmatpush1.msra.mxu0 0.0
    %3417 = vmatprep.subr.mxu0 0.0
    %3418 = vmatpush1.msra.mxu0 0.0
    %3419 = vmatprep.subr.mxu0 0.0
    %3420 = vmatpush1.msra.mxu0 0.0
    %3421 = vmatprep.subr.mxu0 0.0
    %3422 = vmatpush1.msra.mxu0 0.0
    %3423 = vmatprep.mubr.f32.mxu0 0.0
    %3424 = vmatmul.mubr.f32.gmra.mrb[0].mxu0 %v3354
    %v3425 = vpop.f32.mrb[0].mxu0
    %v3426 = vadd.f32 %v3351, %v3425
    %v3427 = vpop.f32.mrb[0].mxu0
    %3428 = vmatprep.mubr.f32.mxu0 0.0
    %3429 = vmatmul.mubr.f32.gmra.mrb[0].mxu0 %v3357
    %v3430 = vpop.f32.mrb[0].mxu0
    %v3431 = vadd.f32 %v3351, %v3430
    %v3432 = vpop.f32.mrb[0].mxu0
    %3433 = vdwg.mxu0
    %v3434 = vmax.f32 %v3426, 0.0
    %v3435 = vmax.f32 %v3431, 0.0
    %s3436 = scalar_lea.vmem %s12, 128
    %v3437 = vld [vmem:[%s3436] sm:$0xff]
    %v3438 = vld [vmem:[%s3436 + $0x8] sm:$0xff]
    %v3439 = vld [vmem:[%s3436 + $0x10] sm:$0xff]
    %v3440 = vld [vmem:[%s3436 + $0x18] sm:$0xff]
    %v3441 = vld [vmem:[%s3436 + $0x20] sm:$0xff]
    %v3442 = vld [vmem:[%s3436 + $0x28] sm:$0xff]
    %v3443 = vld [vmem:[%s3436 + $0x30] sm:$0xff]
    %v3444 = vld [vmem:[%s3436 + $0x38] sm:$0xff]
    %v3445 = vld [vmem:[%s3436 + $0x40] sm:$0xff]
    %v3446 = vld [vmem:[%s3436 + $0x48] sm:$0xff]
    %v3447 = vld [vmem:[%s3436 + $0x50] sm:$0xff]
    %v3448 = vld [vmem:[%s3436 + $0x58] sm:$0xff]
    %v3449 = vld [vmem:[%s3436 + $0x60] sm:$0xff]
    %v3450 = vld [vmem:[%s3436 + $0x68] sm:$0xff]
    %v3451 = vld [vmem:[%s3436 + $0x70] sm:$0xff]
    %v3452 = vld [vmem:[%s3436 + $0x78] sm:$0xff]
    %s3453 = scalar_lea.vmem [#allocation7], 1
    %v3454 = vld [vmem:[%s3453] sm:$0x1]
    %v3456 = vlaneseq
    %v3457 = vshrl.u32 %v3456, 7
    %v3458 = vsub.s32 0, %v3457
    %v3459 = vrot.slane %v3454, %v3458
    %3461 = vmatprep.subr.mxu0 0.0
    %3462 = vmatpush1.msra.mxu0 %v3437
    %3463 = vmatprep.subr.mxu0 0.0
    %3464 = vmatpush1.msra.mxu0 %v3438
    %3465 = vmatprep.subr.mxu0 0.0
    %3466 = vmatpush1.msra.mxu0 %v3439
    %3467 = vmatprep.subr.mxu0 0.0
    %3468 = vmatpush1.msra.mxu0 %v3440
    %3469 = vmatprep.subr.mxu0 0.0
    %3470 = vmatpush1.msra.mxu0 %v3441
    %3471 = vmatprep.subr.mxu0 0.0
    %3472 = vmatpush1.msra.mxu0 %v3442
    %3473 = vmatprep.subr.mxu0 0.0
    %3474 = vmatpush1.msra.mxu0 %v3443
    %3475 = vmatprep.subr.mxu0 0.0
    %3476 = vmatpush1.msra.mxu0 %v3444
    %3477 = vmatprep.subr.mxu0 0.0
    %3478 = vmatpush1.msra.mxu0 %v3445
    %3479 = vmatprep.subr.mxu0 0.0
    %3480 = vmatpush1.msra.mxu0 %v3446
    %3481 = vmatprep.subr.mxu0 0.0
    %3482 = vmatpush1.msra.mxu0 %v3447
    %3483 = vmatprep.subr.mxu0 0.0
    %3484 = vmatpush1.msra.mxu0 %v3448
    %3485 = vmatprep.subr.mxu0 0.0
    %3486 = vmatpush1.msra.mxu0 %v3449
    %3487 = vmatprep.subr.mxu0 0.0
    %3488 = vmatpush1.msra.mxu0 %v3450
    %3489 = vmatprep.subr.mxu0 0.0
    %3490 = vmatpush1.msra.mxu0 %v3451
    %3491 = vmatprep.subr.mxu0 0.0
    %3492 = vmatpush1.msra.mxu0 %v3452
    %3493 = vmatprep.subr.mxu0 0.0
    %3494 = vmatpush1.msra.mxu0 0.0
    %3495 = vmatprep.subr.mxu0 0.0
    %3496 = vmatpush1.msra.mxu0 0.0
    %3497 = vmatprep.subr.mxu0 0.0
    %3498 = vmatpush1.msra.mxu0 0.0
    %3499 = vmatprep.subr.mxu0 0.0
    %3500 = vmatpush1.msra.mxu0 0.0
    %3501 = vmatprep.subr.mxu0 0.0
    %3502 = vmatpush1.msra.mxu0 0.0
    %3503 = vmatprep.subr.mxu0 0.0
    %3504 = vmatpush1.msra.mxu0 0.0
    %3505 = vmatprep.subr.mxu0 0.0
    %3506 = vmatpush1.msra.mxu0 0.0
    %3507 = vmatprep.subr.mxu0 0.0
    %3508 = vmatpush1.msra.mxu0 0.0
    %3509 = vmatprep.subr.mxu0 0.0
    %3510 = vmatpush1.msra.mxu0 0.0
    %3511 = vmatprep.subr.mxu0 0.0
    %3512 = vmatpush1.msra.mxu0 0.0
    %3513 = vmatprep.subr.mxu0 0.0
    %3514 = vmatpush1.msra.mxu0 0.0
    %3515 = vmatprep.subr.mxu0 0.0
    %3516 = vmatpush1.msra.mxu0 0.0
    %3517 = vmatprep.subr.mxu0 0.0
    %3518 = vmatpush1.msra.mxu0 0.0
    %3519 = vmatprep.subr.mxu0 0.0
    %3520 = vmatpush1.msra.mxu0 0.0
    %3521 = vmatprep.subr.mxu0 0.0
    %3522 = vmatpush1.msra.mxu0 0.0
    %3523 = vmatprep.subr.mxu0 0.0
    %3524 = vmatpush1.msra.mxu0 0.0
    %3525 = vmatprep.mubr.f32.mxu0 0.0
    %3526 = vmatmul.mubr.f32.gmra.mrb[0].mxu0 %v3434
    %v3527 = vpop.f32.mrb[0].mxu0
    %v3528 = vadd.f32 %v3459, %v3527
    %v3529 = vpop.f32.mrb[0].mxu0
    %3530 = vmatprep.mubr.f32.mxu0 0.0
    %3531 = vmatmul.mubr.f32.gmra.mrb[0].mxu0 %v3435
    %v3532 = vpop.f32.mrb[0].mxu0
    %v3533 = vadd.f32 %v3459, %v3532
    %v3534 = vpop.f32.mrb[0].mxu0
    %3535 = vdwg.mxu0
    %v3536 = vadd.f32 %v3338, %v3528
    %v3537 = vadd.f32 %v3339, %v3533
    %s3538 = scalar_lea.vmem %s16, 1
    %v3539 = vld [vmem:[%s3538] sm:$0x1]
    %s3540 = scalar_lea.vmem %s17, 1
    %v3541 = vld [vmem:[%s3540] sm:$0x1]
    %v3542 = vsel %vm201, %v3536, 0.0
    %v3543 = vsel %vm201, %v3537, 0.0
    %v3544 = vadd.f32 %v3542, %v3543
    %v3545 = vrot.slane %v3544, 4
    %v3546 = vadd.f32 %v3544, %v3545
    %v3547 = vrot.slane %v3546, 2
    %v3548 = vadd.f32 %v3546, %v3547
    %v3549 = vrot.slane %v3548, 1
    %v3550 = vadd.f32 %v3548, %v3549
    %v3551 = vmul.f32 %v3550, %v1614
    %v3552 = vsub.f32 %v3536, %v3551
    %v3553 = vsub.f32 %v3537, %v3551
    %v3554 = vmul.f32 %v3552, %v3552
    %v3555 = vmul.f32 %v3553, %v3553
    %v3556 = vsel %vm201, %v3554, 0.0
    %v3557 = vsel %vm201, %v3555, 0.0
    %v3558 = vadd.f32 %v3556, %v3557
    %v3559 = vrot.slane %v3558, 4
    %v3560 = vadd.f32 %v3558, %v3559
    %v3561 = vrot.slane %v3560, 2
    %v3562 = vadd.f32 %v3560, %v3561
    %v3563 = vrot.slane %v3562, 1
    %v3564 = vadd.f32 %v3562, %v3563
    %v3565 = vmul.f32 %v3564, %v1614
    %v3566 = vadd.f32 %v3565, 1e-05
    %v3567 = vrsqrt.pop %v3566
    %v3568 = vmul.f32 %v3552, %v3567
    %v3569 = vmul.f32 %v3553, %v3567
    %v3571 = vlaneseq
    %v3572 = vshrl.u32 %v3571, 7
    %v3573 = vsub.s32 0, %v3572
    %v3574 = vrot.slane %v3539, %v3573
    %v3576 = vmul.f32 %v3568, %v3574
    %v3577 = vmul.f32 %v3569, %v3574
    %v3579 = vlaneseq
    %v3580 = vshrl.u32 %v3579, 7
    %v3581 = vsub.s32 0, %v3580
    %v3582 = vrot.slane %v3541, %v3581
    %v3584 = vadd.f32 %v3576, %v3582
    %v3585 = vadd.f32 %v3577, %v3582
    %3586 = vst.msk [vmem:[#allocation8] sm:$0xff] %vm201, %v3584
    %3587 = vst.msk [vmem:[#allocation8 + $0x8] sm:$0xff] %vm201, %v3585
    // Predicated region
    $region86: #{tpu_custom_call.1} parent=1 // pred_check
      _
    $region87: #{tpu_custom_call.1} parent=1 // pred_check_branch
      %3589 = sbr.rel (0) target = $region89
    $region88: #{tpu_custom_call.1} parent=1 // pred_region
      %s3591 = ssub.s32 256, 256
      %3592 = vsyncadd [#allocation4], %s3591
      %s3593 = sshll.u32 [#allocation8], 4
      %s3594 = int_to_ptr.vmem [resolvable:$true] %s3593
      %3599 = dma.vmem_to_hbm [thread:$0]  %s3594, 256, %s18, [#allocation4], 128, 128, 8
    $region89: #{tpu_custom_call.1} parent=1 // pred_fallthru
      _
    // Predicated region
    $region90: #{tpu_custom_call.1} parent=1 // pred_check
      _
    $region91: #{tpu_custom_call.1} parent=1 // pred_check_branch
      %3601 = sbr.rel (0) target = $region93
    $region92: #{tpu_custom_call.1} parent=1 // pred_region
      %3602 = dma.done [#allocation4], 256
    $region93: #{tpu_custom_call.1} parent=1 // pred_fallthru
      _
    %3603 = vsyncpa [#allocation3], 1
    %3604 = vsyncpa [#allocation6], 1
    %3605 = vsyncpa [#allocation4], 1

</llo_original>
